<compile_context>
chip_gen: v5e
topology: v5e:2x2
jax: 0.10.0
libtpu: 0.0.40
codegen_flags: <defaults>
</compile_context>

<pallas_src>
import functools
import math

import jax
import jax.numpy as jnp
from jax import lax
from jax.experimental import pallas as pl
from jax.experimental.pallas import tpu as pltpu

EPS = 1e-5
MATMUL_DTYPE = jnp.bfloat16      # MXU operand dtype (accumulation is f32)


# --------------------------------------------------------------------------- #
# small helpers
# --------------------------------------------------------------------------- #
def _round_up(x, m):
    return (x + m - 1) // m * m


def _pad_cout(c):
    """Lane-dense stores: pad out-channels to a multiple of 128 when overhead
    stays <= 2x; tiny channel counts are left unpadded."""
    return _round_up(c, 128) if c >= 64 else c


def _pick_row_chunk(hp, wpad, target=768):
    """Output rows per grid step: largest divisor of hp with th*wpad <= target.
    Prime hp degrades gracefully to th=1 (1 row per *grid step*, no unroll)."""
    limit = max(1, target // wpad)
    best = 1
    for t in range(1, min(hp, limit) + 1):
        if hp % t == 0:
            best = t
    return best


def _vmem_cap_bytes():
    try:
        phys = int(pltpu.get_tpu_info().vmem_capacity_bytes)
    except Exception:
        phys = 64 << 20           # conservative fallback, compiles everywhere
    return max(int(phys * 0.85), 32 << 20)


def _compiler_params(block_specs, scratch_specs=()):
    nbytes = lambda sh, dt: math.prod(sh) * jnp.dtype(dt).itemsize
    need = (2 * sum(nbytes(s, d) for s, d in block_specs)
            + sum(nbytes(s, d) for s, d in scratch_specs)
            + (8 << 20))
    vmem = int(min(max(need, 32 << 20), _vmem_cap_bytes()))
    return pltpu.CompilerParams(dimension_semantics=("parallel", "parallel"),
                                vmem_limit_bytes=vmem)


# --------------------------------------------------------------------------- #
# in-kernel conv / stats helpers
# --------------------------------------------------------------------------- #
def _conv3x3(pad_ref, w_ref, *, th, wpad, coutp):
    """3x3 conv over the zero-padded scratch (th+4, wpad, cin).

    Scratch row s holds pooled/activation image row (chunk_row0 - 2 + s);
    column c holds image column c-1 (cols 0 and >= wp+1 are zero).  The conv is
    computed over the full padded width (discarded border columns are masked
    out later), which makes every tap a constant flat-index shift of one
    contiguous slab -> no im2col, no strided tap copies.
    """
    m = th * wpad
    cin = pad_ref.shape[-1]
    acc = jnp.zeros((m, coutp), jnp.float32)
    for dy in range(3):
        v = pad_ref[dy:dy + th + 2, :, :].reshape((th + 2) * wpad, cin)
        a = jnp.concatenate(
            [v[wpad - 1:wpad - 1 + m],   # kx = 0  (shift -1 in flat index)
             v[wpad:wpad + m],           # kx = 1
             v[wpad + 1:wpad + 1 + m]],  # kx = 2  (shift +1)
            axis=-1)                     # (m, 3*cin)
        acc = acc + jnp.dot(a, w_ref[dy], preferred_element_type=jnp.float32)
    return acc


def _finish(acc, y_ref, st_ref, *, th, wp, wpad, coutp):
    """Mask the padded-width border columns out of the BN statistics and store
    the (still padded-width, lane-dense) activation chunk in bf16."""
    m = th * wpad
    col = lax.broadcasted_iota(jnp.int32, (m, 1), 0) % wpad
    keep = jnp.logical_and(col >= 1, col <= wp)
    masked = jnp.where(keep, acc, 0.0)
    s = jnp.sum(masked, axis=0, keepdims=True)
    ss = jnp.sum(masked * masked, axis=0, keepdims=True)
    st_ref[0, 0] = jnp.concatenate([s, ss], axis=0)
    y_ref[0] = acc.reshape(th, wpad, coutp).astype(y_ref.dtype)


# --------------------------------------------------------------------------- #
# pass 1: maxpool(2) + conv1 (+ partial BN1 stats)
# --------------------------------------------------------------------------- #
def _pool_conv1_kernel(x_ref, w_ref, y_ref, st_ref, pad_ref,
                       *, wp, wpad, cin, coutp, th, nck):
    c = pl.program_id(1)

    def pool(rows2):                 # (2r, wp, 2*cin) -> (r, wp, cin)
        r2 = rows2.shape[0]
        xr = rows2.reshape(r2 // 2, 2, wp, 2 * cin)
        h = jnp.max(xr, axis=1)                       # max over the H phases
        return jnp.maximum(h[..., :cin], h[..., cin:])  # max over the W phases

    x0 = c * (2 * th)
    # main rows: pooled rows [c*th, c*th+th)  -> scratch rows [2, th+2)
    pad_ref[2:th + 2, 1:wp + 1, :] = pool(x_ref[0, pl.ds(x0, 2 * th), :, :])

    # top halo (scratch row 1) = pooled row c*th-1, zeros on the first chunk
    @pl.when(c == 0)
    def _():
        pad_ref[1:2, 1:wp + 1, :] = jnp.zeros((1, wp, cin), pad_ref.dtype)

    @pl.when(c > 0)
    def _():
        pad_ref[1:2, 1:wp + 1, :] = pool(x_ref[0, pl.ds(x0 - 2, 2), :, :])

    # bottom halo (scratch row th+2) = pooled row c*th+th, zeros on the last
    @pl.when(c == nck - 1)
    def _():
        pad_ref[th + 2:th + 3, 1:wp + 1, :] = jnp.zeros((1, wp, cin),
                                                        pad_ref.dtype)

    @pl.when(c < nck - 1)
    def _():
        pad_ref[th + 2:th + 3, 1:wp + 1, :] = pool(
            x_ref[0, pl.ds(x0 + 2 * th, 2), :, :])

    # zero-pad columns (left border + right border/padding), done last
    pad_ref[:, 0:1, :] = jnp.zeros((th + 4, 1, cin), pad_ref.dtype)
    pad_ref[:, wp + 1:, :] = jnp.zeros((th + 4, wpad - wp - 1, cin),
                                       pad_ref.dtype)

    acc = _conv3x3(pad_ref, w_ref, th=th, wpad=wpad, coutp=coutp)
    _finish(acc, y_ref, st_ref, th=th, wp=wp, wpad=wpad, coutp=coutp)


# --------------------------------------------------------------------------- #
# pass 2: BN1 + ReLU + conv2 (+ partial BN2 stats)
# --------------------------------------------------------------------------- #
def _bnrelu_conv2_kernel(y1_ref, sc_ref, sh_ref, w_ref, y_ref, st_ref, pad_ref,
                         *, wp, wpad, cmid, coutp, th, nck):
    c = pl.program_id(1)
    sc = sc_ref[...].reshape(1, 1, cmid)
    sh = sh_ref[...].reshape(1, 1, cmid)

    def bnrelu(rows):                # (r, wpad, cmid) bf16 -> bf16
        return jnp.maximum(rows.astype(jnp.float32) * sc + sh,
                           0.0).astype(pad_ref.dtype)

    r0 = c * th
    # main rows: stored full-width at column offset 0 (aligned store)
    pad_ref[2:th + 2, :, :] = bnrelu(y1_ref[0, pl.ds(r0, th), :, :])

    @pl.when(c == 0)
    def _():
        pad_ref[1:2, :, :] = jnp.zeros((1, wpad, cmid), pad_ref.dtype)

    @pl.when(c > 0)
    def _():
        pad_ref[1:2, :, :] = bnrelu(y1_ref[0, pl.ds(r0 - 1, 1), :, :])

    @pl.when(c == nck - 1)
    def _():
        pad_ref[th + 2:th + 3, :, :] = jnp.zeros((1, wpad, cmid), pad_ref.dtype)

    @pl.when(c < nck - 1)
    def _():
        pad_ref[th + 2:th + 3, :, :] = bnrelu(y1_ref[0, pl.ds(r0 + th, 1), :, :])

    # re-zero the padding columns (y1's stored borders contain junk), done last
    pad_ref[:, 0:1, :] = jnp.zeros((th + 4, 1, cmid), pad_ref.dtype)
    pad_ref[:, wp + 1:, :] = jnp.zeros((th + 4, wpad - wp - 1, cmid),
                                       pad_ref.dtype)

    acc = _conv3x3(pad_ref, w_ref, th=th, wpad=wpad, coutp=coutp)
    _finish(acc, y_ref, st_ref, th=th, wp=wp, wpad=wpad, coutp=coutp)


# --------------------------------------------------------------------------- #
# pass 3: BN2 + ReLU (strips the width/channel padding)
# --------------------------------------------------------------------------- #
def _bnrelu_out_kernel(y2_ref, sc_ref, sh_ref, out_ref, *, wp, cout):
    v = y2_ref[0, :, 1:wp + 1, :cout].astype(jnp.float32)   # (th, wp, cout)
    sc = sc_ref[...].reshape(1, 1, cout)
    sh = sh_ref[...].reshape(1, 1, cout)
    out_ref[0] = jnp.maximum(v * sc + sh, 0.0)


# --------------------------------------------------------------------------- #
# wrapper-side BN folding (Chan/Welford-style merge of per-chunk partials)
# --------------------------------------------------------------------------- #
def _bn_scale_shift(stats, gamma, beta, chunk_elems):
    # stats: (N, n_chunks, 2, C) f32 with [sum, sum_of_squares] per chunk.
    s = stats[:, :, 0, :].astype(jnp.float32)
    ss = stats[:, :, 1, :].astype(jnp.float32)
    n_c = jnp.float32(chunk_elems)
    mean_c = s / n_c
    m2_c = jnp.maximum(ss - n_c * mean_c * mean_c, 0.0)   # per-chunk centered SS
    total = n_c * s.shape[0] * s.shape[1]
    mean = jnp.sum(s, axis=(0, 1)) / total
    m2 = (jnp.sum(m2_c, axis=(0, 1))
          + n_c * jnp.sum((mean_c - mean) ** 2, axis=(0, 1)))
    var = m2 / total                                      # biased, as in BN train
    scale = gamma * lax.rsqrt(var + EPS)
    shift = beta - mean * scale
    return (scale.reshape(1, -1).astype(jnp.float32),
            shift.reshape(1, -1).astype(jnp.float32))


# --------------------------------------------------------------------------- #
# forward
# --------------------------------------------------------------------------- #
def down_forward(x_nchw, params, matmul_dtype=MATMUL_DTYPE):
    """down(in_ch, out_ch).forward(x): x NCHW -> NCHW (train-mode BatchNorm)."""
    w1, b1, g1, be1, w2, b2, g2, be2 = params
    del b1, b2   # conv bias followed by train-mode BN cancels exactly
    N, Cin, H, W = x_nchw.shape
    assert H % 2 == 0 and W % 2 == 0
    Hp, Wp = H // 2, W // 2
    Cout = w1.shape[-1]
    Coutp = _pad_cout(Cout)
    Wpad = _round_up(Wp + 2, 8)           # padded width, multiple of 8 sublanes
    th = _pick_row_chunk(Hp, Wpad)
    nck = Hp // th
    pc = Coutp - Cout

    # layout glue: NCHW -> NHWC, pack the 2 W-pool phases onto lanes (free reshape)
    x = jnp.transpose(x_nchw, (0, 2, 3, 1)).astype(matmul_dtype)
    x = x.reshape(N, H, Wp, 2 * Cin)

    # weights: HWIO -> (ky, 3*Cin, Coutp); conv2 input channels padded too
    w1f = jnp.pad(w1, ((0, 0), (0, 0), (0, 0), (0, pc)))
    w1f = w1f.reshape(3, 3 * Cin, Coutp).astype(matmul_dtype)
    w2f = jnp.pad(w2, ((0, 0), (0, 0), (0, pc), (0, pc)))
    w2f = w2f.reshape(3, 3 * Coutp, Coutp).astype(matmul_dtype)
    g1p, be1p = jnp.pad(g1, (0, pc)), jnp.pad(be1, (0, pc))
    g2p, be2p = jnp.pad(g2, (0, pc)), jnp.pad(be2, (0, pc))

    # ------------------- pass 1: maxpool + conv1 (+ BN1 partials) -----------
    p1_blocks = [((1, H, Wp, 2 * Cin), matmul_dtype),
                 ((3, 3 * Cin, Coutp), matmul_dtype),
                 ((1, th, Wpad, Coutp), matmul_dtype),
                 ((1, 1, 2, Coutp), jnp.float32)]
    p1_scratch = [((th + 4, Wpad, Cin), matmul_dtype)]
    y1, st1 = pl.pallas_call(
        functools.partial(_pool_conv1_kernel, wp=Wp, wpad=Wpad, cin=Cin,
                          coutp=Coutp, th=th, nck=nck),
        grid=(N, nck),
        in_specs=[
            pl.BlockSpec((1, H, Wp, 2 * Cin), lambda n, c: (n, 0, 0, 0)),
            pl.BlockSpec((3, 3 * Cin, Coutp), lambda n, c: (0, 0, 0)),
        ],
        out_specs=[
            pl.BlockSpec((1, th, Wpad, Coutp), lambda n, c: (n, c, 0, 0)),
            pl.BlockSpec((1, 1, 2, Coutp), lambda n, c: (n, c, 0, 0)),
        ],
        out_shape=[
            jax.ShapeDtypeStruct((N, Hp, Wpad, Coutp), matmul_dtype),
            jax.ShapeDtypeStruct((N, nck, 2, Coutp), jnp.float32),
        ],
        scratch_shapes=[pltpu.VMEM((th + 4, Wpad, Cin), matmul_dtype)],
        compiler_params=_compiler_params(p1_blocks, p1_scratch),
    )(x, w1f)
    scale1, shift1 = _bn_scale_shift(st1, g1p, be1p, th * Wp)

    # ------------------- pass 2: BN1 + ReLU + conv2 (+ BN2 partials) --------
    p2_blocks = [((1, Hp, Wpad, Coutp), matmul_dtype),
                 ((1, Coutp), jnp.float32), ((1, Coutp), jnp.float32),
                 ((3, 3 * Coutp, Coutp), matmul_dtype),
                 ((1, th, Wpad, Coutp), matmul_dtype),
                 ((1, 1, 2, Coutp), jnp.float32)]
    p2_scratch = [((th + 4, Wpad, Coutp), matmul_dtype)]
    y2, st2 = pl.pallas_call(
        functools.partial(_bnrelu_conv2_kernel, wp=Wp, wpad=Wpad, cmid=Coutp,
                          coutp=Coutp, th=th, nck=nck),
        grid=(N, nck),
        in_specs=[
            pl.BlockSpec((1, Hp, Wpad, Coutp), lambda n, c: (n, 0, 0, 0)),
            pl.BlockSpec((1, Coutp), lambda n, c: (0, 0)),
            pl.BlockSpec((1, Coutp), lambda n, c: (0, 0)),
            pl.BlockSpec((3, 3 * Coutp, Coutp), lambda n, c: (0, 0, 0)),
        ],
        out_specs=[
            pl.BlockSpec((1, th, Wpad, Coutp), lambda n, c: (n, c, 0, 0)),
            pl.BlockSpec((1, 1, 2, Coutp), lambda n, c: (n, c, 0, 0)),
        ],
        out_shape=[
            jax.ShapeDtypeStruct((N, Hp, Wpad, Coutp), matmul_dtype),
            jax.ShapeDtypeStruct((N, nck, 2, Coutp), jnp.float32),
        ],
        scratch_shapes=[pltpu.VMEM((th + 4, Wpad, Coutp), matmul_dtype)],
        compiler_params=_compiler_params(p2_blocks, p2_scratch),
    )(y1, scale1, shift1, w2f)
    scale2, shift2 = _bn_scale_shift(st2, g2p, be2p, th * Wp)

    # ------------------- pass 3: BN2 + ReLU ----------------------------------
    p3_blocks = [((1, th, Wpad, Coutp), matmul_dtype),
                 ((1, Cout), jnp.float32), ((1, Cout), jnp.float32),
                 ((1, th, Wp, Cout), jnp.float32)]
    out = pl.pallas_call(
        functools.partial(_bnrelu_out_kernel, wp=Wp, cout=Cout),
        grid=(N, nck),
        in_specs=[
            pl.BlockSpec((1, th, Wpad, Coutp), lambda n, c: (n, c, 0, 0)),
            pl.BlockSpec((1, Cout), lambda n, c: (0, 0)),
            pl.BlockSpec((1, Cout), lambda n, c: (0, 0)),
        ],
        out_specs=pl.BlockSpec((1, th, Wp, Cout), lambda n, c: (n, c, 0, 0)),
        out_shape=jax.ShapeDtypeStruct((N, Hp, Wp, Cout), jnp.float32),
        compiler_params=_compiler_params(p3_blocks),
    )(y2, scale2[:, :Cout], shift2[:, :Cout])

    # TODO(synk): keep NHWC end-to-end across the network to drop this relayout.
    return jnp.transpose(out, (0, 3, 1, 2))


# --------------------------------------------------------------------------- #
# pure-JAX reference (train-mode BN, same semantics as the PyTorch module)
# --------------------------------------------------------------------------- #
def down_reference(x_nchw, params):
    w1, b1, g1, be1, w2, b2, g2, be2 = params
    x = jnp.transpose(x_nchw, (0, 2, 3, 1)).astype(jnp.float32)
    xp = lax.reduce_window(x, -jnp.inf, lax.max, (1, 2, 2, 1), (1, 2, 2, 1),
                           "VALID")

    def block(h, w, b, g, be):
        y = lax.conv_general_dilated(
            h, w, (1, 1), "SAME",
            dimension_numbers=("NHWC", "HWIO", "NHWC")) + b
        m = jnp.mean(y, axis=(0, 1, 2), keepdims=True)
        v = jnp.mean((y - m) ** 2, axis=(0, 1, 2), keepdims=True)
        y = (y - m) * lax.rsqrt(v + EPS) * g + be
        return jnp.maximum(y, 0.0)

    h = block(xp, w1, b1, g1, be1)
    h = block(h, w2, b2, g2, be2)
    return jnp.transpose(h, (0, 3, 1, 2))


def init_params(key, in_ch, out_ch):
    k1, k2, k3, k4 = jax.random.split(key, 4)
    w1 = jax.random.normal(k1, (3, 3, in_ch, out_ch), jnp.float32) * 0.1   # HWIO
    b1 = jax.random.normal(k2, (out_ch,), jnp.float32) * 0.01
    g1 = jnp.ones((out_ch,), jnp.float32)
    be1 = jnp.zeros((out_ch,), jnp.float32)
    w2 = jax.random.normal(k3, (3, 3, out_ch, out_ch), jnp.float32) * 0.1
    b2 = jax.random.normal(k4, (out_ch,), jnp.float32) * 0.01
    g2 = jnp.ones((out_ch,), jnp.float32)
    be2 = jnp.zeros((out_ch,), jnp.float32)
    return (w1, b1, g1, be1, w2, b2, g2, be2)


if __name__ == "__main__":
    N, in_ch, out_ch, H, W = 2, 4, 8, 16, 16
    key = jax.random.PRNGKey(0)
    kx, kp = jax.random.split(key)
    x = jax.random.normal(kx, (N, in_ch, H, W), jnp.float32)   # NCHW, like PyTorch
    params = init_params(kp, in_ch, out_ch)

    out = jax.block_until_ready(jax.jit(down_forward)(x, params))
    assert out.shape == (N, out_ch, H // 2, W // 2), out.shape

    ref = jax.block_until_ready(down_reference(x, params))
    err = float(jnp.max(jnp.abs(out - ref)))
    # bf16 MXU operands with f32 accumulation: errors stay well below 5e-2.
    assert err < 5e-2, err

    print("KERNEL_OK")
</pallas_src>

<mosaic_0001>
module attributes {stable_mosaic.version = 11 : i64} {
  func.func @_pool_conv1_kernel(%arg0: i32, %arg1: i32, %arg2: memref<1x16x8x8xbf16, #tpu.memory_space<vmem>>, %arg3: memref<3x12x8xbf16, #tpu.memory_space<vmem>>, %arg4: memref<1x8x16x8xbf16, #tpu.memory_space<vmem>>, %arg5: memref<1x1x2x8xf32, #tpu.memory_space<vmem>>, %arg6: memref<12x16x4xbf16, #tpu.memory_space<vmem>>) attributes {dimension_semantics = [#tpu.dimension_semantics<parallel>, #tpu.dimension_semantics<parallel>], iteration_bounds = array<i64: 2, 1>, scalar_prefetch = 0 : i64, scratch_operands = 1 : i64, tpu.core_type = #tpu.core_type<tc>, window_params = [{transform_indices = @transform_0, window_bounds = array<i64: 1, 16, 8, 8>}, {pipeline_mode = #tpu.pipeline_mode<synchronous>, transform_indices = @transform_1, window_bounds = array<i64: 3, 12, 8>}, {transform_indices = @transform_2, window_bounds = array<i64: 1, 8, 16, 8>}, {transform_indices = @transform_3, window_bounds = array<i64: 1, 1, 2, 8>}]} {
    %c16_i32 = arith.constant 16 : i32
    %0 = arith.muli %arg1, %c16_i32 : i32
    %c0 = arith.constant 0 : index
    %1 = arith.index_cast %0 : i32 to index
    %c0_0 = arith.constant 0 : index
    %c0_1 = arith.constant 0 : index
    %2 = vector.load %arg2[%c0, %1, %c0_0, %c0_1] : memref<1x16x8x8xbf16, #tpu.memory_space<vmem>>, vector<1x16x8x8xbf16>
    %3 = vector.shape_cast %2 : vector<1x16x8x8xbf16> to vector<16x8x8xbf16>
    %4 = vector.shape_cast %3 : vector<16x8x8xbf16> to vector<8x2x8x8xbf16>
    %cst = arith.constant dense<0xFF80> : vector<8x8x8xbf16>
    %5 = vector.multi_reduction <maximumf>, %4, %cst [1] : vector<8x2x8x8xbf16> to vector<8x8x8xbf16>
    %6 = vector.extract_strided_slice %5 {offsets = [0, 0, 0], sizes = [8, 8, 4], strides = [1, 1, 1]} : vector<8x8x8xbf16> to vector<8x8x4xbf16>
    %7 = vector.extract_strided_slice %5 {offsets = [0, 0, 4], sizes = [8, 8, 4], strides = [1, 1, 1]} : vector<8x8x8xbf16> to vector<8x8x4xbf16>
    %8 = arith.maximumf %6, %7 : vector<8x8x4xbf16>
    %c2 = arith.constant 2 : index
    %c1 = arith.constant 1 : index
    %c0_2 = arith.constant 0 : index
    %9 = vector.load %arg6[%c2, %c1, %c0_2] : memref<12x16x4xbf16, #tpu.memory_space<vmem>>, vector<8x8x4xbf16>
    tpu.vector_store %arg6[%c2, %c1, %c0_2], %8 {strides = array<i32>} : memref<12x16x4xbf16, #tpu.memory_space<vmem>>, vector<8x8x4xbf16>,
    %c0_i32 = arith.constant 0 : i32
    %10 = arith.cmpi eq, %arg1, %c0_i32 : i32
    %11 = arith.extui %10 : i1 to i32
    %c0_i32_3 = arith.constant 0 : i32
    %12 = arith.cmpi ne, %11, %c0_i32_3 : i32
    scf.if %12 {
      %cst_56 = arith.constant 0.000000e+00 : bf16
      %97 = vector.broadcast %cst_56 : bf16 to vector<1x8x4xbf16>
      %c1_57 = arith.constant 1 : index
      %c1_58 = arith.constant 1 : index
      %c0_59 = arith.constant 0 : index
      %98 = vector.load %arg6[%c1_57, %c1_58, %c0_59] : memref<12x16x4xbf16, #tpu.memory_space<vmem>>, vector<1x8x4xbf16>
      tpu.vector_store %arg6[%c1_57, %c1_58, %c0_59], %97 {strides = array<i32>} : memref<12x16x4xbf16, #tpu.memory_space<vmem>>, vector<1x8x4xbf16>,
    } else {
    }
    %c0_i32_4 = arith.constant 0 : i32
    %13 = arith.cmpi sgt, %arg1, %c0_i32_4 : i32
    %14 = arith.extui %13 : i1 to i32
    %c0_i32_5 = arith.constant 0 : i32
    %15 = arith.cmpi ne, %14, %c0_i32_5 : i32
    scf.if %15 {
      %c2_i32 = arith.constant 2 : i32
      %97 = arith.subi %0, %c2_i32 : i32
      %c0_56 = arith.constant 0 : index
      %98 = arith.index_cast %97 : i32 to index
      %c0_57 = arith.constant 0 : index
      %c0_58 = arith.constant 0 : index
      %99 = vector.load %arg2[%c0_56, %98, %c0_57, %c0_58] : memref<1x16x8x8xbf16, #tpu.memory_space<vmem>>, vector<1x2x8x8xbf16>
      %100 = vector.shape_cast %99 : vector<1x2x8x8xbf16> to vector<2x8x8xbf16>
      %101 = vector.shape_cast %100 : vector<2x8x8xbf16> to vector<1x2x8x8xbf16>
      %cst_59 = arith.constant dense<0xFF80> : vector<1x8x8xbf16>
      %102 = vector.multi_reduction <maximumf>, %101, %cst_59 [1] : vector<1x2x8x8xbf16> to vector<1x8x8xbf16>
      %103 = vector.extract_strided_slice %102 {offsets = [0, 0, 0], sizes = [1, 8, 4], strides = [1, 1, 1]} : vector<1x8x8xbf16> to vector<1x8x4xbf16>
      %104 = vector.extract_strided_slice %102 {offsets = [0, 0, 4], sizes = [1, 8, 4], strides = [1, 1, 1]} : vector<1x8x8xbf16> to vector<1x8x4xbf16>
      %105 = arith.maximumf %103, %104 : vector<1x8x4xbf16>
      %c1_60 = arith.constant 1 : index
      %c1_61 = arith.constant 1 : index
      %c0_62 = arith.constant 0 : index
      %106 = vector.load %arg6[%c1_60, %c1_61, %c0_62] : memref<12x16x4xbf16, #tpu.memory_space<vmem>>, vector<1x8x4xbf16>
      tpu.vector_store %arg6[%c1_60, %c1_61, %c0_62], %105 {strides = array<i32>} : memref<12x16x4xbf16, #tpu.memory_space<vmem>>, vector<1x8x4xbf16>,
    } else {
    }
    %c0_i32_6 = arith.constant 0 : i32
    %16 = arith.cmpi eq, %arg1, %c0_i32_6 : i32
    %17 = arith.extui %16 : i1 to i32
    %c0_i32_7 = arith.constant 0 : i32
    %18 = arith.cmpi ne, %17, %c0_i32_7 : i32
    scf.if %18 {
      %cst_56 = arith.constant 0.000000e+00 : bf16
      %97 = vector.broadcast %cst_56 : bf16 to vector<1x8x4xbf16>
      %c10 = arith.constant 10 : index
      %c1_57 = arith.constant 1 : index
      %c0_58 = arith.constant 0 : index
      %98 = vector.load %arg6[%c10, %c1_57, %c0_58] : memref<12x16x4xbf16, #tpu.memory_space<vmem>>, vector<1x8x4xbf16>
      tpu.vector_store %arg6[%c10, %c1_57, %c0_58], %97 {strides = array<i32>} : memref<12x16x4xbf16, #tpu.memory_space<vmem>>, vector<1x8x4xbf16>,
    } else {
    }
    %c0_i32_8 = arith.constant 0 : i32
    %19 = arith.cmpi slt, %arg1, %c0_i32_8 : i32
    %20 = arith.extui %19 : i1 to i32
    %c0_i32_9 = arith.constant 0 : i32
    %21 = arith.cmpi ne, %20, %c0_i32_9 : i32
    scf.if %21 {
      %c16_i32_56 = arith.constant 16 : i32
      %97 = arith.addi %0, %c16_i32_56 : i32
      %c0_57 = arith.constant 0 : index
      %98 = arith.index_cast %97 : i32 to index
      %c0_58 = arith.constant 0 : index
      %c0_59 = arith.constant 0 : index
      %99 = vector.load %arg2[%c0_57, %98, %c0_58, %c0_59] : memref<1x16x8x8xbf16, #tpu.memory_space<vmem>>, vector<1x2x8x8xbf16>
      %100 = vector.shape_cast %99 : vector<1x2x8x8xbf16> to vector<2x8x8xbf16>
      %101 = vector.shape_cast %100 : vector<2x8x8xbf16> to vector<1x2x8x8xbf16>
      %cst_60 = arith.constant dense<0xFF80> : vector<1x8x8xbf16>
      %102 = vector.multi_reduction <maximumf>, %101, %cst_60 [1] : vector<1x2x8x8xbf16> to vector<1x8x8xbf16>
      %103 = vector.extract_strided_slice %102 {offsets = [0, 0, 0], sizes = [1, 8, 4], strides = [1, 1, 1]} : vector<1x8x8xbf16> to vector<1x8x4xbf16>
      %104 = vector.extract_strided_slice %102 {offsets = [0, 0, 4], sizes = [1, 8, 4], strides = [1, 1, 1]} : vector<1x8x8xbf16> to vector<1x8x4xbf16>
      %105 = arith.maximumf %103, %104 : vector<1x8x4xbf16>
      %c10 = arith.constant 10 : index
      %c1_61 = arith.constant 1 : index
      %c0_62 = arith.constant 0 : index
      %106 = vector.load %arg6[%c10, %c1_61, %c0_62] : memref<12x16x4xbf16, #tpu.memory_space<vmem>>, vector<1x8x4xbf16>
      tpu.vector_store %arg6[%c10, %c1_61, %c0_62], %105 {strides = array<i32>} : memref<12x16x4xbf16, #tpu.memory_space<vmem>>, vector<1x8x4xbf16>,
    } else {
    }
    %cst_10 = arith.constant 0.000000e+00 : bf16
    %22 = vector.broadcast %cst_10 : bf16 to vector<12x1x4xbf16>
    %c0_11 = arith.constant 0 : index
    %c0_12 = arith.constant 0 : index
    %c0_13 = arith.constant 0 : index
    %23 = vector.load %arg6[%c0_11, %c0_12, %c0_13] : memref<12x16x4xbf16, #tpu.memory_space<vmem>>, vector<12x1x4xbf16>
    tpu.vector_store %arg6[%c0_11, %c0_12, %c0_13], %22 {strides = array<i32>} : memref<12x16x4xbf16, #tpu.memory_space<vmem>>, vector<12x1x4xbf16>,
    %cst_14 = arith.constant 0.000000e+00 : bf16
    %24 = vector.broadcast %cst_14 : bf16 to vector<12x7x4xbf16>
    %c0_15 = arith.constant 0 : index
    %c9 = arith.constant 9 : index
    %c0_16 = arith.constant 0 : index
    %25 = vector.load %arg6[%c0_15, %c9, %c0_16] : memref<12x16x4xbf16, #tpu.memory_space<vmem>>, vector<12x7x4xbf16>
    tpu.vector_store %arg6[%c0_15, %c9, %c0_16], %24 {strides = array<i32>} : memref<12x16x4xbf16, #tpu.memory_space<vmem>>, vector<12x7x4xbf16>,
    %cst_17 = arith.constant 0.000000e+00 : f32
    %26 = vector.broadcast %cst_17 : f32 to vector<128x8xf32>
    %c0_18 = arith.constant 0 : index
    %c0_19 = arith.constant 0 : index
    %c0_20 = arith.constant 0 : index
    %27 = vector.load %arg6[%c0_18, %c0_19, %c0_20] : memref<12x16x4xbf16, #tpu.memory_space<vmem>>, vector<10x16x4xbf16>
    %28 = vector.shape_cast %27 : vector<10x16x4xbf16> to vector<160x4xbf16>
    %29 = vector.extract_strided_slice %28 {offsets = [15, 0], sizes = [128, 4], strides = [1, 1]} : vector<160x4xbf16> to vector<128x4xbf16>
    %30 = vector.extract_strided_slice %28 {offsets = [16, 0], sizes = [128, 4], strides = [1, 1]} : vector<160x4xbf16> to vector<128x4xbf16>
    %31 = vector.extract_strided_slice %28 {offsets = [17, 0], sizes = [128, 4], strides = [1, 1]} : vector<160x4xbf16> to vector<128x4xbf16>
    %32 = tpu.concatenate %29, %30, %31 in 1 : vector<128x4xbf16>, vector<128x4xbf16>, vector<128x4xbf16> -> vector<128x12xbf16>
    %c0_21 = arith.constant 0 : index
    %c0_22 = arith.constant 0 : index
    %c0_23 = arith.constant 0 : index
    %33 = vector.load %arg3[%c0_21, %c0_22, %c0_23] : memref<3x12x8xbf16, #tpu.memory_space<vmem>>, vector<1x12x8xbf16>
    %34 = vector.shape_cast %33 : vector<1x12x8xbf16> to vector<12x8xbf16>
    %cst_24 = arith.constant dense<0.000000e+00> : vector<128x8xf32>
    %35 = tpu.matmul %32, %34, %cst_24 {dimension_numbers = #tpu.dot_dimension_numbers<[1], [0], [0], [1], [0, 0, 1, 1], [], []>} : vector<128x12xbf16>, vector<12x8xbf16>, vector<128x8xf32> -> vector<128x8xf32>
    %36 = arith.addf %26, %35 : vector<128x8xf32>
    %c1_25 = arith.constant 1 : index
    %c0_26 = arith.constant 0 : index
    %c0_27 = arith.constant 0 : index
    %37 = vector.load %arg6[%c1_25, %c0_26, %c0_27] : memref<12x16x4xbf16, #tpu.memory_space<vmem>>, vector<10x16x4xbf16>
    %38 = vector.shape_cast %37 : vector<10x16x4xbf16> to vector<160x4xbf16>
    %39 = vector.extract_strided_slice %38 {offsets = [15, 0], sizes = [128, 4], strides = [1, 1]} : vector<160x4xbf16> to vector<128x4xbf16>
    %40 = vector.extract_strided_slice %38 {offsets = [16, 0], sizes = [128, 4], strides = [1, 1]} : vector<160x4xbf16> to vector<128x4xbf16>
    %41 = vector.extract_strided_slice %38 {offsets = [17, 0], sizes = [128, 4], strides = [1, 1]} : vector<160x4xbf16> to vector<128x4xbf16>
    %42 = tpu.concatenate %39, %40, %41 in 1 : vector<128x4xbf16>, vector<128x4xbf16>, vector<128x4xbf16> -> vector<128x12xbf16>
    %c1_28 = arith.constant 1 : index
    %c0_29 = arith.constant 0 : index
    %c0_30 = arith.constant 0 : index
    %43 = vector.load %arg3[%c1_28, %c0_29, %c0_30] : memref<3x12x8xbf16, #tpu.memory_space<vmem>>, vector<1x12x8xbf16>
    %44 = vector.shape_cast %43 : vector<1x12x8xbf16> to vector<12x8xbf16>
    %cst_31 = arith.constant dense<0.000000e+00> : vector<128x8xf32>
    %45 = tpu.matmul %42, %44, %cst_31 {dimension_numbers = #tpu.dot_dimension_numbers<[1], [0], [0], [1], [0, 0, 1, 1], [], []>} : vector<128x12xbf16>, vector<12x8xbf16>, vector<128x8xf32> -> vector<128x8xf32>
    %46 = arith.addf %36, %45 : vector<128x8xf32>
    %c2_32 = arith.constant 2 : index
    %c0_33 = arith.constant 0 : index
    %c0_34 = arith.constant 0 : index
    %47 = vector.load %arg6[%c2_32, %c0_33, %c0_34] : memref<12x16x4xbf16, #tpu.memory_space<vmem>>, vector<10x16x4xbf16>
    %48 = vector.shape_cast %47 : vector<10x16x4xbf16> to vector<160x4xbf16>
    %49 = vector.extract_strided_slice %48 {offsets = [15, 0], sizes = [128, 4], strides = [1, 1]} : vector<160x4xbf16> to vector<128x4xbf16>
    %50 = vector.extract_strided_slice %48 {offsets = [16, 0], sizes = [128, 4], strides = [1, 1]} : vector<160x4xbf16> to vector<128x4xbf16>
    %51 = vector.extract_strided_slice %48 {offsets = [17, 0], sizes = [128, 4], strides = [1, 1]} : vector<160x4xbf16> to vector<128x4xbf16>
    %52 = tpu.concatenate %49, %50, %51 in 1 : vector<128x4xbf16>, vector<128x4xbf16>, vector<128x4xbf16> -> vector<128x12xbf16>
    %c2_35 = arith.constant 2 : index
    %c0_36 = arith.constant 0 : index
    %c0_37 = arith.constant 0 : index
    %53 = vector.load %arg3[%c2_35, %c0_36, %c0_37] : memref<3x12x8xbf16, #tpu.memory_space<vmem>>, vector<1x12x8xbf16>
    %54 = vector.shape_cast %53 : vector<1x12x8xbf16> to vector<12x8xbf16>
    %cst_38 = arith.constant dense<0.000000e+00> : vector<128x8xf32>
    %55 = tpu.matmul %52, %54, %cst_38 {dimension_numbers = #tpu.dot_dimension_numbers<[1], [0], [0], [1], [0, 0, 1, 1], [], []>} : vector<128x12xbf16>, vector<12x8xbf16>, vector<128x8xf32> -> vector<128x8xf32>
    %56 = arith.addf %46, %55 : vector<128x8xf32>
    %57 = tpu.iota {dimensions = array<i32: 0>} : vector<128x1xi32>
    %c16_i32_39 = arith.constant 16 : i32
    %c0_i32_40 = arith.constant 0 : i32
    %58 = arith.cmpi eq, %c16_i32_39, %c0_i32_40 : i32
    %c1_i32 = arith.constant 1 : i32
    %59 = arith.select %58, %c1_i32, %c16_i32_39 : i32
    %60 = vector.broadcast %59 : i32 to vector<128x1xi32>
    %61 = arith.remsi %57, %60 : vector<128x1xi32>
    %c0_i32_41 = arith.constant 0 : i32
    %62 = vector.broadcast %c0_i32_41 : i32 to vector<128x1xi32>
    %63 = arith.cmpi ne, %61, %62 : vector<128x1xi32>
    %c0_i32_42 = arith.constant 0 : i32
    %64 = vector.broadcast %c0_i32_42 : i32 to vector<128x1xi32>
    %65 = arith.cmpi slt, %61, %64 : vector<128x1xi32>
    %c0_i32_43 = arith.constant 0 : i32
    %66 = arith.cmpi slt, %59, %c0_i32_43 : i32
    %67 = vector.broadcast %66 : i1 to vector<128x1xi1>
    %68 = vector.broadcast %67 : vector<128x1xi1> to vector<128x1xi1>
    %69 = arith.xori %65, %68 : vector<128x1xi1>
    %70 = arith.andi %69, %63 : vector<128x1xi1>
    %71 = vector.broadcast %59 : i32 to vector<128x1xi32>
    %72 = arith.addi %61, %71 : vector<128x1xi32>
    %73 = arith.select %70, %72, %61 : vector<128x1xi1>, vector<128x1xi32>
    %c1_i32_44 = arith.constant 1 : i32
    %74 = vector.broadcast %c1_i32_44 : i32 to vector<128x1xi32>
    %75 = arith.cmpi sge, %73, %74 : vector<128x1xi32>
    %c8_i32 = arith.constant 8 : i32
    %76 = vector.broadcast %c8_i32 : i32 to vector<128x1xi32>
    %77 = arith.cmpi sle, %73, %76 : vector<128x1xi32>
    %78 = arith.andi %75, %77 : vector<128x1xi1>
    %cst_45 = arith.constant 0.000000e+00 : f32
    %79 = vector.shape_cast %78 : vector<128x1xi1> to vector<128x1xi1>
    %80 = vector.broadcast %79 : vector<128x1xi1> to vector<128x8xi1>
    %81 = vector.broadcast %cst_45 : f32 to vector<128x8xf32>
    %82 = arith.select %80, %56, %81 : vector<128x8xi1>, vector<128x8xf32>
    %cst_46 = arith.constant dense<0.000000e+00> : vector<8xf32>
    %83 = vector.multi_reduction <add>, %82, %cst_46 [0] : vector<128x8xf32> to vector<8xf32>
    %84 = vector.shape_cast %83 : vector<8xf32> to vector<1x8xf32>
    %85 = arith.mulf %82, %82 : vector<128x8xf32>
    %cst_47 = arith.constant dense<0.000000e+00> : vector<8xf32>
    %86 = vector.multi_reduction <add>, %85, %cst_47 [0] : vector<128x8xf32> to vector<8xf32>
    %87 = vector.shape_cast %86 : vector<8xf32> to vector<1x8xf32>
    %88 = tpu.concatenate %84, %87 in 0 : vector<1x8xf32>, vector<1x8xf32> -> vector<2x8xf32>
    %c0_48 = arith.constant 0 : index
    %c0_49 = arith.constant 0 : index
    %c0_50 = arith.constant 0 : index
    %c0_51 = arith.constant 0 : index
    %89 = vector.load %arg5[%c0_48, %c0_49, %c0_50, %c0_51] : memref<1x1x2x8xf32, #tpu.memory_space<vmem>>, vector<1x1x2x8xf32>
    %90 = vector.shape_cast %89 : vector<1x1x2x8xf32> to vector<2x8xf32>
    %91 = vector.shape_cast %88 : vector<2x8xf32> to vector<1x1x2x8xf32>
    tpu.vector_store %arg5[%c0_48, %c0_49, %c0_50, %c0_51], %91 {strides = array<i32>} : memref<1x1x2x8xf32, #tpu.memory_space<vmem>>, vector<1x1x2x8xf32>,
    %92 = vector.shape_cast %56 : vector<128x8xf32> to vector<8x16x8xf32>
    %93 = arith.truncf %92 : vector<8x16x8xf32> to vector<8x16x8xbf16>
    %c0_52 = arith.constant 0 : index
    %c0_53 = arith.constant 0 : index
    %c0_54 = arith.constant 0 : index
    %c0_55 = arith.constant 0 : index
    %94 = vector.load %arg4[%c0_52, %c0_53, %c0_54, %c0_55] : memref<1x8x16x8xbf16, #tpu.memory_space<vmem>>, vector<1x8x16x8xbf16>
    %95 = vector.shape_cast %94 : vector<1x8x16x8xbf16> to vector<8x16x8xbf16>
    %96 = vector.shape_cast %93 : vector<8x16x8xbf16> to vector<1x8x16x8xbf16>
    tpu.vector_store %arg4[%c0_52, %c0_53, %c0_54, %c0_55], %96 {strides = array<i32>} : memref<1x8x16x8xbf16, #tpu.memory_space<vmem>>, vector<1x8x16x8xbf16>,
    return
  }
  func.func @transform_0(%arg0: i32, %arg1: i32) -> (i32, i32, i32, i32) {
    %c0_i32 = arith.constant 0 : i32
    %c0_i32_0 = arith.constant 0 : i32
    %c0_i32_1 = arith.constant 0 : i32
    %c0_i32_2 = arith.constant 0 : i32
    return %arg0, %c0_i32, %c0_i32_0, %c0_i32_1 : i32, i32, i32, i32
  }
  func.func @transform_1(%arg0: i32, %arg1: i32) -> (i32, i32, i32) {
    %c0_i32 = arith.constant 0 : i32
    %c0_i32_0 = arith.constant 0 : i32
    %c0_i32_1 = arith.constant 0 : i32
    %c0_i32_2 = arith.constant 0 : i32
    return %c0_i32, %c0_i32_0, %c0_i32_1 : i32, i32, i32
  }
  func.func @transform_2(%arg0: i32, %arg1: i32) -> (i32, i32, i32, i32) {
    %c0_i32 = arith.constant 0 : i32
    %c0_i32_0 = arith.constant 0 : i32
    %c0_i32_1 = arith.constant 0 : i32
    return %arg0, %arg1, %c0_i32, %c0_i32_0 : i32, i32, i32, i32
  }
  func.func @transform_3(%arg0: i32, %arg1: i32) -> (i32, i32, i32, i32) {
    %c0_i32 = arith.constant 0 : i32
    %c0_i32_0 = arith.constant 0 : i32
    %c0_i32_1 = arith.constant 0 : i32
    return %arg0, %arg1, %c0_i32, %c0_i32_0 : i32, i32, i32, i32
  }
}

module attributes {stable_mosaic.version = 11 : i64} {
  func.func @_bnrelu_out_kernel(%arg0: i32, %arg1: i32, %arg2: memref<1x8x16x8xbf16, #tpu.memory_space<vmem>>, %arg3: memref<1x8xf32, #tpu.memory_space<vmem>>, %arg4: memref<1x8xf32, #tpu.memory_space<vmem>>, %arg5: memref<1x8x8x8xf32, #tpu.memory_space<vmem>>) attributes {dimension_semantics = [#tpu.dimension_semantics<parallel>, #tpu.dimension_semantics<parallel>], iteration_bounds = array<i64: 2, 1>, scalar_prefetch = 0 : i64, scratch_operands = 0 : i64, tpu.core_type = #tpu.core_type<tc>, window_params = [{transform_indices = @transform_0, window_bounds = array<i64: 1, 8, 16, 8>}, {pipeline_mode = #tpu.pipeline_mode<synchronous>, transform_indices = @transform_1, window_bounds = array<i64: 1, 8>}, {pipeline_mode = #tpu.pipeline_mode<synchronous>, transform_indices = @transform_2, window_bounds = array<i64: 1, 8>}, {transform_indices = @transform_3, window_bounds = array<i64: 1, 8, 8, 8>}]} {
    %c0 = arith.constant 0 : index
    %c0_0 = arith.constant 0 : index
    %c1 = arith.constant 1 : index
    %c0_1 = arith.constant 0 : index
    %0 = vector.load %arg2[%c0, %c0_0, %c1, %c0_1] : memref<1x8x16x8xbf16, #tpu.memory_space<vmem>>, vector<1x8x8x8xbf16>
    %1 = vector.shape_cast %0 : vector<1x8x8x8xbf16> to vector<8x8x8xbf16>
    %2 = arith.extf %1 : vector<8x8x8xbf16> to vector<8x8x8xf32>
    %c0_2 = arith.constant 0 : index
    %c0_3 = arith.constant 0 : index
    %3 = vector.load %arg3[%c0_2, %c0_3] : memref<1x8xf32, #tpu.memory_space<vmem>>, vector<1x8xf32>
    %4 = vector.shape_cast %3 : vector<1x8xf32> to vector<1x1x8xf32>
    %c0_4 = arith.constant 0 : index
    %c0_5 = arith.constant 0 : index
    %5 = vector.load %arg4[%c0_4, %c0_5] : memref<1x8xf32, #tpu.memory_space<vmem>>, vector<1x8xf32>
    %6 = vector.shape_cast %5 : vector<1x8xf32> to vector<1x1x8xf32>
    %7 = vector.broadcast %4 : vector<1x1x8xf32> to vector<8x8x8xf32>
    %8 = arith.mulf %2, %7 : vector<8x8x8xf32>
    %9 = vector.broadcast %6 : vector<1x1x8xf32> to vector<8x8x8xf32>
    %10 = arith.addf %8, %9 : vector<8x8x8xf32>
    %cst = arith.constant 0.000000e+00 : f32
    %11 = vector.broadcast %cst : f32 to vector<8x8x8xf32>
    %12 = arith.maximumf %10, %11 : vector<8x8x8xf32>
    %c0_6 = arith.constant 0 : index
    %c0_7 = arith.constant 0 : index
    %c0_8 = arith.constant 0 : index
    %c0_9 = arith.constant 0 : index
    %13 = vector.load %arg5[%c0_6, %c0_7, %c0_8, %c0_9] : memref<1x8x8x8xf32, #tpu.memory_space<vmem>>, vector<1x8x8x8xf32>
    %14 = vector.shape_cast %13 : vector<1x8x8x8xf32> to vector<8x8x8xf32>
    %15 = vector.shape_cast %12 : vector<8x8x8xf32> to vector<1x8x8x8xf32>
    tpu.vector_store %arg5[%c0_6, %c0_7, %c0_8, %c0_9], %15 {strides = array<i32>} : memref<1x8x8x8xf32, #tpu.memory_space<vmem>>, vector<1x8x8x8xf32>,
    return
  }
  func.func @transform_0(%arg0: i32, %arg1: i32) -> (i32, i32, i32, i32) {
    %c0_i32 = arith.constant 0 : i32
    %c0_i32_0 = arith.constant 0 : i32
    %c0_i32_1 = arith.constant 0 : i32
    return %arg0, %arg1, %c0_i32, %c0_i32_0 : i32, i32, i32, i32
  }
  func.func @transform_1(%arg0: i32, %arg1: i32) -> (i32, i32) {
    %c0_i32 = arith.constant 0 : i32
    %c0_i32_0 = arith.constant 0 : i32
    %c0_i32_1 = arith.constant 0 : i32
    return %c0_i32, %c0_i32_0 : i32, i32
  }
  func.func @transform_2(%arg0: i32, %arg1: i32) -> (i32, i32) {
    %c0_i32 = arith.constant 0 : i32
    %c0_i32_0 = arith.constant 0 : i32
    %c0_i32_1 = arith.constant 0 : i32
    return %c0_i32, %c0_i32_0 : i32, i32
  }
  func.func @transform_3(%arg0: i32, %arg1: i32) -> (i32, i32, i32, i32) {
    %c0_i32 = arith.constant 0 : i32
    %c0_i32_0 = arith.constant 0 : i32
    %c0_i32_1 = arith.constant 0 : i32
    return %arg0, %arg1, %c0_i32, %c0_i32_0 : i32, i32, i32, i32
  }
}

module attributes {stable_mosaic.version = 11 : i64} {
  func.func @_bnrelu_conv2_kernel(%arg0: i32, %arg1: i32, %arg2: memref<1x8x16x8xbf16, #tpu.memory_space<vmem>>, %arg3: memref<1x8xf32, #tpu.memory_space<vmem>>, %arg4: memref<1x8xf32, #tpu.memory_space<vmem>>, %arg5: memref<3x24x8xbf16, #tpu.memory_space<vmem>>, %arg6: memref<1x8x16x8xbf16, #tpu.memory_space<vmem>>, %arg7: memref<1x1x2x8xf32, #tpu.memory_space<vmem>>, %arg8: memref<12x16x8xbf16, #tpu.memory_space<vmem>>) attributes {dimension_semantics = [#tpu.dimension_semantics<parallel>, #tpu.dimension_semantics<parallel>], iteration_bounds = array<i64: 2, 1>, scalar_prefetch = 0 : i64, scratch_operands = 1 : i64, tpu.core_type = #tpu.core_type<tc>, window_params = [{transform_indices = @transform_0, window_bounds = array<i64: 1, 8, 16, 8>}, {pipeline_mode = #tpu.pipeline_mode<synchronous>, transform_indices = @transform_1, window_bounds = array<i64: 1, 8>}, {pipeline_mode = #tpu.pipeline_mode<synchronous>, transform_indices = @transform_2, window_bounds = array<i64: 1, 8>}, {pipeline_mode = #tpu.pipeline_mode<synchronous>, transform_indices = @transform_3, window_bounds = array<i64: 3, 24, 8>}, {transform_indices = @transform_4, window_bounds = array<i64: 1, 8, 16, 8>}, {transform_indices = @transform_5, window_bounds = array<i64: 1, 1, 2, 8>}]} {
    %c0 = arith.constant 0 : index
    %c0_0 = arith.constant 0 : index
    %0 = vector.load %arg3[%c0, %c0_0] : memref<1x8xf32, #tpu.memory_space<vmem>>, vector<1x8xf32>
    %1 = vector.shape_cast %0 : vector<1x8xf32> to vector<1x1x8xf32>
    %c0_1 = arith.constant 0 : index
    %c0_2 = arith.constant 0 : index
    %2 = vector.load %arg4[%c0_1, %c0_2] : memref<1x8xf32, #tpu.memory_space<vmem>>, vector<1x8xf32>
    %3 = vector.shape_cast %2 : vector<1x8xf32> to vector<1x1x8xf32>
    %c8_i32 = arith.constant 8 : i32
    %4 = arith.muli %arg1, %c8_i32 : i32
    %c0_3 = arith.constant 0 : index
    %5 = arith.index_cast %4 : i32 to index
    %c0_4 = arith.constant 0 : index
    %c0_5 = arith.constant 0 : index
    %6 = vector.load %arg2[%c0_3, %5, %c0_4, %c0_5] : memref<1x8x16x8xbf16, #tpu.memory_space<vmem>>, vector<1x8x16x8xbf16>
    %7 = vector.shape_cast %6 : vector<1x8x16x8xbf16> to vector<8x16x8xbf16>
    %8 = arith.extf %7 : vector<8x16x8xbf16> to vector<8x16x8xf32>
    %9 = vector.broadcast %1 : vector<1x1x8xf32> to vector<8x16x8xf32>
    %10 = arith.mulf %8, %9 : vector<8x16x8xf32>
    %11 = vector.broadcast %3 : vector<1x1x8xf32> to vector<8x16x8xf32>
    %12 = arith.addf %10, %11 : vector<8x16x8xf32>
    %cst = arith.constant 0.000000e+00 : f32
    %13 = vector.broadcast %cst : f32 to vector<8x16x8xf32>
    %14 = arith.maximumf %12, %13 : vector<8x16x8xf32>
    %15 = arith.truncf %14 : vector<8x16x8xf32> to vector<8x16x8xbf16>
    %c2 = arith.constant 2 : index
    %c0_6 = arith.constant 0 : index
    %c0_7 = arith.constant 0 : index
    %16 = vector.load %arg8[%c2, %c0_6, %c0_7] : memref<12x16x8xbf16, #tpu.memory_space<vmem>>, vector<8x16x8xbf16>
    tpu.vector_store %arg8[%c2, %c0_6, %c0_7], %15 {strides = array<i32>} : memref<12x16x8xbf16, #tpu.memory_space<vmem>>, vector<8x16x8xbf16>,
    %c0_i32 = arith.constant 0 : i32
    %17 = arith.cmpi eq, %arg1, %c0_i32 : i32
    %18 = arith.extui %17 : i1 to i32
    %c0_i32_8 = arith.constant 0 : i32
    %19 = arith.cmpi ne, %18, %c0_i32_8 : i32
    scf.if %19 {
      %cst_60 = arith.constant 0.000000e+00 : bf16
      %104 = vector.broadcast %cst_60 : bf16 to vector<1x16x8xbf16>
      %c1_61 = arith.constant 1 : index
      %c0_62 = arith.constant 0 : index
      %c0_63 = arith.constant 0 : index
      %105 = vector.load %arg8[%c1_61, %c0_62, %c0_63] : memref<12x16x8xbf16, #tpu.memory_space<vmem>>, vector<1x16x8xbf16>
      tpu.vector_store %arg8[%c1_61, %c0_62, %c0_63], %104 {strides = array<i32>} : memref<12x16x8xbf16, #tpu.memory_space<vmem>>, vector<1x16x8xbf16>,
    } else {
    }
    %c0_i32_9 = arith.constant 0 : i32
    %20 = arith.cmpi sgt, %arg1, %c0_i32_9 : i32
    %21 = arith.extui %20 : i1 to i32
    %c0_i32_10 = arith.constant 0 : i32
    %22 = arith.cmpi ne, %21, %c0_i32_10 : i32
    scf.if %22 {
      %c1_i32_60 = arith.constant 1 : i32
      %104 = arith.subi %4, %c1_i32_60 : i32
      %c0_61 = arith.constant 0 : index
      %105 = arith.index_cast %104 : i32 to index
      %c0_62 = arith.constant 0 : index
      %c0_63 = arith.constant 0 : index
      %106 = vector.load %arg2[%c0_61, %105, %c0_62, %c0_63] : memref<1x8x16x8xbf16, #tpu.memory_space<vmem>>, vector<1x1x16x8xbf16>
      %107 = vector.shape_cast %106 : vector<1x1x16x8xbf16> to vector<1x16x8xbf16>
      %108 = arith.extf %107 : vector<1x16x8xbf16> to vector<1x16x8xf32>
      %109 = vector.broadcast %1 : vector<1x1x8xf32> to vector<1x16x8xf32>
      %110 = arith.mulf %108, %109 : vector<1x16x8xf32>
      %111 = vector.broadcast %3 : vector<1x1x8xf32> to vector<1x16x8xf32>
      %112 = arith.addf %110, %111 : vector<1x16x8xf32>
      %cst_64 = arith.constant 0.000000e+00 : f32
      %113 = vector.broadcast %cst_64 : f32 to vector<1x16x8xf32>
      %114 = arith.maximumf %112, %113 : vector<1x16x8xf32>
      %115 = arith.truncf %114 : vector<1x16x8xf32> to vector<1x16x8xbf16>
      %c1_65 = arith.constant 1 : index
      %c0_66 = arith.constant 0 : index
      %c0_67 = arith.constant 0 : index
      %116 = vector.load %arg8[%c1_65, %c0_66, %c0_67] : memref<12x16x8xbf16, #tpu.memory_space<vmem>>, vector<1x16x8xbf16>
      tpu.vector_store %arg8[%c1_65, %c0_66, %c0_67], %115 {strides = array<i32>} : memref<12x16x8xbf16, #tpu.memory_space<vmem>>, vector<1x16x8xbf16>,
    } else {
    }
    %c0_i32_11 = arith.constant 0 : i32
    %23 = arith.cmpi eq, %arg1, %c0_i32_11 : i32
    %24 = arith.extui %23 : i1 to i32
    %c0_i32_12 = arith.constant 0 : i32
    %25 = arith.cmpi ne, %24, %c0_i32_12 : i32
    scf.if %25 {
      %cst_60 = arith.constant 0.000000e+00 : bf16
      %104 = vector.broadcast %cst_60 : bf16 to vector<1x16x8xbf16>
      %c10 = arith.constant 10 : index
      %c0_61 = arith.constant 0 : index
      %c0_62 = arith.constant 0 : index
      %105 = vector.load %arg8[%c10, %c0_61, %c0_62] : memref<12x16x8xbf16, #tpu.memory_space<vmem>>, vector<1x16x8xbf16>
      tpu.vector_store %arg8[%c10, %c0_61, %c0_62], %104 {strides = array<i32>} : memref<12x16x8xbf16, #tpu.memory_space<vmem>>, vector<1x16x8xbf16>,
    } else {
    }
    %c0_i32_13 = arith.constant 0 : i32
    %26 = arith.cmpi slt, %arg1, %c0_i32_13 : i32
    %27 = arith.extui %26 : i1 to i32
    %c0_i32_14 = arith.constant 0 : i32
    %28 = arith.cmpi ne, %27, %c0_i32_14 : i32
    scf.if %28 {
      %c8_i32_60 = arith.constant 8 : i32
      %104 = arith.addi %4, %c8_i32_60 : i32
      %c0_61 = arith.constant 0 : index
      %105 = arith.index_cast %104 : i32 to index
      %c0_62 = arith.constant 0 : index
      %c0_63 = arith.constant 0 : index
      %106 = vector.load %arg2[%c0_61, %105, %c0_62, %c0_63] : memref<1x8x16x8xbf16, #tpu.memory_space<vmem>>, vector<1x1x16x8xbf16>
      %107 = vector.shape_cast %106 : vector<1x1x16x8xbf16> to vector<1x16x8xbf16>
      %108 = arith.extf %107 : vector<1x16x8xbf16> to vector<1x16x8xf32>
      %109 = vector.broadcast %1 : vector<1x1x8xf32> to vector<1x16x8xf32>
      %110 = arith.mulf %108, %109 : vector<1x16x8xf32>
      %111 = vector.broadcast %3 : vector<1x1x8xf32> to vector<1x16x8xf32>
      %112 = arith.addf %110, %111 : vector<1x16x8xf32>
      %cst_64 = arith.constant 0.000000e+00 : f32
      %113 = vector.broadcast %cst_64 : f32 to vector<1x16x8xf32>
      %114 = arith.maximumf %112, %113 : vector<1x16x8xf32>
      %115 = arith.truncf %114 : vector<1x16x8xf32> to vector<1x16x8xbf16>
      %c10 = arith.constant 10 : index
      %c0_65 = arith.constant 0 : index
      %c0_66 = arith.constant 0 : index
      %116 = vector.load %arg8[%c10, %c0_65, %c0_66] : memref<12x16x8xbf16, #tpu.memory_space<vmem>>, vector<1x16x8xbf16>
      tpu.vector_store %arg8[%c10, %c0_65, %c0_66], %115 {strides = array<i32>} : memref<12x16x8xbf16, #tpu.memory_space<vmem>>, vector<1x16x8xbf16>,
    } else {
    }
    %cst_15 = arith.constant 0.000000e+00 : bf16
    %29 = vector.broadcast %cst_15 : bf16 to vector<12x1x8xbf16>
    %c0_16 = arith.constant 0 : index
    %c0_17 = arith.constant 0 : index
    %c0_18 = arith.constant 0 : index
    %30 = vector.load %arg8[%c0_16, %c0_17, %c0_18] : memref<12x16x8xbf16, #tpu.memory_space<vmem>>, vector<12x1x8xbf16>
    tpu.vector_store %arg8[%c0_16, %c0_17, %c0_18], %29 {strides = array<i32>} : memref<12x16x8xbf16, #tpu.memory_space<vmem>>, vector<12x1x8xbf16>,
    %cst_19 = arith.constant 0.000000e+00 : bf16
    %31 = vector.broadcast %cst_19 : bf16 to vector<12x7x8xbf16>
    %c0_20 = arith.constant 0 : index
    %c9 = arith.constant 9 : index
    %c0_21 = arith.constant 0 : index
    %32 = vector.load %arg8[%c0_20, %c9, %c0_21] : memref<12x16x8xbf16, #tpu.memory_space<vmem>>, vector<12x7x8xbf16>
    tpu.vector_store %arg8[%c0_20, %c9, %c0_21], %31 {strides = array<i32>} : memref<12x16x8xbf16, #tpu.memory_space<vmem>>, vector<12x7x8xbf16>,
    %cst_22 = arith.constant 0.000000e+00 : f32
    %33 = vector.broadcast %cst_22 : f32 to vector<128x8xf32>
    %c0_23 = arith.constant 0 : index
    %c0_24 = arith.constant 0 : index
    %c0_25 = arith.constant 0 : index
    %34 = vector.load %arg8[%c0_23, %c0_24, %c0_25] : memref<12x16x8xbf16, #tpu.memory_space<vmem>>, vector<10x16x8xbf16>
    %35 = vector.shape_cast %34 : vector<10x16x8xbf16> to vector<160x8xbf16>
    %36 = vector.extract_strided_slice %35 {offsets = [15, 0], sizes = [128, 8], strides = [1, 1]} : vector<160x8xbf16> to vector<128x8xbf16>
    %37 = vector.extract_strided_slice %35 {offsets = [16, 0], sizes = [128, 8], strides = [1, 1]} : vector<160x8xbf16> to vector<128x8xbf16>
    %38 = vector.extract_strided_slice %35 {offsets = [17, 0], sizes = [128, 8], strides = [1, 1]} : vector<160x8xbf16> to vector<128x8xbf16>
    %39 = tpu.concatenate %36, %37, %38 in 1 : vector<128x8xbf16>, vector<128x8xbf16>, vector<128x8xbf16> -> vector<128x24xbf16>
    %c0_26 = arith.constant 0 : index
    %c0_27 = arith.constant 0 : index
    %c0_28 = arith.constant 0 : index
    %40 = vector.load %arg5[%c0_26, %c0_27, %c0_28] : memref<3x24x8xbf16, #tpu.memory_space<vmem>>, vector<1x24x8xbf16>
    %41 = vector.shape_cast %40 : vector<1x24x8xbf16> to vector<24x8xbf16>
    %cst_29 = arith.constant dense<0.000000e+00> : vector<128x8xf32>
    %42 = tpu.matmul %39, %41, %cst_29 {dimension_numbers = #tpu.dot_dimension_numbers<[1], [0], [0], [1], [0, 0, 1, 1], [], []>} : vector<128x24xbf16>, vector<24x8xbf16>, vector<128x8xf32> -> vector<128x8xf32>
    %43 = arith.addf %33, %42 : vector<128x8xf32>
    %c1 = arith.constant 1 : index
    %c0_30 = arith.constant 0 : index
    %c0_31 = arith.constant 0 : index
    %44 = vector.load %arg8[%c1, %c0_30, %c0_31] : memref<12x16x8xbf16, #tpu.memory_space<vmem>>, vector<10x16x8xbf16>
    %45 = vector.shape_cast %44 : vector<10x16x8xbf16> to vector<160x8xbf16>
    %46 = vector.extract_strided_slice %45 {offsets = [15, 0], sizes = [128, 8], strides = [1, 1]} : vector<160x8xbf16> to vector<128x8xbf16>
    %47 = vector.extract_strided_slice %45 {offsets = [16, 0], sizes = [128, 8], strides = [1, 1]} : vector<160x8xbf16> to vector<128x8xbf16>
    %48 = vector.extract_strided_slice %45 {offsets = [17, 0], sizes = [128, 8], strides = [1, 1]} : vector<160x8xbf16> to vector<128x8xbf16>
    %49 = tpu.concatenate %46, %47, %48 in 1 : vector<128x8xbf16>, vector<128x8xbf16>, vector<128x8xbf16> -> vector<128x24xbf16>
    %c1_32 = arith.constant 1 : index
    %c0_33 = arith.constant 0 : index
    %c0_34 = arith.constant 0 : index
    %50 = vector.load %arg5[%c1_32, %c0_33, %c0_34] : memref<3x24x8xbf16, #tpu.memory_space<vmem>>, vector<1x24x8xbf16>
    %51 = vector.shape_cast %50 : vector<1x24x8xbf16> to vector<24x8xbf16>
    %cst_35 = arith.constant dense<0.000000e+00> : vector<128x8xf32>
    %52 = tpu.matmul %49, %51, %cst_35 {dimension_numbers = #tpu.dot_dimension_numbers<[1], [0], [0], [1], [0, 0, 1, 1], [], []>} : vector<128x24xbf16>, vector<24x8xbf16>, vector<128x8xf32> -> vector<128x8xf32>
    %53 = arith.addf %43, %52 : vector<128x8xf32>
    %c2_36 = arith.constant 2 : index
    %c0_37 = arith.constant 0 : index
    %c0_38 = arith.constant 0 : index
    %54 = vector.load %arg8[%c2_36, %c0_37, %c0_38] : memref<12x16x8xbf16, #tpu.memory_space<vmem>>, vector<10x16x8xbf16>
    %55 = vector.shape_cast %54 : vector<10x16x8xbf16> to vector<160x8xbf16>
    %56 = vector.extract_strided_slice %55 {offsets = [15, 0], sizes = [128, 8], strides = [1, 1]} : vector<160x8xbf16> to vector<128x8xbf16>
    %57 = vector.extract_strided_slice %55 {offsets = [16, 0], sizes = [128, 8], strides = [1, 1]} : vector<160x8xbf16> to vector<128x8xbf16>
    %58 = vector.extract_strided_slice %55 {offsets = [17, 0], sizes = [128, 8], strides = [1, 1]} : vector<160x8xbf16> to vector<128x8xbf16>
    %59 = tpu.concatenate %56, %57, %58 in 1 : vector<128x8xbf16>, vector<128x8xbf16>, vector<128x8xbf16> -> vector<128x24xbf16>
    %c2_39 = arith.constant 2 : index
    %c0_40 = arith.constant 0 : index
    %c0_41 = arith.constant 0 : index
    %60 = vector.load %arg5[%c2_39, %c0_40, %c0_41] : memref<3x24x8xbf16, #tpu.memory_space<vmem>>, vector<1x24x8xbf16>
    %61 = vector.shape_cast %60 : vector<1x24x8xbf16> to vector<24x8xbf16>
    %cst_42 = arith.constant dense<0.000000e+00> : vector<128x8xf32>
    %62 = tpu.matmul %59, %61, %cst_42 {dimension_numbers = #tpu.dot_dimension_numbers<[1], [0], [0], [1], [0, 0, 1, 1], [], []>} : vector<128x24xbf16>, vector<24x8xbf16>, vector<128x8xf32> -> vector<128x8xf32>
    %63 = arith.addf %53, %62 : vector<128x8xf32>
    %64 = tpu.iota {dimensions = array<i32: 0>} : vector<128x1xi32>
    %c16_i32 = arith.constant 16 : i32
    %c0_i32_43 = arith.constant 0 : i32
    %65 = arith.cmpi eq, %c16_i32, %c0_i32_43 : i32
    %c1_i32 = arith.constant 1 : i32
    %66 = arith.select %65, %c1_i32, %c16_i32 : i32
    %67 = vector.broadcast %66 : i32 to vector<128x1xi32>
    %68 = arith.remsi %64, %67 : vector<128x1xi32>
    %c0_i32_44 = arith.constant 0 : i32
    %69 = vector.broadcast %c0_i32_44 : i32 to vector<128x1xi32>
    %70 = arith.cmpi ne, %68, %69 : vector<128x1xi32>
    %c0_i32_45 = arith.constant 0 : i32
    %71 = vector.broadcast %c0_i32_45 : i32 to vector<128x1xi32>
    %72 = arith.cmpi slt, %68, %71 : vector<128x1xi32>
    %c0_i32_46 = arith.constant 0 : i32
    %73 = arith.cmpi slt, %66, %c0_i32_46 : i32
    %74 = vector.broadcast %73 : i1 to vector<128x1xi1>
    %75 = vector.broadcast %74 : vector<128x1xi1> to vector<128x1xi1>
    %76 = arith.xori %72, %75 : vector<128x1xi1>
    %77 = arith.andi %76, %70 : vector<128x1xi1>
    %78 = vector.broadcast %66 : i32 to vector<128x1xi32>
    %79 = arith.addi %68, %78 : vector<128x1xi32>
    %80 = arith.select %77, %79, %68 : vector<128x1xi1>, vector<128x1xi32>
    %c1_i32_47 = arith.constant 1 : i32
    %81 = vector.broadcast %c1_i32_47 : i32 to vector<128x1xi32>
    %82 = arith.cmpi sge, %80, %81 : vector<128x1xi32>
    %c8_i32_48 = arith.constant 8 : i32
    %83 = vector.broadcast %c8_i32_48 : i32 to vector<128x1xi32>
    %84 = arith.cmpi sle, %80, %83 : vector<128x1xi32>
    %85 = arith.andi %82, %84 : vector<128x1xi1>
    %cst_49 = arith.constant 0.000000e+00 : f32
    %86 = vector.shape_cast %85 : vector<128x1xi1> to vector<128x1xi1>
    %87 = vector.broadcast %86 : vector<128x1xi1> to vector<128x8xi1>
    %88 = vector.broadcast %cst_49 : f32 to vector<128x8xf32>
    %89 = arith.select %87, %63, %88 : vector<128x8xi1>, vector<128x8xf32>
    %cst_50 = arith.constant dense<0.000000e+00> : vector<8xf32>
    %90 = vector.multi_reduction <add>, %89, %cst_50 [0] : vector<128x8xf32> to vector<8xf32>
    %91 = vector.shape_cast %90 : vector<8xf32> to vector<1x8xf32>
    %92 = arith.mulf %89, %89 : vector<128x8xf32>
    %cst_51 = arith.constant dense<0.000000e+00> : vector<8xf32>
    %93 = vector.multi_reduction <add>, %92, %cst_51 [0] : vector<128x8xf32> to vector<8xf32>
    %94 = vector.shape_cast %93 : vector<8xf32> to vector<1x8xf32>
    %95 = tpu.concatenate %91, %94 in 0 : vector<1x8xf32>, vector<1x8xf32> -> vector<2x8xf32>
    %c0_52 = arith.constant 0 : index
    %c0_53 = arith.constant 0 : index
    %c0_54 = arith.constant 0 : index
    %c0_55 = arith.constant 0 : index
    %96 = vector.load %arg7[%c0_52, %c0_53, %c0_54, %c0_55] : memref<1x1x2x8xf32, #tpu.memory_space<vmem>>, vector<1x1x2x8xf32>
    %97 = vector.shape_cast %96 : vector<1x1x2x8xf32> to vector<2x8xf32>
    %98 = vector.shape_cast %95 : vector<2x8xf32> to vector<1x1x2x8xf32>
    tpu.vector_store %arg7[%c0_52, %c0_53, %c0_54, %c0_55], %98 {strides = array<i32>} : memref<1x1x2x8xf32, #tpu.memory_space<vmem>>, vector<1x1x2x8xf32>,
    %99 = vector.shape_cast %63 : vector<128x8xf32> to vector<8x16x8xf32>
    %100 = arith.truncf %99 : vector<8x16x8xf32> to vector<8x16x8xbf16>
    %c0_56 = arith.constant 0 : index
    %c0_57 = arith.constant 0 : index
    %c0_58 = arith.constant 0 : index
    %c0_59 = arith.constant 0 : index
    %101 = vector.load %arg6[%c0_56, %c0_57, %c0_58, %c0_59] : memref<1x8x16x8xbf16, #tpu.memory_space<vmem>>, vector<1x8x16x8xbf16>
    %102 = vector.shape_cast %101 : vector<1x8x16x8xbf16> to vector<8x16x8xbf16>
    %103 = vector.shape_cast %100 : vector<8x16x8xbf16> to vector<1x8x16x8xbf16>
    tpu.vector_store %arg6[%c0_56, %c0_57, %c0_58, %c0_59], %103 {strides = array<i32>} : memref<1x8x16x8xbf16, #tpu.memory_space<vmem>>, vector<1x8x16x8xbf16>,
    return
  }
  func.func @transform_0(%arg0: i32, %arg1: i32) -> (i32, i32, i32, i32) {
    %c0_i32 = arith.constant 0 : i32
    %c0_i32_0 = arith.constant 0 : i32
    %c0_i32_1 = arith.constant 0 : i32
    %c0_i32_2 = arith.constant 0 : i32
    return %arg0, %c0_i32, %c0_i32_0, %c0_i32_1 : i32, i32, i32, i32
  }
  func.func @transform_1(%arg0: i32, %arg1: i32) -> (i32, i32) {
    %c0_i32 = arith.constant 0 : i32
    %c0_i32_0 = arith.constant 0 : i32
    %c0_i32_1 = arith.constant 0 : i32
    return %c0_i32, %c0_i32_0 : i32, i32
  }
  func.func @transform_2(%arg0: i32, %arg1: i32) -> (i32, i32) {
    %c0_i32 = arith.constant 0 : i32
    %c0_i32_0 = arith.constant 0 : i32
    %c0_i32_1 = arith.constant 0 : i32
    return %c0_i32, %c0_i32_0 : i32, i32
  }
  func.func @transform_3(%arg0: i32, %arg1: i32) -> (i32, i32, i32) {
    %c0_i32 = arith.constant 0 : i32
    %c0_i32_0 = arith.constant 0 : i32
    %c0_i32_1 = arith.constant 0 : i32
    %c0_i32_2 = arith.constant 0 : i32
    return %c0_i32, %c0_i32_0, %c0_i32_1 : i32, i32, i32
  }
  func.func @transform_4(%arg0: i32, %arg1: i32) -> (i32, i32, i32, i32) {
    %c0_i32 = arith.constant 0 : i32
    %c0_i32_0 = arith.constant 0 : i32
    %c0_i32_1 = arith.constant 0 : i32
    return %arg0, %arg1, %c0_i32, %c0_i32_0 : i32, i32, i32, i32
  }
  func.func @transform_5(%arg0: i32, %arg1: i32) -> (i32, i32, i32, i32) {
    %c0_i32 = arith.constant 0 : i32
    %c0_i32_0 = arith.constant 0 : i32
    %c0_i32_1 = arith.constant 0 : i32
    return %arg0, %arg1, %c0_i32, %c0_i32_0 : i32, i32, i32, i32
  }
}

</mosaic_0001>

<llo_original>
// kernel: down_forward.5
$region0: #{down_forward.5}
  #allocation0 [shape = 'u32[]', space=smem, size = 0x4, offset = 0x4, fixed_abs, tag = 'smem constant byte address 0x4 - core index']
  #allocation1 [shape = 'u32[72,128]{1,0:T(1,128)}', space=vmem, size = 0x9000, scoped, tag = 'internal scratch']
  %s0 = inlined_call_operand.vmem [shape: bf16[2,8,16,8], index: 0, kind: input, shape index: {}]
  %s1 = inlined_call_operand.vmem [shape: f32[1,8], index: 1, kind: input, shape index: {}]
  %s2 = inlined_call_operand.vmem [shape: f32[1,8], index: 2, kind: input, shape index: {}]
  %s3 = inlined_call_operand.vmem [shape: f32[2,8,8,8], index: 3, kind: output, shape index: {}]
  %s4 = sld [smem:[#allocation0]]
  $region45: #{down_forward.5} parent=0
    _
  %s6 = ssub.s32 1, %s4
  %s7 = scalar_select 0, %s6, %s4
  loop: start=0, step=1, limit=4
  $region2: #{down_forward.5} parent=0 // loop_pre_header
    _
  $region3: #{down_forward.5} parent=0 // loop_header
    %s9 = sphi 0, %s13
    %p10 = scmp.ge.s32.totalorder %s9, 4
    %s16 = sphi 0, %s28
    %s17 = sphi 0, %s24
    %s18 = sphi 0, %s16
    %s19 = sphi 0, %s17
    %s20 = sphi 0, %s18
    %s21 = sphi 0, %s19
    %s33 = sphi 0, %s35
    %s36 = sphi 0, %s33
    %s37 = sphi 0, %s36
    %s53 = sphi 0, %s37
    %s57 = sphi 0, %s57
    %s59 = sphi 0, %s57
    %s60 = sphi 0, %s59
    %s74 = sphi 0, %s60
    %s78 = sphi 0, %s78
    %s80 = sphi 0, %s78
    %s81 = sphi 0, %s80
    %s95 = sphi 0, %s81
    %s103 = sphi 0, %s105
    %s106 = sphi 0, %s103
    %s107 = sphi 0, %s106
    %s123 = sphi 0, %s107
  $region4: #{down_forward.5} parent=0 // loop_header_branch
    %12 = sbr.rel (%p10) target = $region8
  $region5: #{down_forward.5} parent=0 // loop_body
    %s14 = ssub.s32 %s9, 1
    %s15 = ssub.s32 %s9, 2
    %s22 = sadd.s32 1, %s17
    %p23 = scmp.ge.s32.totalorder %s22, 1
    %s24 = scalar_select %p23, 0, %s22
    %s25 = sadd.s32 1, %s16
    %s26 = scalar_select %p23, %s25, %s16
    %p27 = scmp.ge.s32.totalorder %s26, 2
    %s28 = scalar_select %p27, 0, %s26
    %s29 = ssub.s32 %s16, %s28
    %s30 = ssub.s32 %s17, %s24
    %s31 = sor.u32 %s29, %s30
    %p32 = scmp.eq.s32.totalorder %s31, 0
    %s34 = sadd.s32 %s33, 1
    %s35 = scalar_select %p32, %s33, %s34
    %p38 = pneg %p32
    %p39 = scmp.eq.s32.totalorder %s9, 1
    %p40 = por %p38, %p39
    %p41 = scmp.ne.s32.totalorder %s33, %s36
    %p42 = scmp.eq.s32.totalorder %s9, 0
    %p43 = por %p41, %p42
    %p44 = scmp.ne.s32.totalorder %s33, %s36
    %p45 = scmp.eq.s32.totalorder %s14, 1
    %p46 = por %p44, %p45
    %p47 = scmp.ne.s32.totalorder %s36, %s37
    %p48 = scmp.eq.s32.totalorder %s14, 0
    %p49 = por %p47, %p48
    %p50 = scmp.ne.s32.totalorder %s36, %s37
    %p51 = scmp.eq.s32.totalorder %s15, 1
    %p52 = por %p50, %p51
    %p54 = scmp.ne.s32.totalorder %s37, %s53
    %p55 = scmp.eq.s32.totalorder %s15, 0
    %p56 = por %p54, %p55
    %s58 = sadd.s32 %s57, 1
    %p61 = scmp.eq.s32.totalorder %s9, 1
    %p62 = scmp.ne.s32.totalorder %s57, %s59
    %p63 = scmp.eq.s32.totalorder %s9, 0
    %p64 = por %p62, %p63
    %p65 = scmp.ne.s32.totalorder %s57, %s59
    %p66 = scmp.eq.s32.totalorder %s14, 1
    %p67 = por %p65, %p66
    %p68 = scmp.ne.s32.totalorder %s59, %s60
    %p69 = scmp.eq.s32.totalorder %s14, 0
    %p70 = por %p68, %p69
    %p71 = scmp.ne.s32.totalorder %s59, %s60
    %p72 = scmp.eq.s32.totalorder %s15, 1
    %p73 = por %p71, %p72
    %p75 = scmp.ne.s32.totalorder %s60, %s74
    %p76 = scmp.eq.s32.totalorder %s15, 0
    %p77 = por %p75, %p76
    %s79 = sadd.s32 %s78, 1
    %p82 = scmp.eq.s32.totalorder %s9, 1
    %p83 = scmp.ne.s32.totalorder %s78, %s80
    %p84 = scmp.eq.s32.totalorder %s9, 0
    %p85 = por %p83, %p84
    %p86 = scmp.ne.s32.totalorder %s78, %s80
    %p87 = scmp.eq.s32.totalorder %s14, 1
    %p88 = por %p86, %p87
    %p89 = scmp.ne.s32.totalorder %s80, %s81
    %p90 = scmp.eq.s32.totalorder %s14, 0
    %p91 = por %p89, %p90
    %p92 = scmp.ne.s32.totalorder %s80, %s81
    %p93 = scmp.eq.s32.totalorder %s15, 1
    %p94 = por %p92, %p93
    %p96 = scmp.ne.s32.totalorder %s81, %s95
    %p97 = scmp.eq.s32.totalorder %s15, 0
    %p98 = por %p96, %p97
    %s99 = ssub.s32 %s16, %s28
    %s100 = ssub.s32 %s17, %s24
    %s101 = sor.u32 %s99, %s100
    %p102 = scmp.eq.s32.totalorder %s101, 0
    %s104 = sadd.s32 %s103, 1
    %s105 = scalar_select %p102, %s103, %s104
    %p108 = pneg %p102
    %p109 = scmp.eq.s32.totalorder %s9, 1
    %p110 = por %p108, %p109
    %p111 = scmp.ne.s32.totalorder %s103, %s106
    %p112 = scmp.eq.s32.totalorder %s9, 0
    %p113 = por %p111, %p112
    %p114 = scmp.ne.s32.totalorder %s103, %s106
    %p115 = scmp.eq.s32.totalorder %s14, 1
    %p116 = por %p114, %p115
    %p117 = scmp.ne.s32.totalorder %s106, %s107
    %p118 = scmp.eq.s32.totalorder %s14, 0
    %p119 = por %p117, %p118
    %p120 = scmp.ne.s32.totalorder %s106, %s107
    %p121 = scmp.eq.s32.totalorder %s15, 1
    %p122 = por %p120, %p121
    %p124 = scmp.ne.s32.totalorder %s107, %s123
    %p125 = scmp.eq.s32.totalorder %s15, 0
    %p126 = por %p124, %p125
    %p127 = scmp.le.s32.totalorder 1, %s9
    %p128 = scmp.lt.s32.totalorder %s9, 3
    %p129 = pnand %p127, %p128
    %p130 = pneg %p129
    // Predicated region
    $region9: #{down_forward.5} parent=5 // pred_check
      _
    $region10: #{down_forward.5} parent=5 // pred_check_branch
      %132 = sbr.rel (%p129) target = $region12
    $region11: #{down_forward.5} parent=5 // pred_region
      %s133 = ssub.s32 %s9, 1
      // Predicated region
      $region13: #{down_forward.5} parent=11 // pred_check
        %p134 = pneg %p70
      $region14: #{down_forward.5} parent=11 // pred_check_branch
        %136 = sbr.rel (%p134) target = $region16
      $region15: #{down_forward.5} parent=11 // pred_region
        _
      $region16: #{down_forward.5} parent=11 // pred_fallthru
        _
      // Predicated region
      $region17: #{down_forward.5} parent=11 // pred_check
        %p137 = pneg %p91
      $region18: #{down_forward.5} parent=11 // pred_check_branch
        %139 = sbr.rel (%p137) target = $region20
      $region19: #{down_forward.5} parent=11 // pred_region
        _
      $region20: #{down_forward.5} parent=11 // pred_fallthru
        _
    $region12: #{down_forward.5} parent=5 // pred_fallthru
      _
    %p140 = scmp.lt.s32.totalorder %s9, 2
    // Predicated region
    $region21: #{down_forward.5} parent=5 // pred_check
      %p141 = pneg %p140
    $region22: #{down_forward.5} parent=5 // pred_check_branch
      %143 = sbr.rel (%p141) target = $region24
    $region23: #{down_forward.5} parent=5 // pred_region
      // Predicated region
      $region25: #{down_forward.5} parent=23 // pred_check
        %p144 = pneg %p43
      $region26: #{down_forward.5} parent=23 // pred_check_branch
        %146 = sbr.rel (%p144) target = $region28
      $region27: #{down_forward.5} parent=23 // pred_region
        %s147 = smul.u32 8, %s17
        %p148 = scmp.lt.s32.totalorder %s16, 1
        %s149 = scalar_select %p148, %s16, 1
        %p150 = scmp.lt.s32.totalorder %s147, 7
        %s151 = scalar_select %p150, %s147, 7
        %s152 = smul.addr %s151, 2
        %s153 = smul.addr %s149, 16
        %s154 = sadd.s32 %s152, %s153
        %s155 = smul.addr %s154, 4
        %s156 = scalar_lea.vmem %s0, %s155
        %s157 = smul.u32 8, %s17
      $region28: #{down_forward.5} parent=23 // pred_fallthru
        _
    $region24: #{down_forward.5} parent=5 // pred_fallthru
      _
    %p158 = scmp.le.s32.totalorder 1, %s9
    %p159 = scmp.lt.s32.totalorder %s9, 3
    %p160 = pnand %p158, %p159
    %p161 = pneg %p160
    // Predicated region
    $region29: #{down_forward.5} parent=5 // pred_check
      _
    $region30: #{down_forward.5} parent=5 // pred_check_branch
      %163 = sbr.rel (%p160) target = $region32
    $region31: #{down_forward.5} parent=5 // pred_region
      %s164 = ssub.s32 %s9, 1
      %s165 = smul.u32 8, %s19
      %p166 = scmp.lt.s32.totalorder %s18, 1
      %s167 = scalar_select %p166, %s18, 1
      %p168 = scmp.lt.s32.totalorder %s165, 7
      %s169 = scalar_select %p168, %s165, 7
      %s170 = smul.addr %s169, 2
      %s171 = smul.addr %s167, 16
      %s172 = sadd.s32 %s170, %s171
      %s173 = smul.addr %s172, 4
      %s174 = scalar_lea.vmem %s0, %s173
      %p175 = pneg %p49
      %p176 = pneg %p46
      %p177 = pneg %p70
      %p178 = pneg %p67
      %p179 = pneg %p91
      %p180 = pneg %p88
      %p181 = pneg %p119
      %p182 = pneg %p116
      %s183 = smul.u32 8, %s19
      %p184 = scmp.lt.s32.totalorder %s18, 1
      %s185 = scalar_select %p184, %s18, 1
      %p186 = scmp.lt.s32.totalorder %s183, 7
      %s187 = scalar_select %p186, %s183, 7
      %s188 = smul.addr %s185, 8
      %s189 = sadd.s32 %s187, %s188
      %s190 = smul.addr %s189, 8
      %s191 = scalar_lea.vmem %s3, %s190
      %s192 = smul.u32 8, %s19
      %p193 = scmp.lt.s32.totalorder %s18, 1
      %s194 = scalar_select %p193, %s18, 1
      %p195 = scmp.lt.s32.totalorder %s192, 7
      %s196 = scalar_select %p195, %s192, 7
      %s197 = smul.addr %s196, 2
      %s198 = smul.addr %s194, 16
      %s199 = sadd.s32 %s197, %s198
      %s200 = smul.addr %s199, 4
      %s201 = scalar_lea.vmem %s0, %s200
      %s202 = smul.u32 8, %s19
      %s203 = smul.u32 8, %s19
      %p204 = scmp.lt.s32.totalorder %s18, 1
      %s205 = scalar_select %p204, %s18, 1
      %p206 = scmp.lt.s32.totalorder %s203, 7
      %s207 = scalar_select %p206, %s203, 7
      %s208 = smul.addr %s205, 8
      %s209 = sadd.s32 %s207, %s208
      %s210 = smul.addr %s209, 8
      %s211 = scalar_lea.vmem %s3, %s210
      %s212 = smul.u32 8, %s19
      %v213 = vld [vmem:[%s201] sm:$0xf]
      %v214 = vld [vmem:[%s201 + $0x4] sm:$0x1]
      %v215 = vld [vmem:[%s201 + $0x8] sm:$0xf]
      %v216 = vld [vmem:[%s201 + $0xc] sm:$0x1]
      %v217 = vld [vmem:[%s201 + $0x10] sm:$0xf]
      %v218 = vld [vmem:[%s201 + $0x14] sm:$0x1]
      %v219 = vld [vmem:[%s201 + $0x18] sm:$0xf]
      %v220 = vld [vmem:[%s201 + $0x1c] sm:$0x1]
      %v221 = vld [vmem:[%s201 + $0x20] sm:$0xf]
      %v222 = vld [vmem:[%s201 + $0x24] sm:$0x1]
      %v223 = vld [vmem:[%s201 + $0x28] sm:$0xf]
      %v224 = vld [vmem:[%s201 + $0x2c] sm:$0x1]
      %v225 = vld [vmem:[%s201 + $0x30] sm:$0xf]
      %v226 = vld [vmem:[%s201 + $0x34] sm:$0x1]
      %v227 = vld [vmem:[%s201 + $0x38] sm:$0xf]
      %v228 = vld [vmem:[%s201 + $0x3c] sm:$0x1]
      %v229 = vunpack.c.l.bf16 %v213
      %v230 = vunpack.c.l.bf16 %v214
      %v231 = vunpack.c.l.bf16 %v215
      %v232 = vunpack.c.l.bf16 %v216
      %v233 = vunpack.c.l.bf16 %v217
      %v234 = vunpack.c.l.bf16 %v218
      %v235 = vunpack.c.l.bf16 %v219
      %v236 = vunpack.c.l.bf16 %v220
      %v237 = vunpack.c.l.bf16 %v221
      %v238 = vunpack.c.l.bf16 %v222
      %v239 = vunpack.c.l.bf16 %v223
      %v240 = vunpack.c.l.bf16 %v224
      %v241 = vunpack.c.l.bf16 %v225
      %v242 = vunpack.c.l.bf16 %v226
      %v243 = vunpack.c.l.bf16 %v227
      %v244 = vunpack.c.l.bf16 %v228
      %v245 = vld [vmem:[%s1] sm:$0x1]
      %v246 = vld [vmem:[%s2] sm:$0x1]
      %v248 = vperm.slane %v245, 0
      %v250 = vmul.f32 %v229, %v248
      %v251 = vmul.f32 %v230, %v248
      %v252 = vmul.f32 %v231, %v248
      %v253 = vmul.f32 %v232, %v248
      %v254 = vmul.f32 %v233, %v248
      %v255 = vmul.f32 %v234, %v248
      %v256 = vmul.f32 %v235, %v248
      %v257 = vmul.f32 %v236, %v248
      %v258 = vmul.f32 %v237, %v248
      %v259 = vmul.f32 %v238, %v248
      %v260 = vmul.f32 %v239, %v248
      %v261 = vmul.f32 %v240, %v248
      %v262 = vmul.f32 %v241, %v248
      %v263 = vmul.f32 %v242, %v248
      %v264 = vmul.f32 %v243, %v248
      %v265 = vmul.f32 %v244, %v248
      %v267 = vperm.slane %v246, 0
      %v269 = vadd.f32 %v250, %v267
      %v270 = vadd.f32 %v251, %v267
      %v271 = vadd.f32 %v252, %v267
      %v272 = vadd.f32 %v253, %v267
      %v273 = vadd.f32 %v254, %v267
      %v274 = vadd.f32 %v255, %v267
      %v275 = vadd.f32 %v256, %v267
      %v276 = vadd.f32 %v257, %v267
      %v277 = vadd.f32 %v258, %v267
      %v278 = vadd.f32 %v259, %v267
      %v279 = vadd.f32 %v260, %v267
      %v280 = vadd.f32 %v261, %v267
      %v281 = vadd.f32 %v262, %v267
      %v282 = vadd.f32 %v263, %v267
      %v283 = vadd.f32 %v264, %v267
      %v284 = vadd.f32 %v265, %v267
      %v285 = vmax.f32 %v269, 0.0
      %v286 = vmax.f32 %v270, 0.0
      %v287 = vmax.f32 %v271, 0.0
      %v288 = vmax.f32 %v272, 0.0
      %v289 = vmax.f32 %v273, 0.0
      %v290 = vmax.f32 %v274, 0.0
      %v291 = vmax.f32 %v275, 0.0
      %v292 = vmax.f32 %v276, 0.0
      %v293 = vmax.f32 %v277, 0.0
      %v294 = vmax.f32 %v278, 0.0
      %v295 = vmax.f32 %v279, 0.0
      %v296 = vmax.f32 %v280, 0.0
      %v297 = vmax.f32 %v281, 0.0
      %v298 = vmax.f32 %v282, 0.0
      %v299 = vmax.f32 %v283, 0.0
      %v300 = vmax.f32 %v284, 0.0
      %vm301 = vcmask 64513
      %302 = vst.msk [vmem:[%s211 - $0x1] sm:$0xfe] %vm301, %v285
      %vm303 = vcmask 57344
      %304 = vst.msk [vmem:[%s211 + $0x7] sm:$0x1] %vm303, %v286
      %305 = vst.msk [vmem:[%s211 + $0x7] sm:$0xfe] %vm301, %v287
      %306 = vst.msk [vmem:[%s211 + $0xf] sm:$0x1] %vm303, %v288
      %307 = vst.msk [vmem:[%s211 + $0xf] sm:$0xfe] %vm301, %v289
      %308 = vst.msk [vmem:[%s211 + $0x17] sm:$0x1] %vm303, %v290
      %309 = vst.msk [vmem:[%s211 + $0x17] sm:$0xfe] %vm301, %v291
      %310 = vst.msk [vmem:[%s211 + $0x1f] sm:$0x1] %vm303, %v292
      %311 = vst.msk [vmem:[%s211 + $0x1f] sm:$0xfe] %vm301, %v293
      %312 = vst.msk [vmem:[%s211 + $0x27] sm:$0x1] %vm303, %v294
      %313 = vst.msk [vmem:[%s211 + $0x27] sm:$0xfe] %vm301, %v295
      %314 = vst.msk [vmem:[%s211 + $0x2f] sm:$0x1] %vm303, %v296
      %315 = vst.msk [vmem:[%s211 + $0x2f] sm:$0xfe] %vm301, %v297
      %316 = vst.msk [vmem:[%s211 + $0x37] sm:$0x1] %vm303, %v298
      %317 = vst.msk [vmem:[%s211 + $0x37] sm:$0xfe] %vm301, %v299
      %318 = vst.msk [vmem:[%s211 + $0x3f] sm:$0x1] %vm303, %v300
      %s319 = smul.u32 8, %s19
      %p320 = scmp.lt.s32.totalorder %s18, 1
      %s321 = scalar_select %p320, %s18, 1
      %p322 = scmp.lt.s32.totalorder %s319, 7
      %s323 = scalar_select %p322, %s319, 7
      %s324 = smul.addr %s321, 8
      %s325 = sadd.s32 %s323, %s324
      %s326 = smul.addr %s325, 8
      %s327 = scalar_lea.vmem %s3, %s326
      // Predicated region
      $region33: #{down_forward.5} parent=31 // pred_check
        %p328 = pneg %p116
      $region34: #{down_forward.5} parent=31 // pred_check_branch
        %330 = sbr.rel (%p328) target = $region36
      $region35: #{down_forward.5} parent=31 // pred_region
        %s331 = smul.u32 8, %s19
      $region36: #{down_forward.5} parent=31 // pred_fallthru
        _
    $region32: #{down_forward.5} parent=5 // pred_fallthru
      _
    %p332 = scmp.le.s32.totalorder 2, %s9
    // Predicated region
    $region37: #{down_forward.5} parent=5 // pred_check
      %p333 = pneg %p332
    $region38: #{down_forward.5} parent=5 // pred_check_branch
      %335 = sbr.rel (%p333) target = $region40
    $region39: #{down_forward.5} parent=5 // pred_region
      %s336 = ssub.s32 %s9, 2
      // Predicated region
      $region41: #{down_forward.5} parent=39 // pred_check
        %p337 = pneg %p122
      $region42: #{down_forward.5} parent=39 // pred_check_branch
        %339 = sbr.rel (%p337) target = $region44
      $region43: #{down_forward.5} parent=39 // pred_region
        %s340 = smul.u32 8, %s21
        %p341 = scmp.lt.s32.totalorder %s20, 1
        %s342 = scalar_select %p341, %s20, 1
        %p343 = scmp.lt.s32.totalorder %s340, 7
        %s344 = scalar_select %p343, %s340, 7
        %s345 = smul.addr %s342, 8
        %s346 = sadd.s32 %s344, %s345
        %s347 = smul.addr %s346, 8
        %s348 = scalar_lea.vmem %s3, %s347
      $region44: #{down_forward.5} parent=39 // pred_fallthru
        _
    $region40: #{down_forward.5} parent=5 // pred_fallthru
      _
  $region6: #{down_forward.5} parent=0 // loop_footer
    %s13 = sadd.s32 1, %s9
  $region7: #{down_forward.5} parent=0 // loop_footer_branch
    %8 = sbr.rel target = $region3
  $region8: #{down_forward.5} parent=0 // loop_exit
    _

// kernel: down_forward.4
$region0: #{down_forward.4}
  #allocation0 [shape = 'u32[]', space=smem, size = 0x4, offset = 0x4, fixed_abs, tag = 'smem constant byte address 0x4 - core index']
  #allocation1 [shape = 'u32[72,128]{1,0:T(1,128)}', space=vmem, size = 0x9000, scoped, tag = 'internal scratch']
  #allocation2 [shape = 'bf16[12,16,8]{2,1,0:T(8,128)(2,1)}', space=vmem, size = 0xc000, scoped, tag = 'scratch operand']
  %s0 = inlined_call_operand.vmem [shape: bf16[2,8,16,8], index: 0, kind: input, shape index: {}]
  %s1 = inlined_call_operand.vmem [shape: f32[1,8], index: 1, kind: input, shape index: {}]
  %s2 = inlined_call_operand.vmem [shape: f32[1,8], index: 2, kind: input, shape index: {}]
  %s3 = inlined_call_operand.vmem [shape: bf16[3,24,8], index: 3, kind: input, shape index: {}]
  %s4 = inlined_call_operand.vmem [shape: bf16[2,8,16,8], index: 4, kind: output, shape index: {0}]
  %s5 = inlined_call_operand.vmem [shape: f32[2,1,2,8], index: 5, kind: output, shape index: {1}]
  %6 = xla_tuple %s4, %s5
  %s7 = sld [smem:[#allocation0]]
  $region73: #{down_forward.4} parent=0
    _
  %s9 = ssub.s32 1, %s7
  %s10 = scalar_select 0, %s9, %s7
  loop: start=0, step=1, limit=4
  $region2: #{down_forward.4} parent=0 // loop_pre_header
    _
  $region3: #{down_forward.4} parent=0 // loop_header
    %s12 = sphi 0, %s16
    %p13 = scmp.ge.s32.totalorder %s12, 4
    %s19 = sphi 0, %s31
    %s20 = sphi 0, %s27
    %s21 = sphi 0, %s19
    %s22 = sphi 0, %s20
    %s23 = sphi 0, %s21
    %s24 = sphi 0, %s22
    %s34 = sphi 0, %s36
    %s37 = sphi 0, %s34
    %s38 = sphi 0, %s37
    %s54 = sphi 0, %s38
    %s58 = sphi 0, %s58
    %s60 = sphi 0, %s58
    %s61 = sphi 0, %s60
    %s75 = sphi 0, %s61
    %s79 = sphi 0, %s79
    %s81 = sphi 0, %s79
    %s82 = sphi 0, %s81
    %s96 = sphi 0, %s82
    %s100 = sphi 0, %s100
    %s102 = sphi 0, %s100
    %s103 = sphi 0, %s102
    %s117 = sphi 0, %s103
    %s125 = sphi 0, %s127
    %s128 = sphi 0, %s125
    %s129 = sphi 0, %s128
    %s145 = sphi 0, %s129
    %s153 = sphi 0, %s155
    %s156 = sphi 0, %s153
    %s157 = sphi 0, %s156
    %s173 = sphi 0, %s157
  $region4: #{down_forward.4} parent=0 // loop_header_branch
    %15 = sbr.rel (%p13) target = $region8
  $region5: #{down_forward.4} parent=0 // loop_body
    %s17 = ssub.s32 %s12, 1
    %s18 = ssub.s32 %s12, 2
    %s25 = sadd.s32 1, %s20
    %p26 = scmp.ge.s32.totalorder %s25, 1
    %s27 = scalar_select %p26, 0, %s25
    %s28 = sadd.s32 1, %s19
    %s29 = scalar_select %p26, %s28, %s19
    %p30 = scmp.ge.s32.totalorder %s29, 2
    %s31 = scalar_select %p30, 0, %s29
    %s32 = ssub.s32 %s19, %s31
    %p33 = scmp.eq.s32.totalorder %s32, 0
    %s35 = sadd.s32 %s34, 1
    %s36 = scalar_select %p33, %s34, %s35
    %p39 = pneg %p33
    %p40 = scmp.eq.s32.totalorder %s12, 1
    %p41 = por %p39, %p40
    %p42 = scmp.ne.s32.totalorder %s34, %s37
    %p43 = scmp.eq.s32.totalorder %s12, 0
    %p44 = por %p42, %p43
    %p45 = scmp.ne.s32.totalorder %s34, %s37
    %p46 = scmp.eq.s32.totalorder %s17, 1
    %p47 = por %p45, %p46
    %p48 = scmp.ne.s32.totalorder %s37, %s38
    %p49 = scmp.eq.s32.totalorder %s17, 0
    %p50 = por %p48, %p49
    %p51 = scmp.ne.s32.totalorder %s37, %s38
    %p52 = scmp.eq.s32.totalorder %s18, 1
    %p53 = por %p51, %p52
    %p55 = scmp.ne.s32.totalorder %s38, %s54
    %p56 = scmp.eq.s32.totalorder %s18, 0
    %p57 = por %p55, %p56
    %s59 = sadd.s32 %s58, 1
    %p62 = scmp.eq.s32.totalorder %s12, 1
    %p63 = scmp.ne.s32.totalorder %s58, %s60
    %p64 = scmp.eq.s32.totalorder %s12, 0
    %p65 = por %p63, %p64
    %p66 = scmp.ne.s32.totalorder %s58, %s60
    %p67 = scmp.eq.s32.totalorder %s17, 1
    %p68 = por %p66, %p67
    %p69 = scmp.ne.s32.totalorder %s60, %s61
    %p70 = scmp.eq.s32.totalorder %s17, 0
    %p71 = por %p69, %p70
    %p72 = scmp.ne.s32.totalorder %s60, %s61
    %p73 = scmp.eq.s32.totalorder %s18, 1
    %p74 = por %p72, %p73
    %p76 = scmp.ne.s32.totalorder %s61, %s75
    %p77 = scmp.eq.s32.totalorder %s18, 0
    %p78 = por %p76, %p77
    %s80 = sadd.s32 %s79, 1
    %p83 = scmp.eq.s32.totalorder %s12, 1
    %p84 = scmp.ne.s32.totalorder %s79, %s81
    %p85 = scmp.eq.s32.totalorder %s12, 0
    %p86 = por %p84, %p85
    %p87 = scmp.ne.s32.totalorder %s79, %s81
    %p88 = scmp.eq.s32.totalorder %s17, 1
    %p89 = por %p87, %p88
    %p90 = scmp.ne.s32.totalorder %s81, %s82
    %p91 = scmp.eq.s32.totalorder %s17, 0
    %p92 = por %p90, %p91
    %p93 = scmp.ne.s32.totalorder %s81, %s82
    %p94 = scmp.eq.s32.totalorder %s18, 1
    %p95 = por %p93, %p94
    %p97 = scmp.ne.s32.totalorder %s82, %s96
    %p98 = scmp.eq.s32.totalorder %s18, 0
    %p99 = por %p97, %p98
    %s101 = sadd.s32 %s100, 1
    %p104 = scmp.eq.s32.totalorder %s12, 1
    %p105 = scmp.ne.s32.totalorder %s100, %s102
    %p106 = scmp.eq.s32.totalorder %s12, 0
    %p107 = por %p105, %p106
    %p108 = scmp.ne.s32.totalorder %s100, %s102
    %p109 = scmp.eq.s32.totalorder %s17, 1
    %p110 = por %p108, %p109
    %p111 = scmp.ne.s32.totalorder %s102, %s103
    %p112 = scmp.eq.s32.totalorder %s17, 0
    %p113 = por %p111, %p112
    %p114 = scmp.ne.s32.totalorder %s102, %s103
    %p115 = scmp.eq.s32.totalorder %s18, 1
    %p116 = por %p114, %p115
    %p118 = scmp.ne.s32.totalorder %s103, %s117
    %p119 = scmp.eq.s32.totalorder %s18, 0
    %p120 = por %p118, %p119
    %s121 = ssub.s32 %s19, %s31
    %s122 = ssub.s32 %s20, %s27
    %s123 = sor.u32 %s121, %s122
    %p124 = scmp.eq.s32.totalorder %s123, 0
    %s126 = sadd.s32 %s125, 1
    %s127 = scalar_select %p124, %s125, %s126
    %p130 = pneg %p124
    %p131 = scmp.eq.s32.totalorder %s12, 1
    %p132 = por %p130, %p131
    %p133 = scmp.ne.s32.totalorder %s125, %s128
    %p134 = scmp.eq.s32.totalorder %s12, 0
    %p135 = por %p133, %p134
    %p136 = scmp.ne.s32.totalorder %s125, %s128
    %p137 = scmp.eq.s32.totalorder %s17, 1
    %p138 = por %p136, %p137
    %p139 = scmp.ne.s32.totalorder %s128, %s129
    %p140 = scmp.eq.s32.totalorder %s17, 0
    %p141 = por %p139, %p140
    %p142 = scmp.ne.s32.totalorder %s128, %s129
    %p143 = scmp.eq.s32.totalorder %s18, 1
    %p144 = por %p142, %p143
    %p146 = scmp.ne.s32.totalorder %s129, %s145
    %p147 = scmp.eq.s32.totalorder %s18, 0
    %p148 = por %p146, %p147
    %s149 = ssub.s32 %s19, %s31
    %s150 = ssub.s32 %s20, %s27
    %s151 = sor.u32 %s149, %s150
    %p152 = scmp.eq.s32.totalorder %s151, 0
    %s154 = sadd.s32 %s153, 1
    %s155 = scalar_select %p152, %s153, %s154
    %p158 = pneg %p152
    %p159 = scmp.eq.s32.totalorder %s12, 1
    %p160 = por %p158, %p159
    %p161 = scmp.ne.s32.totalorder %s153, %s156
    %p162 = scmp.eq.s32.totalorder %s12, 0
    %p163 = por %p161, %p162
    %p164 = scmp.ne.s32.totalorder %s153, %s156
    %p165 = scmp.eq.s32.totalorder %s17, 1
    %p166 = por %p164, %p165
    %p167 = scmp.ne.s32.totalorder %s156, %s157
    %p168 = scmp.eq.s32.totalorder %s17, 0
    %p169 = por %p167, %p168
    %p170 = scmp.ne.s32.totalorder %s156, %s157
    %p171 = scmp.eq.s32.totalorder %s18, 1
    %p172 = por %p170, %p171
    %p174 = scmp.ne.s32.totalorder %s157, %s173
    %p175 = scmp.eq.s32.totalorder %s18, 0
    %p176 = por %p174, %p175
    %p177 = scmp.le.s32.totalorder 1, %s12
    %p178 = scmp.lt.s32.totalorder %s12, 3
    %p179 = pnand %p177, %p178
    %p180 = pneg %p179
    // Predicated region
    $region9: #{down_forward.4} parent=5 // pred_check
      _
    $region10: #{down_forward.4} parent=5 // pred_check_branch
      %182 = sbr.rel (%p179) target = $region12
    $region11: #{down_forward.4} parent=5 // pred_region
      %s183 = ssub.s32 %s12, 1
      // Predicated region
      $region13: #{down_forward.4} parent=11 // pred_check
        %p184 = pneg %p71
      $region14: #{down_forward.4} parent=11 // pred_check_branch
        %186 = sbr.rel (%p184) target = $region16
      $region15: #{down_forward.4} parent=11 // pred_region
        _
      $region16: #{down_forward.4} parent=11 // pred_fallthru
        _
      // Predicated region
      $region17: #{down_forward.4} parent=11 // pred_check
        %p187 = pneg %p92
      $region18: #{down_forward.4} parent=11 // pred_check_branch
        %189 = sbr.rel (%p187) target = $region20
      $region19: #{down_forward.4} parent=11 // pred_region
        _
      $region20: #{down_forward.4} parent=11 // pred_fallthru
        _
      // Predicated region
      $region21: #{down_forward.4} parent=11 // pred_check
        %p190 = pneg %p113
      $region22: #{down_forward.4} parent=11 // pred_check_branch
        %192 = sbr.rel (%p190) target = $region24
      $region23: #{down_forward.4} parent=11 // pred_region
        _
      $region24: #{down_forward.4} parent=11 // pred_fallthru
        _
    $region12: #{down_forward.4} parent=5 // pred_fallthru
      _
    %p193 = scmp.lt.s32.totalorder %s12, 2
    // Predicated region
    $region25: #{down_forward.4} parent=5 // pred_check
      %p194 = pneg %p193
    $region26: #{down_forward.4} parent=5 // pred_check_branch
      %196 = sbr.rel (%p194) target = $region28
    $region27: #{down_forward.4} parent=5 // pred_region
      // Predicated region
      $region29: #{down_forward.4} parent=27 // pred_check
        %p197 = pneg %p44
      $region30: #{down_forward.4} parent=27 // pred_check_branch
        %199 = sbr.rel (%p197) target = $region32
      $region31: #{down_forward.4} parent=27 // pred_region
        %p200 = scmp.lt.s32.totalorder %s19, 1
        %s201 = scalar_select %p200, %s19, 1
        %s202 = smul.addr %s201, 16
        %s203 = smul.addr %s202, 4
        %s204 = scalar_lea.vmem %s0, %s203
      $region32: #{down_forward.4} parent=27 // pred_fallthru
        _
    $region28: #{down_forward.4} parent=5 // pred_fallthru
      _
    %p205 = scmp.le.s32.totalorder 1, %s12
    %p206 = scmp.lt.s32.totalorder %s12, 3
    %p207 = pnand %p205, %p206
    %p208 = pneg %p207
    // Predicated region
    $region33: #{down_forward.4} parent=5 // pred_check
      _
    $region34: #{down_forward.4} parent=5 // pred_check_branch
      %210 = sbr.rel (%p207) target = $region36
    $region35: #{down_forward.4} parent=5 // pred_region
      %s211 = ssub.s32 %s12, 1
      %p212 = scmp.lt.s32.totalorder %s21, 1
      %s213 = scalar_select %p212, %s21, 1
      %s214 = smul.addr %s213, 16
      %s215 = smul.addr %s214, 4
      %s216 = scalar_lea.vmem %s0, %s215
      %p217 = pneg %p50
      %p218 = pneg %p47
      %p219 = pneg %p71
      %p220 = pneg %p68
      %p221 = pneg %p92
      %p222 = pneg %p89
      %p223 = pneg %p113
      %p224 = pneg %p110
      %p225 = pneg %p141
      %p226 = pneg %p138
      %s227 = smul.u32 8, %s22
      %p228 = scmp.lt.s32.totalorder %s21, 1
      %s229 = scalar_select %p228, %s21, 1
      %p230 = scmp.lt.s32.totalorder %s227, 7
      %s231 = scalar_select %p230, %s227, 7
      %s232 = smul.addr %s231, 2
      %s233 = smul.addr %s229, 16
      %s234 = sadd.s32 %s232, %s233
      %s235 = smul.addr %s234, 4
      %s236 = scalar_lea.vmem %s4, %s235
      %p237 = pneg %p169
      %p238 = pneg %p166
      %p239 = scmp.lt.s32.totalorder %s21, 1
      %s240 = scalar_select %p239, %s21, 1
      %p241 = scmp.lt.s32.totalorder %s22, 0
      %s242 = scalar_select %p241, %s22, 0
      %s243 = sadd.s32 %s242, %s240
      %s244 = smul.addr %s243, 2
      %s245 = scalar_lea.vmem %s5, %s244
      %p246 = scmp.lt.s32.totalorder %s21, 1
      %s247 = scalar_select %p246, %s21, 1
      %s248 = smul.addr %s247, 16
      %s249 = smul.addr %s248, 4
      %s250 = scalar_lea.vmem %s0, %s249
      %s251 = smul.u32 8, %s22
      %p252 = scmp.lt.s32.totalorder %s21, 1
      %s253 = scalar_select %p252, %s21, 1
      %p254 = scmp.lt.s32.totalorder %s251, 7
      %s255 = scalar_select %p254, %s251, 7
      %s256 = smul.addr %s255, 2
      %s257 = smul.addr %s253, 16
      %s258 = sadd.s32 %s256, %s257
      %s259 = smul.addr %s258, 4
      %s260 = scalar_lea.vmem %s4, %s259
      %s261 = smul.u32 8, %s22
      %p262 = scmp.lt.s32.totalorder %s21, 1
      %s263 = scalar_select %p262, %s21, 1
      %p264 = scmp.lt.s32.totalorder %s22, 0
      %s265 = scalar_select %p264, %s22, 0
      %s266 = sadd.s32 %s265, %s263
      %s267 = smul.addr %s266, 2
      %s268 = scalar_lea.vmem %s5, %s267
      %v270 = vld [vmem:[%s1] sm:$0x1]
      %v271 = vld [vmem:[%s2] sm:$0x1]
      %s272 = smul.u32 %s22, 8
      %s273 = smul.u32 %s272, 2
      %s274 = smul.addr %s273, 4
      %s275 = scalar_lea.vmem %s250, %s274
      %v276 = vld [vmem:[%s275] sm:$0xf]
      %v277 = vld [vmem:[%s275 + $0x4] sm:$0xf]
      %v278 = vld [vmem:[%s275 + $0x8] sm:$0xf]
      %v279 = vld [vmem:[%s275 + $0xc] sm:$0xf]
      %v280 = vld [vmem:[%s275 + $0x10] sm:$0xf]
      %v281 = vld [vmem:[%s275 + $0x14] sm:$0xf]
      %v282 = vld [vmem:[%s275 + $0x18] sm:$0xf]
      %v283 = vld [vmem:[%s275 + $0x1c] sm:$0xf]
      %v284 = vld [vmem:[%s275 + $0x20] sm:$0xf]
      %v285 = vld [vmem:[%s275 + $0x24] sm:$0xf]
      %v286 = vld [vmem:[%s275 + $0x28] sm:$0xf]
      %v287 = vld [vmem:[%s275 + $0x2c] sm:$0xf]
      %v288 = vld [vmem:[%s275 + $0x30] sm:$0xf]
      %v289 = vld [vmem:[%s275 + $0x34] sm:$0xf]
      %v290 = vld [vmem:[%s275 + $0x38] sm:$0xf]
      %v291 = vld [vmem:[%s275 + $0x3c] sm:$0xf]
      %v292 = vunpack.c.l.bf16 %v276
      %v293 = vunpack.c.l.bf16 %v277
      %v294 = vunpack.c.l.bf16 %v278
      %v295 = vunpack.c.l.bf16 %v279
      %v296 = vunpack.c.l.bf16 %v280
      %v297 = vunpack.c.l.bf16 %v281
      %v298 = vunpack.c.l.bf16 %v282
      %v299 = vunpack.c.l.bf16 %v283
      %v300 = vunpack.c.l.bf16 %v284
      %v301 = vunpack.c.l.bf16 %v285
      %v302 = vunpack.c.l.bf16 %v286
      %v303 = vunpack.c.l.bf16 %v287
      %v304 = vunpack.c.l.bf16 %v288
      %v305 = vunpack.c.l.bf16 %v289
      %v306 = vunpack.c.l.bf16 %v290
      %v307 = vunpack.c.l.bf16 %v291
      %v309 = vperm.slane %v270, 0
      %v311 = vmul.f32 %v292, %v309
      %v312 = vmul.f32 %v293, %v309
      %v313 = vmul.f32 %v294, %v309
      %v314 = vmul.f32 %v295, %v309
      %v315 = vmul.f32 %v296, %v309
      %v316 = vmul.f32 %v297, %v309
      %v317 = vmul.f32 %v298, %v309
      %v318 = vmul.f32 %v299, %v309
      %v319 = vmul.f32 %v300, %v309
      %v320 = vmul.f32 %v301, %v309
      %v321 = vmul.f32 %v302, %v309
      %v322 = vmul.f32 %v303, %v309
      %v323 = vmul.f32 %v304, %v309
      %v324 = vmul.f32 %v305, %v309
      %v325 = vmul.f32 %v306, %v309
      %v326 = vmul.f32 %v307, %v309
      %v328 = vperm.slane %v271, 0
      %v330 = vadd.f32 %v311, %v328
      %v331 = vadd.f32 %v312, %v328
      %v332 = vadd.f32 %v313, %v328
      %v333 = vadd.f32 %v314, %v328
      %v334 = vadd.f32 %v315, %v328
      %v335 = vadd.f32 %v316, %v328
      %v336 = vadd.f32 %v317, %v328
      %v337 = vadd.f32 %v318, %v328
      %v338 = vadd.f32 %v319, %v328
      %v339 = vadd.f32 %v320, %v328
      %v340 = vadd.f32 %v321, %v328
      %v341 = vadd.f32 %v322, %v328
      %v342 = vadd.f32 %v323, %v328
      %v343 = vadd.f32 %v324, %v328
      %v344 = vadd.f32 %v325, %v328
      %v345 = vadd.f32 %v326, %v328
      %v346 = vmax.f32 %v330, 0.0
      %v347 = vmax.f32 %v331, 0.0
      %v348 = vmax.f32 %v332, 0.0
      %v349 = vmax.f32 %v333, 0.0
      %v350 = vmax.f32 %v334, 0.0
      %v351 = vmax.f32 %v335, 0.0
      %v352 = vmax.f32 %v336, 0.0
      %v353 = vmax.f32 %v337, 0.0
      %v354 = vmax.f32 %v338, 0.0
      %v355 = vmax.f32 %v339, 0.0
      %v356 = vmax.f32 %v340, 0.0
      %v357 = vmax.f32 %v341, 0.0
      %v358 = vmax.f32 %v342, 0.0
      %v359 = vmax.f32 %v343, 0.0
      %v360 = vmax.f32 %v344, 0.0
      %v361 = vmax.f32 %v345, 0.0
      %v362 = vpack.c.bf16 %v346, %v346
      %v363 = vpack.c.bf16 %v347, %v347
      %v364 = vpack.c.bf16 %v348, %v348
      %v365 = vpack.c.bf16 %v349, %v349
      %v366 = vpack.c.bf16 %v350, %v350
      %v367 = vpack.c.bf16 %v351, %v351
      %v368 = vpack.c.bf16 %v352, %v352
      %v369 = vpack.c.bf16 %v353, %v353
      %v370 = vpack.c.bf16 %v354, %v354
      %v371 = vpack.c.bf16 %v355, %v355
      %v372 = vpack.c.bf16 %v356, %v356
      %v373 = vpack.c.bf16 %v357, %v357
      %v374 = vpack.c.bf16 %v358, %v358
      %v375 = vpack.c.bf16 %v359, %v359
      %v376 = vpack.c.bf16 %v360, %v360
      %v377 = vpack.c.bf16 %v361, %v361
      %s378 = scalar_lea.vmem [#allocation2], 16
      %vm379 = vcmask 60416
      %380 = vst.msk [vmem:[%s378] sm:$0xf] %vm379, %v362
      %381 = vst.msk [vmem:[%s378 + $0x4] sm:$0xf] %vm379, %v363
      %382 = vst.msk [vmem:[%s378 + $0x8] sm:$0xf] %vm379, %v364
      %383 = vst.msk [vmem:[%s378 + $0xc] sm:$0xf] %vm379, %v365
      %384 = vst.msk [vmem:[%s378 + $0x10] sm:$0xf] %vm379, %v366
      %385 = vst.msk [vmem:[%s378 + $0x14] sm:$0xf] %vm379, %v367
      %386 = vst.msk [vmem:[%s378 + $0x18] sm:$0xf] %vm379, %v368
      %387 = vst.msk [vmem:[%s378 + $0x1c] sm:$0xf] %vm379, %v369
      %388 = vst.msk [vmem:[%s378 + $0x20] sm:$0xf] %vm379, %v370
      %389 = vst.msk [vmem:[%s378 + $0x24] sm:$0xf] %vm379, %v371
      %390 = vst.msk [vmem:[%s378 + $0x28] sm:$0xf] %vm379, %v372
      %391 = vst.msk [vmem:[%s378 + $0x2c] sm:$0xf] %vm379, %v373
      %392 = vst.msk [vmem:[%s378 + $0x30] sm:$0xf] %vm379, %v374
      %393 = vst.msk [vmem:[%s378 + $0x34] sm:$0xf] %vm379, %v375
      %394 = vst.msk [vmem:[%s378 + $0x38] sm:$0xf] %vm379, %v376
      %395 = vst.msk [vmem:[%s378 + $0x3c] sm:$0xf] %vm379, %v377
      %p396 = scmp.eq.s32.totalorder %s22, 0
      // Predicated region
      $region37: #{down_forward.4} parent=35 // pred_check
        %p397 = pneg %p396
      $region38: #{down_forward.4} parent=35 // pred_check_branch
        %399 = sbr.rel (%p397) target = $region40
      $region39: #{down_forward.4} parent=35 // pred_region
        %s400 = scalar_lea.vmem [#allocation2], 8
        %401 = vst.msk [vmem:[%s400] sm:$0xf] %vm379, 0
        %402 = vst.msk [vmem:[%s400 + $0x4] sm:$0xf] %vm379, 0
      $region40: #{down_forward.4} parent=35 // pred_fallthru
        _
      %p403 = scmp.gt.s32.totalorder %s22, 0
      // Predicated region
      $region41: #{down_forward.4} parent=35 // pred_check
        %p404 = pneg %p403
      $region42: #{down_forward.4} parent=35 // pred_check_branch
        %406 = sbr.rel (%p404) target = $region44
      $region43: #{down_forward.4} parent=35 // pred_region
        %s407 = ssub.s32 %s272, 1
        %s408 = smul.u32 %s407, 2
        %s409 = smul.addr %s408, 4
        %s410 = scalar_lea.vmem %s250, %s409
        %v411 = vld [vmem:[%s410] sm:$0xf]
        %v412 = vld [vmem:[%s410 + $0x4] sm:$0xf]
        %v413 = vunpack.c.l.bf16 %v411
        %v414 = vunpack.c.l.bf16 %v412
        %v415 = vmul.f32 %v413, %v309
        %v416 = vmul.f32 %v414, %v309
        %v417 = vadd.f32 %v415, %v328
        %v418 = vadd.f32 %v416, %v328
        %v419 = vmax.f32 %v417, 0.0
        %v420 = vmax.f32 %v418, 0.0
        %v421 = vpack.c.bf16 %v419, %v419
        %v422 = vpack.c.bf16 %v420, %v420
        %s423 = scalar_lea.vmem [#allocation2], 8
        %424 = vst.msk [vmem:[%s423] sm:$0xf] %vm379, %v421
        %425 = vst.msk [vmem:[%s423 + $0x4] sm:$0xf] %vm379, %v422
      $region44: #{down_forward.4} parent=35 // pred_fallthru
        _
      // Predicated region
      $region45: #{down_forward.4} parent=35 // pred_check
        %p426 = pneg %p396
      $region46: #{down_forward.4} parent=35 // pred_check_branch
        %428 = sbr.rel (%p426) target = $region48
      $region47: #{down_forward.4} parent=35 // pred_region
        %s429 = scalar_lea.vmem [#allocation2], 80
        %430 = vst.msk [vmem:[%s429] sm:$0xf] %vm379, 0
        %431 = vst.msk [vmem:[%s429 + $0x4] sm:$0xf] %vm379, 0
      $region48: #{down_forward.4} parent=35 // pred_fallthru
        _
      %p432 = scmp.lt.s32.totalorder %s22, 0
      // Predicated region
      $region49: #{down_forward.4} parent=35 // pred_check
        %p433 = pneg %p432
      $region50: #{down_forward.4} parent=35 // pred_check_branch
        %435 = sbr.rel (%p433) target = $region52
      $region51: #{down_forward.4} parent=35 // pred_region
        %s436 = sadd.s32 %s272, 8
        %s437 = smul.u32 %s436, 2
        %s438 = smul.addr %s437, 4
        %s439 = scalar_lea.vmem %s250, %s438
        %v440 = vld [vmem:[%s439] sm:$0xf]
        %v441 = vld [vmem:[%s439 + $0x4] sm:$0xf]
        %v442 = vunpack.c.l.bf16 %v440
        %v443 = vunpack.c.l.bf16 %v441
        %v444 = vmul.f32 %v442, %v309
        %v445 = vmul.f32 %v443, %v309
        %v446 = vadd.f32 %v444, %v328
        %v447 = vadd.f32 %v445, %v328
        %v448 = vmax.f32 %v446, 0.0
        %v449 = vmax.f32 %v447, 0.0
        %v450 = vpack.c.bf16 %v448, %v448
        %v451 = vpack.c.bf16 %v449, %v449
        %s452 = scalar_lea.vmem [#allocation2], 80
        %453 = vst.msk [vmem:[%s452] sm:$0xf] %vm379, %v450
        %454 = vst.msk [vmem:[%s452 + $0x4] sm:$0xf] %vm379, %v451
      $region52: #{down_forward.4} parent=35 // pred_fallthru
        _
      %vm455 = vcmask 57344
      %vm456 = vsmask.f32 256
      %vm457 = vmand %vm455, %vm456
      %v458 = vld [vmem:[#allocation2] sm:$0x1]
      %v459 = vsel %vm457, 0, %v458
      %460 = vst [vmem:[#allocation2] sm:$0x1] %v459
      %v461 = vld [vmem:[#allocation2 + $0x8] sm:$0x1]
      %v462 = vsel %vm457, 0, %v461
      %463 = vst [vmem:[#allocation2 + $0x8] sm:$0x1] %v462
      %v464 = vld [vmem:[#allocation2 + $0x10] sm:$0x1]
      %v465 = vsel %vm457, 0, %v464
      %466 = vst [vmem:[#allocation2 + $0x10] sm:$0x1] %v465
      %v467 = vld [vmem:[#allocation2 + $0x18] sm:$0x1]
      %v468 = vsel %vm457, 0, %v467
      %469 = vst [vmem:[#allocation2 + $0x18] sm:$0x1] %v468
      %v470 = vld [vmem:[#allocation2 + $0x20] sm:$0x1]
      %v471 = vsel %vm457, 0, %v470
      %472 = vst [vmem:[#allocation2 + $0x20] sm:$0x1] %v471
      %v473 = vld [vmem:[#allocation2 + $0x28] sm:$0x1]
      %v474 = vsel %vm457, 0, %v473
      %475 = vst [vmem:[#allocation2 + $0x28] sm:$0x1] %v474
      %v476 = vld [vmem:[#allocation2 + $0x30] sm:$0x1]
      %v477 = vsel %vm457, 0, %v476
      %478 = vst [vmem:[#allocation2 + $0x30] sm:$0x1] %v477
      %v479 = vld [vmem:[#allocation2 + $0x38] sm:$0x1]
      %v480 = vsel %vm457, 0, %v479
      %481 = vst [vmem:[#allocation2 + $0x38] sm:$0x1] %v480
      %v482 = vld [vmem:[#allocation2 + $0x40] sm:$0x1]
      %v483 = vsel %vm457, 0, %v482
      %484 = vst [vmem:[#allocation2 + $0x40] sm:$0x1] %v483
      %v485 = vld [vmem:[#allocation2 + $0x48] sm:$0x1]
      %v486 = vsel %vm457, 0, %v485
      %487 = vst [vmem:[#allocation2 + $0x48] sm:$0x1] %v486
      %v488 = vld [vmem:[#allocation2 + $0x50] sm:$0x1]
      %v489 = vsel %vm457, 0, %v488
      %490 = vst [vmem:[#allocation2 + $0x50] sm:$0x1] %v489
      %v491 = vld [vmem:[#allocation2 + $0x58] sm:$0x1]
      %v492 = vsel %vm457, 0, %v491
      %493 = vst [vmem:[#allocation2 + $0x58] sm:$0x1] %v492
      %vm494 = vcmask 60416
      %vm495 = vsmask.f32 7938
      %vm496 = vmand %vm494, %vm495
      %v497 = vld [vmem:[#allocation2 + $0x4] sm:$0xf]
      %v498 = vsel %vm496, 0, %v497
      %499 = vst [vmem:[#allocation2 + $0x4] sm:$0xf] %v498
      %v500 = vld [vmem:[#allocation2 + $0xc] sm:$0xf]
      %v501 = vsel %vm496, 0, %v500
      %502 = vst [vmem:[#allocation2 + $0xc] sm:$0xf] %v501
      %v503 = vld [vmem:[#allocation2 + $0x14] sm:$0xf]
      %v504 = vsel %vm496, 0, %v503
      %505 = vst [vmem:[#allocation2 + $0x14] sm:$0xf] %v504
      %v506 = vld [vmem:[#allocation2 + $0x1c] sm:$0xf]
      %v507 = vsel %vm496, 0, %v506
      %508 = vst [vmem:[#allocation2 + $0x1c] sm:$0xf] %v507
      %v509 = vld [vmem:[#allocation2 + $0x24] sm:$0xf]
      %v510 = vsel %vm496, 0, %v509
      %511 = vst [vmem:[#allocation2 + $0x24] sm:$0xf] %v510
      %v512 = vld [vmem:[#allocation2 + $0x2c] sm:$0xf]
      %v513 = vsel %vm496, 0, %v512
      %514 = vst [vmem:[#allocation2 + $0x2c] sm:$0xf] %v513
      %v515 = vld [vmem:[#allocation2 + $0x34] sm:$0xf]
      %v516 = vsel %vm496, 0, %v515
      %517 = vst [vmem:[#allocation2 + $0x34] sm:$0xf] %v516
      %v518 = vld [vmem:[#allocation2 + $0x3c] sm:$0xf]
      %v519 = vsel %vm496, 0, %v518
      %520 = vst [vmem:[#allocation2 + $0x3c] sm:$0xf] %v519
      %v521 = vld [vmem:[#allocation2 + $0x44] sm:$0xf]
      %v522 = vsel %vm496, 0, %v521
      %523 = vst [vmem:[#allocation2 + $0x44] sm:$0xf] %v522
      %v524 = vld [vmem:[#allocation2 + $0x4c] sm:$0xf]
      %v525 = vsel %vm496, 0, %v524
      %526 = vst [vmem:[#allocation2 + $0x4c] sm:$0xf] %v525
      %v527 = vld [vmem:[#allocation2 + $0x54] sm:$0xf]
      %v528 = vsel %vm496, 0, %v527
      %529 = vst [vmem:[#allocation2 + $0x54] sm:$0xf] %v528
      %v530 = vld [vmem:[#allocation2 + $0x5c] sm:$0xf]
      %v531 = vsel %vm496, 0, %v530
      %532 = vst [vmem:[#allocation2 + $0x5c] sm:$0xf] %v531
      %v533 = vld [vmem:[#allocation2 + $0x4] sm:$0xf]
      %v534 = vld [vmem:[#allocation2 + $0x8] sm:$0xf]
      %v535 = vld [vmem:[#allocation2 + $0xc] sm:$0xf]
      %v536 = vld [vmem:[#allocation2 + $0x10] sm:$0xf]
      %v537 = vld [vmem:[#allocation2 + $0x14] sm:$0xf]
      %v538 = vld [vmem:[#allocation2 + $0x18] sm:$0xf]
      %v539 = vld [vmem:[#allocation2 + $0x1c] sm:$0xf]
      %v540 = vld [vmem:[#allocation2 + $0x20] sm:$0xf]
      %v541 = vld [vmem:[#allocation2 + $0x24] sm:$0xf]
      %v542 = vld [vmem:[#allocation2 + $0x28] sm:$0xf]
      %v543 = vld [vmem:[#allocation2 + $0x2c] sm:$0xf]
      %v544 = vld [vmem:[#allocation2 + $0x30] sm:$0xf]
      %v545 = vld [vmem:[#allocation2 + $0x34] sm:$0xf]
      %v546 = vld [vmem:[#allocation2 + $0x38] sm:$0xf]
      %v547 = vld [vmem:[#allocation2 + $0x3c] sm:$0xf]
      %v548 = vld [vmem:[#allocation2 + $0x40] sm:$0xf]
      %v549 = vld [vmem:[#allocation2 + $0x44] sm:$0xf]
      %v550 = vld [vmem:[#allocation2 + $0x48] sm:$0xf]
      %v568 = vunpack.c.l.b16 %v533
      %v569 = vunpack.c.l.b16 %v534
      %v570 = vunpack.c.l.b16 %v535
      %v571 = vunpack.c.l.b16 %v536
      %v572 = vunpack.c.l.b16 %v537
      %v573 = vunpack.c.l.b16 %v538
      %v574 = vunpack.c.l.b16 %v539
      %v575 = vunpack.c.l.b16 %v540
      %v576 = vunpack.c.l.b16 %v541
      %v577 = vunpack.c.l.b16 %v542
      %v578 = vunpack.c.l.b16 %v543
      %v579 = vunpack.c.l.b16 %v544
      %v580 = vunpack.c.l.b16 %v545
      %v581 = vunpack.c.l.b16 %v546
      %v582 = vunpack.c.l.b16 %v547
      %v583 = vunpack.c.l.b16 %v548
      %v584 = vunpack.c.l.b16 %v549
      %v585 = vpack.c.b16 %v569, %v568
      %v586 = vpack.c.b16 %v571, %v570
      %v587 = vpack.c.b16 %v573, %v572
      %v588 = vpack.c.b16 %v575, %v574
      %v589 = vpack.c.b16 %v577, %v576
      %v590 = vpack.c.b16 %v579, %v578
      %v591 = vpack.c.b16 %v581, %v580
      %v592 = vpack.c.b16 %v583, %v582
      %v593 = vpack.c.b16 %v584, %v584
      %v594 = vpack.c.b16 %v570, %v569
      %v595 = vpack.c.b16 %v572, %v571
      %v596 = vpack.c.b16 %v574, %v573
      %v597 = vpack.c.b16 %v576, %v575
      %v598 = vpack.c.b16 %v578, %v577
      %v599 = vpack.c.b16 %v580, %v579
      %v600 = vpack.c.b16 %v582, %v581
      %v601 = vpack.c.b16 %v584, %v583
      %vm602 = vsmask.f32 3328
      %v604 = vshrl.u32 %v594, 16
      %v606 = vrot.slane %v604, 4
      %v607 = vshll.u32 %v594, 16
      %v609 = vrot.slane %v607, 5
      %v610 = vor.u32 %v606, %v609
      %v612 = vshrl.u32 %v595, 16
      %v614 = vrot.slane %v612, 4
      %v615 = vshll.u32 %v595, 16
      %v617 = vrot.slane %v615, 5
      %v618 = vor.u32 %v614, %v617
      %v619 = vsel %vm602, %v610, %v618
      %v621 = vshrl.u32 %v596, 16
      %v623 = vrot.slane %v621, 4
      %v624 = vshll.u32 %v596, 16
      %v626 = vrot.slane %v624, 5
      %v627 = vor.u32 %v623, %v626
      %v628 = vsel %vm602, %v618, %v627
      %v630 = vshrl.u32 %v597, 16
      %v632 = vrot.slane %v630, 4
      %v633 = vshll.u32 %v597, 16
      %v635 = vrot.slane %v633, 5
      %v636 = vor.u32 %v632, %v635
      %v637 = vsel %vm602, %v627, %v636
      %v639 = vshrl.u32 %v598, 16
      %v641 = vrot.slane %v639, 4
      %v642 = vshll.u32 %v598, 16
      %v644 = vrot.slane %v642, 5
      %v645 = vor.u32 %v641, %v644
      %v646 = vsel %vm602, %v636, %v645
      %v648 = vshrl.u32 %v599, 16
      %v650 = vrot.slane %v648, 4
      %v651 = vshll.u32 %v599, 16
      %v653 = vrot.slane %v651, 5
      %v654 = vor.u32 %v650, %v653
      %v655 = vsel %vm602, %v645, %v654
      %v657 = vshrl.u32 %v600, 16
      %v659 = vrot.slane %v657, 4
      %v660 = vshll.u32 %v600, 16
      %v662 = vrot.slane %v660, 5
      %v663 = vor.u32 %v659, %v662
      %v664 = vsel %vm602, %v654, %v663
      %v666 = vshrl.u32 %v601, 16
      %v668 = vrot.slane %v666, 4
      %v669 = vshll.u32 %v601, 16
      %v671 = vrot.slane %v669, 5
      %v672 = vor.u32 %v668, %v671
      %v673 = vsel %vm602, %v663, %v672
      %674 = vrot.lane.b32.xlu0 %v610, 8
      %v675 = vpop.permute.xlu0 %674
      %676 = vrot.lane.b32.xlu0 %v619, 8
      %v677 = vpop.permute.xlu0 %676
      %678 = vrot.lane.b32.xlu0 %v628, 8
      %v679 = vpop.permute.xlu0 %678
      %680 = vrot.lane.b32.xlu0 %v637, 8
      %v681 = vpop.permute.xlu0 %680
      %682 = vrot.lane.b32.xlu0 %v646, 8
      %v683 = vpop.permute.xlu0 %682
      %684 = vrot.lane.b32.xlu0 %v655, 8
      %v685 = vpop.permute.xlu0 %684
      %686 = vrot.lane.b32.xlu0 %v664, 8
      %v687 = vpop.permute.xlu0 %686
      %688 = vrot.lane.b32.xlu0 %v673, 8
      %v689 = vpop.permute.xlu0 %688
      %690 = vrot.lane.b32.xlu0 %v672, 8
      %v691 = vpop.permute.xlu0 %690
      %v693 = vunpack.c.l.b16 %v550
      %v694 = vpack.c.b16 %v693, %v693
      %vm695 = vcmask 1042432
      %v696 = vrot.slane %v594, 5
      %v697 = vrot.slane %v595, 5
      %v698 = vsel %vm695, %v696, %v697
      %v699 = vrot.slane %v596, 5
      %v700 = vsel %vm695, %v697, %v699
      %v701 = vrot.slane %v597, 5
      %v702 = vsel %vm695, %v699, %v701
      %v703 = vrot.slane %v598, 5
      %v704 = vsel %vm695, %v701, %v703
      %v705 = vrot.slane %v599, 5
      %v706 = vsel %vm695, %v703, %v705
      %v707 = vrot.slane %v600, 5
      %v708 = vsel %vm695, %v705, %v707
      %v709 = vrot.slane %v601, 5
      %v710 = vsel %vm695, %v707, %v709
      %v711 = vrot.slane %v694, 5
      %v712 = vsel %vm695, %v709, %v711
      %713 = vrot.lane.b32.xlu0 %v696, 16
      %v714 = vpop.permute.xlu0 %713
      %715 = vrot.lane.b32.xlu0 %v698, 16
      %v716 = vpop.permute.xlu0 %715
      %717 = vrot.lane.b32.xlu0 %v700, 16
      %v718 = vpop.permute.xlu0 %717
      %719 = vrot.lane.b32.xlu0 %v702, 16
      %v720 = vpop.permute.xlu0 %719
      %721 = vrot.lane.b32.xlu0 %v704, 16
      %v722 = vpop.permute.xlu0 %721
      %723 = vrot.lane.b32.xlu0 %v706, 16
      %v724 = vpop.permute.xlu0 %723
      %725 = vrot.lane.b32.xlu0 %v708, 16
      %v726 = vpop.permute.xlu0 %725
      %727 = vrot.lane.b32.xlu0 %v710, 16
      %v728 = vpop.permute.xlu0 %727
      %729 = vrot.lane.b32.xlu0 %v712, 16
      %v730 = vpop.permute.xlu0 %729
      %vm731 = vcmask 64512
      %v734 = vsel %vm731, %v585, %v675
      %v737 = vsel %vm731, %v586, %v677
      %v740 = vsel %vm731, %v587, %v679
      %v743 = vsel %vm731, %v588, %v681
      %v746 = vsel %vm731, %v589, %v683
      %v749 = vsel %vm731, %v590, %v685
      %v752 = vsel %vm731, %v591, %v687
      %v755 = vsel %vm731, %v592, %v689
      %v758 = vsel %vm731, %v593, %v691
      %vm759 = vcmask 130048
      %v761 = vsel %vm759, %v734, %v714
      %v763 = vsel %vm759, %v737, %v716
      %v765 = vsel %vm759, %v740, %v718
      %v767 = vsel %vm759, %v743, %v720
      %v769 = vsel %vm759, %v746, %v722
      %v771 = vsel %vm759, %v749, %v724
      %v773 = vsel %vm759, %v752, %v726
      %v775 = vsel %vm759, %v755, %v728
      %v777 = vsel %vm759, %v758, %v730
      %v778 = vld [vmem:[%s3] sm:$0xf]
      %v779 = vld [vmem:[%s3 + $0x4] sm:$0xf]
      %v780 = vld [vmem:[%s3 + $0x8] sm:$0xf]
      %s781 = scalar_lea.vmem [#allocation2], 8
      %v782 = vld [vmem:[%s781 + $0x4] sm:$0xf]
      %v783 = vld [vmem:[%s781 + $0x8] sm:$0xf]
      %v784 = vld [vmem:[%s781 + $0xc] sm:$0xf]
      %v785 = vld [vmem:[%s781 + $0x10] sm:$0xf]
      %v786 = vld [vmem:[%s781 + $0x14] sm:$0xf]
      %v787 = vld [vmem:[%s781 + $0x18] sm:$0xf]
      %v788 = vld [vmem:[%s781 + $0x1c] sm:$0xf]
      %v789 = vld [vmem:[%s781 + $0x20] sm:$0xf]
      %v790 = vld [vmem:[%s781 + $0x24] sm:$0xf]
      %v791 = vld [vmem:[%s781 + $0x28] sm:$0xf]
      %v792 = vld [vmem:[%s781 + $0x2c] sm:$0xf]
      %v793 = vld [vmem:[%s781 + $0x30] sm:$0xf]
      %v794 = vld [vmem:[%s781 + $0x34] sm:$0xf]
      %v795 = vld [vmem:[%s781 + $0x38] sm:$0xf]
      %v796 = vld [vmem:[%s781 + $0x3c] sm:$0xf]
      %v797 = vld [vmem:[%s781 + $0x40] sm:$0xf]
      %v798 = vld [vmem:[%s781 + $0x44] sm:$0xf]
      %v799 = vld [vmem:[%s781 + $0x48] sm:$0xf]
      %v817 = vunpack.c.l.b16 %v782
      %v818 = vunpack.c.l.b16 %v783
      %v819 = vunpack.c.l.b16 %v784
      %v820 = vunpack.c.l.b16 %v785
      %v821 = vunpack.c.l.b16 %v786
      %v822 = vunpack.c.l.b16 %v787
      %v823 = vunpack.c.l.b16 %v788
      %v824 = vunpack.c.l.b16 %v789
      %v825 = vunpack.c.l.b16 %v790
      %v826 = vunpack.c.l.b16 %v791
      %v827 = vunpack.c.l.b16 %v792
      %v828 = vunpack.c.l.b16 %v793
      %v829 = vunpack.c.l.b16 %v794
      %v830 = vunpack.c.l.b16 %v795
      %v831 = vunpack.c.l.b16 %v796
      %v832 = vunpack.c.l.b16 %v797
      %v833 = vunpack.c.l.b16 %v798
      %v834 = vpack.c.b16 %v818, %v817
      %v835 = vpack.c.b16 %v820, %v819
      %v836 = vpack.c.b16 %v822, %v821
      %v837 = vpack.c.b16 %v824, %v823
      %v838 = vpack.c.b16 %v826, %v825
      %v839 = vpack.c.b16 %v828, %v827
      %v840 = vpack.c.b16 %v830, %v829
      %v841 = vpack.c.b16 %v832, %v831
      %v842 = vpack.c.b16 %v833, %v833
      %v843 = vpack.c.b16 %v819, %v818
      %v844 = vpack.c.b16 %v821, %v820
      %v845 = vpack.c.b16 %v823, %v822
      %v846 = vpack.c.b16 %v825, %v824
      %v847 = vpack.c.b16 %v827, %v826
      %v848 = vpack.c.b16 %v829, %v828
      %v849 = vpack.c.b16 %v831, %v830
      %v850 = vpack.c.b16 %v833, %v832
      %v852 = vshrl.u32 %v843, 16
      %v854 = vrot.slane %v852, 4
      %v855 = vshll.u32 %v843, 16
      %v857 = vrot.slane %v855, 5
      %v858 = vor.u32 %v854, %v857
      %v860 = vshrl.u32 %v844, 16
      %v862 = vrot.slane %v860, 4
      %v863 = vshll.u32 %v844, 16
      %v865 = vrot.slane %v863, 5
      %v866 = vor.u32 %v862, %v865
      %v867 = vsel %vm602, %v858, %v866
      %v869 = vshrl.u32 %v845, 16
      %v871 = vrot.slane %v869, 4
      %v872 = vshll.u32 %v845, 16
      %v874 = vrot.slane %v872, 5
      %v875 = vor.u32 %v871, %v874
      %v876 = vsel %vm602, %v866, %v875
      %v878 = vshrl.u32 %v846, 16
      %v880 = vrot.slane %v878, 4
      %v881 = vshll.u32 %v846, 16
      %v883 = vrot.slane %v881, 5
      %v884 = vor.u32 %v880, %v883
      %v885 = vsel %vm602, %v875, %v884
      %v887 = vshrl.u32 %v847, 16
      %v889 = vrot.slane %v887, 4
      %v890 = vshll.u32 %v847, 16
      %v892 = vrot.slane %v890, 5
      %v893 = vor.u32 %v889, %v892
      %v894 = vsel %vm602, %v884, %v893
      %v896 = vshrl.u32 %v848, 16
      %v898 = vrot.slane %v896, 4
      %v899 = vshll.u32 %v848, 16
      %v901 = vrot.slane %v899, 5
      %v902 = vor.u32 %v898, %v901
      %v903 = vsel %vm602, %v893, %v902
      %v905 = vshrl.u32 %v849, 16
      %v907 = vrot.slane %v905, 4
      %v908 = vshll.u32 %v849, 16
      %v910 = vrot.slane %v908, 5
      %v911 = vor.u32 %v907, %v910
      %v912 = vsel %vm602, %v902, %v911
      %v914 = vshrl.u32 %v850, 16
      %v916 = vrot.slane %v914, 4
      %v917 = vshll.u32 %v850, 16
      %v919 = vrot.slane %v917, 5
      %v920 = vor.u32 %v916, %v919
      %v921 = vsel %vm602, %v911, %v920
      %922 = vrot.lane.b32.xlu0 %v858, 8
      %v923 = vpop.permute.xlu0 %922
      %924 = vrot.lane.b32.xlu0 %v867, 8
      %v925 = vpop.permute.xlu0 %924
      %926 = vrot.lane.b32.xlu0 %v876, 8
      %v927 = vpop.permute.xlu0 %926
      %928 = vrot.lane.b32.xlu0 %v885, 8
      %v929 = vpop.permute.xlu0 %928
      %930 = vrot.lane.b32.xlu0 %v894, 8
      %v931 = vpop.permute.xlu0 %930
      %932 = vrot.lane.b32.xlu0 %v903, 8
      %v933 = vpop.permute.xlu0 %932
      %934 = vrot.lane.b32.xlu0 %v912, 8
      %v935 = vpop.permute.xlu0 %934
      %936 = vrot.lane.b32.xlu0 %v921, 8
      %v937 = vpop.permute.xlu0 %936
      %938 = vrot.lane.b32.xlu0 %v920, 8
      %v939 = vpop.permute.xlu0 %938
      %v941 = vunpack.c.l.b16 %v799
      %v942 = vpack.c.b16 %v941, %v941
      %v943 = vrot.slane %v843, 5
      %v944 = vrot.slane %v844, 5
      %v945 = vsel %vm695, %v943, %v944
      %v946 = vrot.slane %v845, 5
      %v947 = vsel %vm695, %v944, %v946
      %v948 = vrot.slane %v846, 5
      %v949 = vsel %vm695, %v946, %v948
      %v950 = vrot.slane %v847, 5
      %v951 = vsel %vm695, %v948, %v950
      %v952 = vrot.slane %v848, 5
      %v953 = vsel %vm695, %v950, %v952
      %v954 = vrot.slane %v849, 5
      %v955 = vsel %vm695, %v952, %v954
      %v956 = vrot.slane %v850, 5
      %v957 = vsel %vm695, %v954, %v956
      %v958 = vrot.slane %v942, 5
      %v959 = vsel %vm695, %v956, %v958
      %960 = vrot.lane.b32.xlu0 %v943, 16
      %v961 = vpop.permute.xlu0 %960
      %962 = vrot.lane.b32.xlu0 %v945, 16
      %v963 = vpop.permute.xlu0 %962
      %964 = vrot.lane.b32.xlu0 %v947, 16
      %v965 = vpop.permute.xlu0 %964
      %966 = vrot.lane.b32.xlu0 %v949, 16
      %v967 = vpop.permute.xlu0 %966
      %968 = vrot.lane.b32.xlu0 %v951, 16
      %v969 = vpop.permute.xlu0 %968
      %970 = vrot.lane.b32.xlu0 %v953, 16
      %v971 = vpop.permute.xlu0 %970
      %972 = vrot.lane.b32.xlu0 %v955, 16
      %v973 = vpop.permute.xlu0 %972
      %974 = vrot.lane.b32.xlu0 %v957, 16
      %v975 = vpop.permute.xlu0 %974
      %976 = vrot.lane.b32.xlu0 %v959, 16
      %v977 = vpop.permute.xlu0 %976
      %v980 = vsel %vm731, %v834, %v923
      %v983 = vsel %vm731, %v835, %v925
      %v986 = vsel %vm731, %v836, %v927
      %v989 = vsel %vm731, %v837, %v929
      %v992 = vsel %vm731, %v838, %v931
      %v995 = vsel %vm731, %v839, %v933
      %v998 = vsel %vm731, %v840, %v935
      %v1001 = vsel %vm731, %v841, %v937
      %v1004 = vsel %vm731, %v842, %v939
      %v1006 = vsel %vm759, %v980, %v961
      %v1008 = vsel %vm759, %v983, %v963
      %v1010 = vsel %vm759, %v986, %v965
      %v1012 = vsel %vm759, %v989, %v967
      %v1014 = vsel %vm759, %v992, %v969
      %v1016 = vsel %vm759, %v995, %v971
      %v1018 = vsel %vm759, %v998, %v973
      %v1020 = vsel %vm759, %v1001, %v975
      %v1022 = vsel %vm759, %v1004, %v977
      %s1023 = scalar_lea.vmem %s3, 12
      %v1024 = vld [vmem:[%s1023] sm:$0xf]
      %v1025 = vld [vmem:[%s1023 + $0x4] sm:$0xf]
      %v1026 = vld [vmem:[%s1023 + $0x8] sm:$0xf]
      %vm1027 = vsmask.f32 4352
      %v1028 = vshrl.u32 %v1006, 16
      %v1030 = vrot.slane %v1028, 3
      %v1031 = vshll.u32 %v1006, 16
      %v1033 = vrot.slane %v1031, 4
      %v1034 = vor.u32 %v1030, %v1033
      %v1035 = vshrl.u32 %v1008, 16
      %v1037 = vrot.slane %v1035, 3
      %v1038 = vshll.u32 %v1008, 16
      %v1040 = vrot.slane %v1038, 4
      %v1041 = vor.u32 %v1037, %v1040
      %v1042 = vsel %vm1027, %v1034, %v1041
      %v1043 = vshrl.u32 %v1010, 16
      %v1045 = vrot.slane %v1043, 3
      %v1046 = vshll.u32 %v1010, 16
      %v1048 = vrot.slane %v1046, 4
      %v1049 = vor.u32 %v1045, %v1048
      %v1050 = vsel %vm1027, %v1041, %v1049
      %v1051 = vshrl.u32 %v1012, 16
      %v1053 = vrot.slane %v1051, 3
      %v1054 = vshll.u32 %v1012, 16
      %v1056 = vrot.slane %v1054, 4
      %v1057 = vor.u32 %v1053, %v1056
      %v1058 = vsel %vm1027, %v1049, %v1057
      %v1059 = vshrl.u32 %v1014, 16
      %v1061 = vrot.slane %v1059, 3
      %v1062 = vshll.u32 %v1014, 16
      %v1064 = vrot.slane %v1062, 4
      %v1065 = vor.u32 %v1061, %v1064
      %v1066 = vsel %vm1027, %v1057, %v1065
      %v1067 = vshrl.u32 %v1016, 16
      %v1069 = vrot.slane %v1067, 3
      %v1070 = vshll.u32 %v1016, 16
      %v1072 = vrot.slane %v1070, 4
      %v1073 = vor.u32 %v1069, %v1072
      %v1074 = vsel %vm1027, %v1065, %v1073
      %v1075 = vshrl.u32 %v1018, 16
      %v1077 = vrot.slane %v1075, 3
      %v1078 = vshll.u32 %v1018, 16
      %v1080 = vrot.slane %v1078, 4
      %v1081 = vor.u32 %v1077, %v1080
      %v1082 = vsel %vm1027, %v1073, %v1081
      %v1083 = vshrl.u32 %v1020, 16
      %v1085 = vrot.slane %v1083, 3
      %v1086 = vshll.u32 %v1020, 16
      %v1088 = vrot.slane %v1086, 4
      %v1089 = vor.u32 %v1085, %v1088
      %v1090 = vsel %vm1027, %v1081, %v1089
      %v1091 = vshrl.u32 %v1022, 16
      %v1093 = vrot.slane %v1091, 3
      %v1094 = vshll.u32 %v1022, 16
      %v1096 = vrot.slane %v1094, 4
      %v1097 = vor.u32 %v1093, %v1096
      %v1098 = vsel %vm1027, %v1089, %v1097
      %v1102 = vunpack.c.l.b16 %v1024
      %v1103 = vunpack.c.l.b16 %v1025
      %v1104 = vunpack.c.l.b16 %v1026
      %v1105 = vpack.c.b16 %v1103, %v1102
      %v1106 = vpack.c.b16 %v1104, %v1104
      %vm1108 = vcmask 195584
      %v1110 = vsel %vm1108, %v1042, 0
      %v1113 = vsel %vm1108, %v1050, 0
      %v1116 = vsel %vm1108, %v1058, 0
      %v1119 = vsel %vm1108, %v1066, 0
      %v1122 = vsel %vm1108, %v1074, 0
      %v1125 = vsel %vm1108, %v1082, 0
      %v1128 = vsel %vm1108, %v1090, 0
      %v1131 = vsel %vm1108, %v1098, 0
      %vm1133 = vcmask 1043456
      %v1135 = vsel %vm1133, %v1106, 0
      %1137 = vmatpush.bf16.msra.mxu0 0
      %1138 = vmatpush.bf16.msra.mxu0 0
      %1139 = vmatpush.bf16.msra.mxu0 0
      %1140 = vmatpush.bf16.msra.mxu0 0
      %1141 = vmatpush.bf16.msra.mxu0 0
      %1142 = vmatpush.bf16.msra.mxu0 0
      %1143 = vmatpush.bf16.msra.mxu0 %v1135
      %1144 = vmatpush.bf16.msra.mxu0 %v1105
      %1145 = vmatmul.bf16.gmra.mxu0 %v1110
      %v1146 = vpop.f32.mrf.mxu0
      %v1147 = vadd.f32 0.0, %v1146
      %v1148 = vpop.f32.mrf.mxu0
      %v1149 = vadd.f32 0.0, %v1148
      %1150 = vmatmul.bf16.gmra.mxu0 %v1113
      %v1151 = vpop.f32.mrf.mxu0
      %v1152 = vadd.f32 0.0, %v1151
      %v1153 = vpop.f32.mrf.mxu0
      %v1154 = vadd.f32 0.0, %v1153
      %1155 = vmatmul.bf16.gmra.mxu0 %v1116
      %v1156 = vpop.f32.mrf.mxu0
      %v1157 = vadd.f32 0.0, %v1156
      %v1158 = vpop.f32.mrf.mxu0
      %v1159 = vadd.f32 0.0, %v1158
      %1160 = vmatmul.bf16.gmra.mxu0 %v1119
      %v1161 = vpop.f32.mrf.mxu0
      %v1162 = vadd.f32 0.0, %v1161
      %v1163 = vpop.f32.mrf.mxu0
      %v1164 = vadd.f32 0.0, %v1163
      %1165 = vmatmul.bf16.gmra.mxu0 %v1122
      %v1166 = vpop.f32.mrf.mxu0
      %v1167 = vadd.f32 0.0, %v1166
      %v1168 = vpop.f32.mrf.mxu0
      %v1169 = vadd.f32 0.0, %v1168
      %1170 = vmatmul.bf16.gmra.mxu0 %v1125
      %v1171 = vpop.f32.mrf.mxu0
      %v1172 = vadd.f32 0.0, %v1171
      %v1173 = vpop.f32.mrf.mxu0
      %v1174 = vadd.f32 0.0, %v1173
      %1175 = vmatmul.bf16.gmra.mxu0 %v1128
      %v1176 = vpop.f32.mrf.mxu0
      %v1177 = vadd.f32 0.0, %v1176
      %v1178 = vpop.f32.mrf.mxu0
      %v1179 = vadd.f32 0.0, %v1178
      %1180 = vmatmul.bf16.gmra.mxu0 %v1131
      %v1181 = vpop.f32.mrf.mxu0
      %v1182 = vadd.f32 0.0, %v1181
      %v1183 = vpop.f32.mrf.mxu0
      %v1184 = vadd.f32 0.0, %v1183
      %1185 = vdwg.mxu0
      %v1186 = vshrl.u32 %v761, 16
      %v1188 = vrot.slane %v1186, 3
      %v1189 = vshll.u32 %v761, 16
      %v1191 = vrot.slane %v1189, 4
      %v1192 = vor.u32 %v1188, %v1191
      %v1193 = vshrl.u32 %v763, 16
      %v1195 = vrot.slane %v1193, 3
      %v1196 = vshll.u32 %v763, 16
      %v1198 = vrot.slane %v1196, 4
      %v1199 = vor.u32 %v1195, %v1198
      %v1200 = vsel %vm1027, %v1192, %v1199
      %v1201 = vshrl.u32 %v765, 16
      %v1203 = vrot.slane %v1201, 3
      %v1204 = vshll.u32 %v765, 16
      %v1206 = vrot.slane %v1204, 4
      %v1207 = vor.u32 %v1203, %v1206
      %v1208 = vsel %vm1027, %v1199, %v1207
      %v1209 = vshrl.u32 %v767, 16
      %v1211 = vrot.slane %v1209, 3
      %v1212 = vshll.u32 %v767, 16
      %v1214 = vrot.slane %v1212, 4
      %v1215 = vor.u32 %v1211, %v1214
      %v1216 = vsel %vm1027, %v1207, %v1215
      %v1217 = vshrl.u32 %v769, 16
      %v1219 = vrot.slane %v1217, 3
      %v1220 = vshll.u32 %v769, 16
      %v1222 = vrot.slane %v1220, 4
      %v1223 = vor.u32 %v1219, %v1222
      %v1224 = vsel %vm1027, %v1215, %v1223
      %v1225 = vshrl.u32 %v771, 16
      %v1227 = vrot.slane %v1225, 3
      %v1228 = vshll.u32 %v771, 16
      %v1230 = vrot.slane %v1228, 4
      %v1231 = vor.u32 %v1227, %v1230
      %v1232 = vsel %vm1027, %v1223, %v1231
      %v1233 = vshrl.u32 %v773, 16
      %v1235 = vrot.slane %v1233, 3
      %v1236 = vshll.u32 %v773, 16
      %v1238 = vrot.slane %v1236, 4
      %v1239 = vor.u32 %v1235, %v1238
      %v1240 = vsel %vm1027, %v1231, %v1239
      %v1241 = vshrl.u32 %v775, 16
      %v1243 = vrot.slane %v1241, 3
      %v1244 = vshll.u32 %v775, 16
      %v1246 = vrot.slane %v1244, 4
      %v1247 = vor.u32 %v1243, %v1246
      %v1248 = vsel %vm1027, %v1239, %v1247
      %v1249 = vshrl.u32 %v777, 16
      %v1251 = vrot.slane %v1249, 3
      %v1252 = vshll.u32 %v777, 16
      %v1254 = vrot.slane %v1252, 4
      %v1255 = vor.u32 %v1251, %v1254
      %v1256 = vsel %vm1027, %v1247, %v1255
      %v1260 = vunpack.c.l.b16 %v778
      %v1261 = vunpack.c.l.b16 %v779
      %v1262 = vunpack.c.l.b16 %v780
      %v1263 = vpack.c.b16 %v1261, %v1260
      %v1264 = vpack.c.b16 %v1262, %v1262
      %v1267 = vsel %vm1108, %v1200, 0
      %v1270 = vsel %vm1108, %v1208, 0
      %v1273 = vsel %vm1108, %v1216, 0
      %v1276 = vsel %vm1108, %v1224, 0
      %v1279 = vsel %vm1108, %v1232, 0
      %v1282 = vsel %vm1108, %v1240, 0
      %v1285 = vsel %vm1108, %v1248, 0
      %v1288 = vsel %vm1108, %v1256, 0
      %v1291 = vsel %vm1133, %v1264, 0
      %1293 = vmatpush.bf16.msra.mxu0 0
      %1294 = vmatpush.bf16.msra.mxu0 0
      %1295 = vmatpush.bf16.msra.mxu0 0
      %1296 = vmatpush.bf16.msra.mxu0 0
      %1297 = vmatpush.bf16.msra.mxu0 0
      %1298 = vmatpush.bf16.msra.mxu0 0
      %1299 = vmatpush.bf16.msra.mxu0 %v1291
      %1300 = vmatpush.bf16.msra.mxu0 %v1263
      %1301 = vmatmul.bf16.gmra.mxu0 %v1267
      %v1302 = vpop.f32.mrf.mxu0
      %v1303 = vadd.f32 %v1147, %v1302
      %v1304 = vpop.f32.mrf.mxu0
      %v1305 = vadd.f32 %v1149, %v1304
      %1306 = vmatmul.bf16.gmra.mxu0 %v1270
      %v1307 = vpop.f32.mrf.mxu0
      %v1308 = vadd.f32 %v1152, %v1307
      %v1309 = vpop.f32.mrf.mxu0
      %v1310 = vadd.f32 %v1154, %v1309
      %1311 = vmatmul.bf16.gmra.mxu0 %v1273
      %v1312 = vpop.f32.mrf.mxu0
      %v1313 = vadd.f32 %v1157, %v1312
      %v1314 = vpop.f32.mrf.mxu0
      %v1315 = vadd.f32 %v1159, %v1314
      %1316 = vmatmul.bf16.gmra.mxu0 %v1276
      %v1317 = vpop.f32.mrf.mxu0
      %v1318 = vadd.f32 %v1162, %v1317
      %v1319 = vpop.f32.mrf.mxu0
      %v1320 = vadd.f32 %v1164, %v1319
      %1321 = vmatmul.bf16.gmra.mxu0 %v1279
      %v1322 = vpop.f32.mrf.mxu0
      %v1323 = vadd.f32 %v1167, %v1322
      %v1324 = vpop.f32.mrf.mxu0
      %v1325 = vadd.f32 %v1169, %v1324
      %1326 = vmatmul.bf16.gmra.mxu0 %v1282
      %v1327 = vpop.f32.mrf.mxu0
      %v1328 = vadd.f32 %v1172, %v1327
      %v1329 = vpop.f32.mrf.mxu0
      %v1330 = vadd.f32 %v1174, %v1329
      %1331 = vmatmul.bf16.gmra.mxu0 %v1285
      %v1332 = vpop.f32.mrf.mxu0
      %v1333 = vadd.f32 %v1177, %v1332
      %v1334 = vpop.f32.mrf.mxu0
      %v1335 = vadd.f32 %v1179, %v1334
      %1336 = vmatmul.bf16.gmra.mxu0 %v1288
      %v1337 = vpop.f32.mrf.mxu0
      %v1338 = vadd.f32 %v1182, %v1337
      %v1339 = vpop.f32.mrf.mxu0
      %v1340 = vadd.f32 %v1184, %v1339
      %1341 = vdwg.mxu0
      %v1342 = vld [vmem:[%s378 + $0x4] sm:$0xf]
      %v1343 = vld [vmem:[%s378 + $0x8] sm:$0xf]
      %v1344 = vld [vmem:[%s378 + $0xc] sm:$0xf]
      %v1345 = vld [vmem:[%s378 + $0x10] sm:$0xf]
      %v1346 = vld [vmem:[%s378 + $0x14] sm:$0xf]
      %v1347 = vld [vmem:[%s378 + $0x18] sm:$0xf]
      %v1348 = vld [vmem:[%s378 + $0x1c] sm:$0xf]
      %v1349 = vld [vmem:[%s378 + $0x20] sm:$0xf]
      %v1350 = vld [vmem:[%s378 + $0x24] sm:$0xf]
      %v1351 = vld [vmem:[%s378 + $0x28] sm:$0xf]
      %v1352 = vld [vmem:[%s378 + $0x2c] sm:$0xf]
      %v1353 = vld [vmem:[%s378 + $0x30] sm:$0xf]
      %v1354 = vld [vmem:[%s378 + $0x34] sm:$0xf]
      %v1355 = vld [vmem:[%s378 + $0x38] sm:$0xf]
      %v1356 = vld [vmem:[%s378 + $0x3c] sm:$0xf]
      %v1357 = vld [vmem:[%s378 + $0x40] sm:$0xf]
      %v1358 = vld [vmem:[%s378 + $0x44] sm:$0xf]
      %v1359 = vld [vmem:[%s378 + $0x48] sm:$0xf]
      %v1377 = vunpack.c.l.b16 %v1342
      %v1378 = vunpack.c.l.b16 %v1343
      %v1379 = vunpack.c.l.b16 %v1344
      %v1380 = vunpack.c.l.b16 %v1345
      %v1381 = vunpack.c.l.b16 %v1346
      %v1382 = vunpack.c.l.b16 %v1347
      %v1383 = vunpack.c.l.b16 %v1348
      %v1384 = vunpack.c.l.b16 %v1349
      %v1385 = vunpack.c.l.b16 %v1350
      %v1386 = vunpack.c.l.b16 %v1351
      %v1387 = vunpack.c.l.b16 %v1352
      %v1388 = vunpack.c.l.b16 %v1353
      %v1389 = vunpack.c.l.b16 %v1354
      %v1390 = vunpack.c.l.b16 %v1355
      %v1391 = vunpack.c.l.b16 %v1356
      %v1392 = vunpack.c.l.b16 %v1357
      %v1393 = vunpack.c.l.b16 %v1358
      %v1394 = vpack.c.b16 %v1378, %v1377
      %v1395 = vpack.c.b16 %v1380, %v1379
      %v1396 = vpack.c.b16 %v1382, %v1381
      %v1397 = vpack.c.b16 %v1384, %v1383
      %v1398 = vpack.c.b16 %v1386, %v1385
      %v1399 = vpack.c.b16 %v1388, %v1387
      %v1400 = vpack.c.b16 %v1390, %v1389
      %v1401 = vpack.c.b16 %v1392, %v1391
      %v1402 = vpack.c.b16 %v1393, %v1393
      %v1403 = vpack.c.b16 %v1379, %v1378
      %v1404 = vpack.c.b16 %v1381, %v1380
      %v1405 = vpack.c.b16 %v1383, %v1382
      %v1406 = vpack.c.b16 %v1385, %v1384
      %v1407 = vpack.c.b16 %v1387, %v1386
      %v1408 = vpack.c.b16 %v1389, %v1388
      %v1409 = vpack.c.b16 %v1391, %v1390
      %v1410 = vpack.c.b16 %v1393, %v1392
      %v1412 = vshrl.u32 %v1403, 16
      %v1414 = vrot.slane %v1412, 4
      %v1415 = vshll.u32 %v1403, 16
      %v1417 = vrot.slane %v1415, 5
      %v1418 = vor.u32 %v1414, %v1417
      %v1420 = vshrl.u32 %v1404, 16
      %v1422 = vrot.slane %v1420, 4
      %v1423 = vshll.u32 %v1404, 16
      %v1425 = vrot.slane %v1423, 5
      %v1426 = vor.u32 %v1422, %v1425
      %v1427 = vsel %vm602, %v1418, %v1426
      %v1429 = vshrl.u32 %v1405, 16
      %v1431 = vrot.slane %v1429, 4
      %v1432 = vshll.u32 %v1405, 16
      %v1434 = vrot.slane %v1432, 5
      %v1435 = vor.u32 %v1431, %v1434
      %v1436 = vsel %vm602, %v1426, %v1435
      %v1438 = vshrl.u32 %v1406, 16
      %v1440 = vrot.slane %v1438, 4
      %v1441 = vshll.u32 %v1406, 16
      %v1443 = vrot.slane %v1441, 5
      %v1444 = vor.u32 %v1440, %v1443
      %v1445 = vsel %vm602, %v1435, %v1444
      %v1447 = vshrl.u32 %v1407, 16
      %v1449 = vrot.slane %v1447, 4
      %v1450 = vshll.u32 %v1407, 16
      %v1452 = vrot.slane %v1450, 5
      %v1453 = vor.u32 %v1449, %v1452
      %v1454 = vsel %vm602, %v1444, %v1453
      %v1456 = vshrl.u32 %v1408, 16
      %v1458 = vrot.slane %v1456, 4
      %v1459 = vshll.u32 %v1408, 16
      %v1461 = vrot.slane %v1459, 5
      %v1462 = vor.u32 %v1458, %v1461
      %v1463 = vsel %vm602, %v1453, %v1462
      %v1465 = vshrl.u32 %v1409, 16
      %v1467 = vrot.slane %v1465, 4
      %v1468 = vshll.u32 %v1409, 16
      %v1470 = vrot.slane %v1468, 5
      %v1471 = vor.u32 %v1467, %v1470
      %v1472 = vsel %vm602, %v1462, %v1471
      %v1474 = vshrl.u32 %v1410, 16
      %v1476 = vrot.slane %v1474, 4
      %v1477 = vshll.u32 %v1410, 16
      %v1479 = vrot.slane %v1477, 5
      %v1480 = vor.u32 %v1476, %v1479
      %v1481 = vsel %vm602, %v1471, %v1480
      %1482 = vrot.lane.b32.xlu0 %v1418, 8
      %v1483 = vpop.permute.xlu0 %1482
      %1484 = vrot.lane.b32.xlu0 %v1427, 8
      %v1485 = vpop.permute.xlu0 %1484
      %1486 = vrot.lane.b32.xlu0 %v1436, 8
      %v1487 = vpop.permute.xlu0 %1486
      %1488 = vrot.lane.b32.xlu0 %v1445, 8
      %v1489 = vpop.permute.xlu0 %1488
      %1490 = vrot.lane.b32.xlu0 %v1454, 8
      %v1491 = vpop.permute.xlu0 %1490
      %1492 = vrot.lane.b32.xlu0 %v1463, 8
      %v1493 = vpop.permute.xlu0 %1492
      %1494 = vrot.lane.b32.xlu0 %v1472, 8
      %v1495 = vpop.permute.xlu0 %1494
      %1496 = vrot.lane.b32.xlu0 %v1481, 8
      %v1497 = vpop.permute.xlu0 %1496
      %1498 = vrot.lane.b32.xlu0 %v1480, 8
      %v1499 = vpop.permute.xlu0 %1498
      %v1501 = vunpack.c.l.b16 %v1359
      %v1502 = vpack.c.b16 %v1501, %v1501
      %v1503 = vrot.slane %v1403, 5
      %v1504 = vrot.slane %v1404, 5
      %v1505 = vsel %vm695, %v1503, %v1504
      %v1506 = vrot.slane %v1405, 5
      %v1507 = vsel %vm695, %v1504, %v1506
      %v1508 = vrot.slane %v1406, 5
      %v1509 = vsel %vm695, %v1506, %v1508
      %v1510 = vrot.slane %v1407, 5
      %v1511 = vsel %vm695, %v1508, %v1510
      %v1512 = vrot.slane %v1408, 5
      %v1513 = vsel %vm695, %v1510, %v1512
      %v1514 = vrot.slane %v1409, 5
      %v1515 = vsel %vm695, %v1512, %v1514
      %v1516 = vrot.slane %v1410, 5
      %v1517 = vsel %vm695, %v1514, %v1516
      %v1518 = vrot.slane %v1502, 5
      %v1519 = vsel %vm695, %v1516, %v1518
      %1520 = vrot.lane.b32.xlu0 %v1503, 16
      %v1521 = vpop.permute.xlu0 %1520
      %1522 = vrot.lane.b32.xlu0 %v1505, 16
      %v1523 = vpop.permute.xlu0 %1522
      %1524 = vrot.lane.b32.xlu0 %v1507, 16
      %v1525 = vpop.permute.xlu0 %1524
      %1526 = vrot.lane.b32.xlu0 %v1509, 16
      %v1527 = vpop.permute.xlu0 %1526
      %1528 = vrot.lane.b32.xlu0 %v1511, 16
      %v1529 = vpop.permute.xlu0 %1528
      %1530 = vrot.lane.b32.xlu0 %v1513, 16
      %v1531 = vpop.permute.xlu0 %1530
      %1532 = vrot.lane.b32.xlu0 %v1515, 16
      %v1533 = vpop.permute.xlu0 %1532
      %1534 = vrot.lane.b32.xlu0 %v1517, 16
      %v1535 = vpop.permute.xlu0 %1534
      %1536 = vrot.lane.b32.xlu0 %v1519, 16
      %v1537 = vpop.permute.xlu0 %1536
      %v1540 = vsel %vm731, %v1394, %v1483
      %v1543 = vsel %vm731, %v1395, %v1485
      %v1546 = vsel %vm731, %v1396, %v1487
      %v1549 = vsel %vm731, %v1397, %v1489
      %v1552 = vsel %vm731, %v1398, %v1491
      %v1555 = vsel %vm731, %v1399, %v1493
      %v1558 = vsel %vm731, %v1400, %v1495
      %v1561 = vsel %vm731, %v1401, %v1497
      %v1564 = vsel %vm731, %v1402, %v1499
      %v1566 = vsel %vm759, %v1540, %v1521
      %v1568 = vsel %vm759, %v1543, %v1523
      %v1570 = vsel %vm759, %v1546, %v1525
      %v1572 = vsel %vm759, %v1549, %v1527
      %v1574 = vsel %vm759, %v1552, %v1529
      %v1576 = vsel %vm759, %v1555, %v1531
      %v1578 = vsel %vm759, %v1558, %v1533
      %v1580 = vsel %vm759, %v1561, %v1535
      %v1582 = vsel %vm759, %v1564, %v1537
      %s1583 = scalar_lea.vmem %s3, 24
      %v1584 = vld [vmem:[%s1583] sm:$0xf]
      %v1585 = vld [vmem:[%s1583 + $0x4] sm:$0xf]
      %v1586 = vld [vmem:[%s1583 + $0x8] sm:$0xf]
      %v1587 = vshrl.u32 %v1566, 16
      %v1589 = vrot.slane %v1587, 3
      %v1590 = vshll.u32 %v1566, 16
      %v1592 = vrot.slane %v1590, 4
      %v1593 = vor.u32 %v1589, %v1592
      %v1594 = vshrl.u32 %v1568, 16
      %v1596 = vrot.slane %v1594, 3
      %v1597 = vshll.u32 %v1568, 16
      %v1599 = vrot.slane %v1597, 4
      %v1600 = vor.u32 %v1596, %v1599
      %v1601 = vsel %vm1027, %v1593, %v1600
      %v1602 = vshrl.u32 %v1570, 16
      %v1604 = vrot.slane %v1602, 3
      %v1605 = vshll.u32 %v1570, 16
      %v1607 = vrot.slane %v1605, 4
      %v1608 = vor.u32 %v1604, %v1607
      %v1609 = vsel %vm1027, %v1600, %v1608
      %v1610 = vshrl.u32 %v1572, 16
      %v1612 = vrot.slane %v1610, 3
      %v1613 = vshll.u32 %v1572, 16
      %v1615 = vrot.slane %v1613, 4
      %v1616 = vor.u32 %v1612, %v1615
      %v1617 = vsel %vm1027, %v1608, %v1616
      %v1618 = vshrl.u32 %v1574, 16
      %v1620 = vrot.slane %v1618, 3
      %v1621 = vshll.u32 %v1574, 16
      %v1623 = vrot.slane %v1621, 4
      %v1624 = vor.u32 %v1620, %v1623
      %v1625 = vsel %vm1027, %v1616, %v1624
      %v1626 = vshrl.u32 %v1576, 16
      %v1628 = vrot.slane %v1626, 3
      %v1629 = vshll.u32 %v1576, 16
      %v1631 = vrot.slane %v1629, 4
      %v1632 = vor.u32 %v1628, %v1631
      %v1633 = vsel %vm1027, %v1624, %v1632
      %v1634 = vshrl.u32 %v1578, 16
      %v1636 = vrot.slane %v1634, 3
      %v1637 = vshll.u32 %v1578, 16
      %v1639 = vrot.slane %v1637, 4
      %v1640 = vor.u32 %v1636, %v1639
      %v1641 = vsel %vm1027, %v1632, %v1640
      %v1642 = vshrl.u32 %v1580, 16
      %v1644 = vrot.slane %v1642, 3
      %v1645 = vshll.u32 %v1580, 16
      %v1647 = vrot.slane %v1645, 4
      %v1648 = vor.u32 %v1644, %v1647
      %v1649 = vsel %vm1027, %v1640, %v1648
      %v1650 = vshrl.u32 %v1582, 16
      %v1652 = vrot.slane %v1650, 3
      %v1653 = vshll.u32 %v1582, 16
      %v1655 = vrot.slane %v1653, 4
      %v1656 = vor.u32 %v1652, %v1655
      %v1657 = vsel %vm1027, %v1648, %v1656
      %v1661 = vunpack.c.l.b16 %v1584
      %v1662 = vunpack.c.l.b16 %v1585
      %v1663 = vunpack.c.l.b16 %v1586
      %v1664 = vpack.c.b16 %v1662, %v1661
      %v1665 = vpack.c.b16 %v1663, %v1663
      %v1668 = vsel %vm1108, %v1601, 0
      %v1671 = vsel %vm1108, %v1609, 0
      %v1674 = vsel %vm1108, %v1617, 0
      %v1677 = vsel %vm1108, %v1625, 0
      %v1680 = vsel %vm1108, %v1633, 0
      %v1683 = vsel %vm1108, %v1641, 0
      %v1686 = vsel %vm1108, %v1649, 0
      %v1689 = vsel %vm1108, %v1657, 0
      %v1692 = vsel %vm1133, %v1665, 0
      %1694 = vmatpush.bf16.msra.mxu0 0
      %1695 = vmatpush.bf16.msra.mxu0 0
      %1696 = vmatpush.bf16.msra.mxu0 0
      %1697 = vmatpush.bf16.msra.mxu0 0
      %1698 = vmatpush.bf16.msra.mxu0 0
      %1699 = vmatpush.bf16.msra.mxu0 0
      %1700 = vmatpush.bf16.msra.mxu0 %v1692
      %1701 = vmatpush.bf16.msra.mxu0 %v1664
      %1702 = vmatmul.bf16.gmra.mxu0 %v1668
      %v1703 = vpop.f32.mrf.mxu0
      %v1704 = vadd.f32 0.0, %v1703
      %v1705 = vpop.f32.mrf.mxu0
      %v1706 = vadd.f32 0.0, %v1705
      %1707 = vmatmul.bf16.gmra.mxu0 %v1671
      %v1708 = vpop.f32.mrf.mxu0
      %v1709 = vadd.f32 0.0, %v1708
      %v1710 = vpop.f32.mrf.mxu0
      %v1711 = vadd.f32 0.0, %v1710
      %1712 = vmatmul.bf16.gmra.mxu0 %v1674
      %v1713 = vpop.f32.mrf.mxu0
      %v1714 = vadd.f32 0.0, %v1713
      %v1715 = vpop.f32.mrf.mxu0
      %v1716 = vadd.f32 0.0, %v1715
      %1717 = vmatmul.bf16.gmra.mxu0 %v1677
      %v1718 = vpop.f32.mrf.mxu0
      %v1719 = vadd.f32 0.0, %v1718
      %v1720 = vpop.f32.mrf.mxu0
      %v1721 = vadd.f32 0.0, %v1720
      %1722 = vmatmul.bf16.gmra.mxu0 %v1680
      %v1723 = vpop.f32.mrf.mxu0
      %v1724 = vadd.f32 0.0, %v1723
      %v1725 = vpop.f32.mrf.mxu0
      %v1726 = vadd.f32 0.0, %v1725
      %1727 = vmatmul.bf16.gmra.mxu0 %v1683
      %v1728 = vpop.f32.mrf.mxu0
      %v1729 = vadd.f32 0.0, %v1728
      %v1730 = vpop.f32.mrf.mxu0
      %v1731 = vadd.f32 0.0, %v1730
      %1732 = vmatmul.bf16.gmra.mxu0 %v1686
      %v1733 = vpop.f32.mrf.mxu0
      %v1734 = vadd.f32 0.0, %v1733
      %v1735 = vpop.f32.mrf.mxu0
      %v1736 = vadd.f32 0.0, %v1735
      %1737 = vmatmul.bf16.gmra.mxu0 %v1689
      %v1738 = vpop.f32.mrf.mxu0
      %v1739 = vadd.f32 0.0, %v1738
      %v1740 = vpop.f32.mrf.mxu0
      %v1741 = vadd.f32 0.0, %v1740
      %1742 = vdwg.mxu0
      %v1743 = vadd.f32 %v1303, %v1704
      %v1744 = vadd.f32 %v1305, %v1706
      %v1745 = vadd.f32 %v1308, %v1709
      %v1746 = vadd.f32 %v1310, %v1711
      %v1747 = vadd.f32 %v1313, %v1714
      %v1748 = vadd.f32 %v1315, %v1716
      %v1749 = vadd.f32 %v1318, %v1719
      %v1750 = vadd.f32 %v1320, %v1721
      %v1751 = vadd.f32 %v1323, %v1724
      %v1752 = vadd.f32 %v1325, %v1726
      %v1753 = vadd.f32 %v1328, %v1729
      %v1754 = vadd.f32 %v1330, %v1731
      %v1755 = vadd.f32 %v1333, %v1734
      %v1756 = vadd.f32 %v1335, %v1736
      %v1757 = vadd.f32 %v1338, %v1739
      %v1758 = vadd.f32 %v1340, %v1741
      %v1759 = vlaneseq
      %v1760 = vshrl.u32 %v1759, 7
      %v1761 = vadd.s32 %v1760, 8
      %v1762 = vadd.s32 %v1760, 16
      %v1763 = vadd.s32 %v1760, 24
      %v1764 = vadd.s32 %v1760, 32
      %v1765 = vadd.s32 %v1760, 40
      %v1766 = vadd.s32 %v1760, 48
      %v1767 = vadd.s32 %v1760, 56
      %v1768 = vadd.s32 %v1760, 64
      %v1769 = vadd.s32 %v1760, 72
      %v1770 = vadd.s32 %v1760, 80
      %v1771 = vadd.s32 %v1760, 88
      %v1772 = vadd.s32 %v1760, 96
      %v1773 = vadd.s32 %v1760, 104
      %v1774 = vadd.s32 %v1760, 112
      %v1775 = vadd.s32 %v1760, 120
      %vm1776 = vcmp.lt.s32.totalorder %v1760, 0
      %v1777 = vsub.s32 0, %v1760
      %v1778 = vsel %vm1776, %v1777, %v1760
      %v1779 = vshrl.u32 %v1778, 4
      %v1780 = vand.u32 %v1778, 15
      %v1781 = vsub.s32 0, %v1780
      %v1782 = vsel %vm1776, %v1781, %v1780
      %vm1783 = vcmp.lt.s32.totalorder %v1761, 0
      %v1784 = vsub.s32 0, %v1761
      %v1785 = vsel %vm1783, %v1784, %v1761
      %v1786 = vshrl.u32 %v1785, 4
      %v1787 = vand.u32 %v1785, 15
      %v1788 = vsub.s32 0, %v1787
      %v1789 = vsel %vm1783, %v1788, %v1787
      %vm1790 = vcmp.lt.s32.totalorder %v1762, 0
      %v1791 = vsub.s32 0, %v1762
      %v1792 = vsel %vm1790, %v1791, %v1762
      %v1793 = vshrl.u32 %v1792, 4
      %v1794 = vand.u32 %v1792, 15
      %v1795 = vsub.s32 0, %v1794
      %v1796 = vsel %vm1790, %v1795, %v1794
      %vm1797 = vcmp.lt.s32.totalorder %v1763, 0
      %v1798 = vsub.s32 0, %v1763
      %v1799 = vsel %vm1797, %v1798, %v1763
      %v1800 = vshrl.u32 %v1799, 4
      %v1801 = vand.u32 %v1799, 15
      %v1802 = vsub.s32 0, %v1801
      %v1803 = vsel %vm1797, %v1802, %v1801
      %vm1804 = vcmp.lt.s32.totalorder %v1764, 0
      %v1805 = vsub.s32 0, %v1764
      %v1806 = vsel %vm1804, %v1805, %v1764
      %v1807 = vshrl.u32 %v1806, 4
      %v1808 = vand.u32 %v1806, 15
      %v1809 = vsub.s32 0, %v1808
      %v1810 = vsel %vm1804, %v1809, %v1808
      %vm1811 = vcmp.lt.s32.totalorder %v1765, 0
      %v1812 = vsub.s32 0, %v1765
      %v1813 = vsel %vm1811, %v1812, %v1765
      %v1814 = vshrl.u32 %v1813, 4
      %v1815 = vand.u32 %v1813, 15
      %v1816 = vsub.s32 0, %v1815
      %v1817 = vsel %vm1811, %v1816, %v1815
      %vm1818 = vcmp.lt.s32.totalorder %v1766, 0
      %v1819 = vsub.s32 0, %v1766
      %v1820 = vsel %vm1818, %v1819, %v1766
      %v1821 = vshrl.u32 %v1820, 4
      %v1822 = vand.u32 %v1820, 15
      %v1823 = vsub.s32 0, %v1822
      %v1824 = vsel %vm1818, %v1823, %v1822
      %vm1825 = vcmp.lt.s32.totalorder %v1767, 0
      %v1826 = vsub.s32 0, %v1767
      %v1827 = vsel %vm1825, %v1826, %v1767
      %v1828 = vshrl.u32 %v1827, 4
      %v1829 = vand.u32 %v1827, 15
      %v1830 = vsub.s32 0, %v1829
      %v1831 = vsel %vm1825, %v1830, %v1829
      %vm1832 = vcmp.lt.s32.totalorder %v1768, 0
      %v1833 = vsub.s32 0, %v1768
      %v1834 = vsel %vm1832, %v1833, %v1768
      %v1835 = vshrl.u32 %v1834, 4
      %v1836 = vand.u32 %v1834, 15
      %v1837 = vsub.s32 0, %v1836
      %v1838 = vsel %vm1832, %v1837, %v1836
      %vm1839 = vcmp.lt.s32.totalorder %v1769, 0
      %v1840 = vsub.s32 0, %v1769
      %v1841 = vsel %vm1839, %v1840, %v1769
      %v1842 = vshrl.u32 %v1841, 4
      %v1843 = vand.u32 %v1841, 15
      %v1844 = vsub.s32 0, %v1843
      %v1845 = vsel %vm1839, %v1844, %v1843
      %vm1846 = vcmp.lt.s32.totalorder %v1770, 0
      %v1847 = vsub.s32 0, %v1770
      %v1848 = vsel %vm1846, %v1847, %v1770
      %v1849 = vshrl.u32 %v1848, 4
      %v1850 = vand.u32 %v1848, 15
      %v1851 = vsub.s32 0, %v1850
      %v1852 = vsel %vm1846, %v1851, %v1850
      %vm1853 = vcmp.lt.s32.totalorder %v1771, 0
      %v1854 = vsub.s32 0, %v1771
      %v1855 = vsel %vm1853, %v1854, %v1771
      %v1856 = vshrl.u32 %v1855, 4
      %v1857 = vand.u32 %v1855, 15
      %v1858 = vsub.s32 0, %v1857
      %v1859 = vsel %vm1853, %v1858, %v1857
      %vm1860 = vcmp.lt.s32.totalorder %v1772, 0
      %v1861 = vsub.s32 0, %v1772
      %v1862 = vsel %vm1860, %v1861, %v1772
      %v1863 = vshrl.u32 %v1862, 4
      %v1864 = vand.u32 %v1862, 15
      %v1865 = vsub.s32 0, %v1864
      %v1866 = vsel %vm1860, %v1865, %v1864
      %vm1867 = vcmp.lt.s32.totalorder %v1773, 0
      %v1868 = vsub.s32 0, %v1773
      %v1869 = vsel %vm1867, %v1868, %v1773
      %v1870 = vshrl.u32 %v1869, 4
      %v1871 = vand.u32 %v1869, 15
      %v1872 = vsub.s32 0, %v1871
      %v1873 = vsel %vm1867, %v1872, %v1871
      %vm1874 = vcmp.lt.s32.totalorder %v1774, 0
      %v1875 = vsub.s32 0, %v1774
      %v1876 = vsel %vm1874, %v1875, %v1774
      %v1877 = vshrl.u32 %v1876, 4
      %v1878 = vand.u32 %v1876, 15
      %v1879 = vsub.s32 0, %v1878
      %v1880 = vsel %vm1874, %v1879, %v1878
      %vm1881 = vcmp.lt.s32.totalorder %v1775, 0
      %v1882 = vsub.s32 0, %v1775
      %v1883 = vsel %vm1881, %v1882, %v1775
      %v1884 = vshrl.u32 %v1883, 4
      %v1885 = vand.u32 %v1883, 15
      %v1886 = vsub.s32 0, %v1885
      %v1887 = vsel %vm1881, %v1886, %v1885
      %vm1888 = vcmp.ne.s32.totalorder %v1782, 0
      %vm1889 = vcmp.ne.s32.totalorder %v1789, 0
      %vm1890 = vcmp.ne.s32.totalorder %v1796, 0
      %vm1891 = vcmp.ne.s32.totalorder %v1803, 0
      %vm1892 = vcmp.ne.s32.totalorder %v1810, 0
      %vm1893 = vcmp.ne.s32.totalorder %v1817, 0
      %vm1894 = vcmp.ne.s32.totalorder %v1824, 0
      %vm1895 = vcmp.ne.s32.totalorder %v1831, 0
      %vm1896 = vcmp.ne.s32.totalorder %v1838, 0
      %vm1897 = vcmp.ne.s32.totalorder %v1845, 0
      %vm1898 = vcmp.ne.s32.totalorder %v1852, 0
      %vm1899 = vcmp.ne.s32.totalorder %v1859, 0
      %vm1900 = vcmp.ne.s32.totalorder %v1866, 0
      %vm1901 = vcmp.ne.s32.totalorder %v1873, 0
      %vm1902 = vcmp.ne.s32.totalorder %v1880, 0
      %vm1903 = vcmp.ne.s32.totalorder %v1887, 0
      %vm1904 = vcmp.lt.s32.totalorder %v1782, 0
      %vm1905 = vcmp.lt.s32.totalorder %v1789, 0
      %vm1906 = vcmp.lt.s32.totalorder %v1796, 0
      %vm1907 = vcmp.lt.s32.totalorder %v1803, 0
      %vm1908 = vcmp.lt.s32.totalorder %v1810, 0
      %vm1909 = vcmp.lt.s32.totalorder %v1817, 0
      %vm1910 = vcmp.lt.s32.totalorder %v1824, 0
      %vm1911 = vcmp.lt.s32.totalorder %v1831, 0
      %vm1912 = vcmp.lt.s32.totalorder %v1838, 0
      %vm1913 = vcmp.lt.s32.totalorder %v1845, 0
      %vm1914 = vcmp.lt.s32.totalorder %v1852, 0
      %vm1915 = vcmp.lt.s32.totalorder %v1859, 0
      %vm1916 = vcmp.lt.s32.totalorder %v1866, 0
      %vm1917 = vcmp.lt.s32.totalorder %v1873, 0
      %vm1918 = vcmp.lt.s32.totalorder %v1880, 0
      %vm1919 = vcmp.lt.s32.totalorder %v1887, 0
      %vm1920 = vmand %vm1904, %vm1888
      %vm1921 = vmand %vm1905, %vm1889
      %vm1922 = vmand %vm1906, %vm1890
      %vm1923 = vmand %vm1907, %vm1891
      %vm1924 = vmand %vm1908, %vm1892
      %vm1925 = vmand %vm1909, %vm1893
      %vm1926 = vmand %vm1910, %vm1894
      %vm1927 = vmand %vm1911, %vm1895
      %vm1928 = vmand %vm1912, %vm1896
      %vm1929 = vmand %vm1913, %vm1897
      %vm1930 = vmand %vm1914, %vm1898
      %vm1931 = vmand %vm1915, %vm1899
      %vm1932 = vmand %vm1916, %vm1900
      %vm1933 = vmand %vm1917, %vm1901
      %vm1934 = vmand %vm1918, %vm1902
      %vm1935 = vmand %vm1919, %vm1903
      %v1936 = vadd.s32 %v1782, 16
      %v1937 = vadd.s32 %v1789, 16
      %v1938 = vadd.s32 %v1796, 16
      %v1939 = vadd.s32 %v1803, 16
      %v1940 = vadd.s32 %v1810, 16
      %v1941 = vadd.s32 %v1817, 16
      %v1942 = vadd.s32 %v1824, 16
      %v1943 = vadd.s32 %v1831, 16
      %v1944 = vadd.s32 %v1838, 16
      %v1945 = vadd.s32 %v1845, 16
      %v1946 = vadd.s32 %v1852, 16
      %v1947 = vadd.s32 %v1859, 16
      %v1948 = vadd.s32 %v1866, 16
      %v1949 = vadd.s32 %v1873, 16
      %v1950 = vadd.s32 %v1880, 16
      %v1951 = vadd.s32 %v1887, 16
      %v1952 = vsel %vm1920, %v1936, %v1782
      %v1953 = vsel %vm1921, %v1937, %v1789
      %v1954 = vsel %vm1922, %v1938, %v1796
      %v1955 = vsel %vm1923, %v1939, %v1803
      %v1956 = vsel %vm1924, %v1940, %v1810
      %v1957 = vsel %vm1925, %v1941, %v1817
      %v1958 = vsel %vm1926, %v1942, %v1824
      %v1959 = vsel %vm1927, %v1943, %v1831
      %v1960 = vsel %vm1928, %v1944, %v1838
      %v1961 = vsel %vm1929, %v1945, %v1845
      %v1962 = vsel %vm1930, %v1946, %v1852
      %v1963 = vsel %vm1931, %v1947, %v1859
      %v1964 = vsel %vm1932, %v1948, %v1866
      %v1965 = vsel %vm1933, %v1949, %v1873
      %v1966 = vsel %vm1934, %v1950, %v1880
      %v1967 = vsel %vm1935, %v1951, %v1887
      %vm1968 = vcmp.ge.s32.totalorder %v1952, 1
      %vm1969 = vcmp.ge.s32.totalorder %v1953, 1
      %vm1970 = vcmp.ge.s32.totalorder %v1954, 1
      %vm1971 = vcmp.ge.s32.totalorder %v1955, 1
      %vm1972 = vcmp.ge.s32.totalorder %v1956, 1
      %vm1973 = vcmp.ge.s32.totalorder %v1957, 1
      %vm1974 = vcmp.ge.s32.totalorder %v1958, 1
      %vm1975 = vcmp.ge.s32.totalorder %v1959, 1
      %vm1976 = vcmp.ge.s32.totalorder %v1960, 1
      %vm1977 = vcmp.ge.s32.totalorder %v1961, 1
      %vm1978 = vcmp.ge.s32.totalorder %v1962, 1
      %vm1979 = vcmp.ge.s32.totalorder %v1963, 1
      %vm1980 = vcmp.ge.s32.totalorder %v1964, 1
      %vm1981 = vcmp.ge.s32.totalorder %v1965, 1
      %vm1982 = vcmp.ge.s32.totalorder %v1966, 1
      %vm1983 = vcmp.ge.s32.totalorder %v1967, 1
      %vm1984 = vcmp.le.s32.totalorder %v1952, 8
      %vm1985 = vcmp.le.s32.totalorder %v1953, 8
      %vm1986 = vcmp.le.s32.totalorder %v1954, 8
      %vm1987 = vcmp.le.s32.totalorder %v1955, 8
      %vm1988 = vcmp.le.s32.totalorder %v1956, 8
      %vm1989 = vcmp.le.s32.totalorder %v1957, 8
      %vm1990 = vcmp.le.s32.totalorder %v1958, 8
      %vm1991 = vcmp.le.s32.totalorder %v1959, 8
      %vm1992 = vcmp.le.s32.totalorder %v1960, 8
      %vm1993 = vcmp.le.s32.totalorder %v1961, 8
      %vm1994 = vcmp.le.s32.totalorder %v1962, 8
      %vm1995 = vcmp.le.s32.totalorder %v1963, 8
      %vm1996 = vcmp.le.s32.totalorder %v1964, 8
      %vm1997 = vcmp.le.s32.totalorder %v1965, 8
      %vm1998 = vcmp.le.s32.totalorder %v1966, 8
      %vm1999 = vcmp.le.s32.totalorder %v1967, 8
      %vm2000 = vmand %vm1968, %vm1984
      %vm2001 = vmand %vm1969, %vm1985
      %vm2002 = vmand %vm1970, %vm1986
      %vm2003 = vmand %vm1971, %vm1987
      %vm2004 = vmand %vm1972, %vm1988
      %vm2005 = vmand %vm1973, %vm1989
      %vm2006 = vmand %vm1974, %vm1990
      %vm2007 = vmand %vm1975, %vm1991
      %vm2008 = vmand %vm1976, %vm1992
      %vm2009 = vmand %vm1977, %vm1993
      %vm2010 = vmand %vm1978, %vm1994
      %vm2011 = vmand %vm1979, %vm1995
      %vm2012 = vmand %vm1980, %vm1996
      %vm2013 = vmand %vm1981, %vm1997
      %vm2014 = vmand %vm1982, %vm1998
      %vm2015 = vmand %vm1983, %vm1999
      %v2016 = vsel %vm2000, 1, 0
      %v2017 = vsel %vm2001, 1, 0
      %v2018 = vsel %vm2002, 1, 0
      %v2019 = vsel %vm2003, 1, 0
      %v2020 = vsel %vm2004, 1, 0
      %v2021 = vsel %vm2005, 1, 0
      %v2022 = vsel %vm2006, 1, 0
      %v2023 = vsel %vm2007, 1, 0
      %v2024 = vsel %vm2008, 1, 0
      %v2025 = vsel %vm2009, 1, 0
      %v2026 = vsel %vm2010, 1, 0
      %v2027 = vsel %vm2011, 1, 0
      %v2028 = vsel %vm2012, 1, 0
      %v2029 = vsel %vm2013, 1, 0
      %v2030 = vsel %vm2014, 1, 0
      %v2031 = vsel %vm2015, 1, 0
      %vm2032 = vcmp.eq.s32.totalorder %v2016, 1
      %vm2033 = vcmp.eq.s32.totalorder %v2017, 1
      %vm2034 = vcmp.eq.s32.totalorder %v2018, 1
      %vm2035 = vcmp.eq.s32.totalorder %v2019, 1
      %vm2036 = vcmp.eq.s32.totalorder %v2020, 1
      %vm2037 = vcmp.eq.s32.totalorder %v2021, 1
      %vm2038 = vcmp.eq.s32.totalorder %v2022, 1
      %vm2039 = vcmp.eq.s32.totalorder %v2023, 1
      %vm2040 = vcmp.eq.s32.totalorder %v2024, 1
      %vm2041 = vcmp.eq.s32.totalorder %v2025, 1
      %vm2042 = vcmp.eq.s32.totalorder %v2026, 1
      %vm2043 = vcmp.eq.s32.totalorder %v2027, 1
      %vm2044 = vcmp.eq.s32.totalorder %v2028, 1
      %vm2045 = vcmp.eq.s32.totalorder %v2029, 1
      %vm2046 = vcmp.eq.s32.totalorder %v2030, 1
      %vm2047 = vcmp.eq.s32.totalorder %v2031, 1
      %v2048 = vsel %vm2032, %v1743, 0.0
      %v2049 = vsel %vm2033, %v1744, 0.0
      %v2050 = vsel %vm2034, %v1745, 0.0
      %v2051 = vsel %vm2035, %v1746, 0.0
      %v2052 = vsel %vm2036, %v1747, 0.0
      %v2053 = vsel %vm2037, %v1748, 0.0
      %v2054 = vsel %vm2038, %v1749, 0.0
      %v2055 = vsel %vm2039, %v1750, 0.0
      %v2056 = vsel %vm2040, %v1751, 0.0
      %v2057 = vsel %vm2041, %v1752, 0.0
      %v2058 = vsel %vm2042, %v1753, 0.0
      %v2059 = vsel %vm2043, %v1754, 0.0
      %v2060 = vsel %vm2044, %v1755, 0.0
      %v2061 = vsel %vm2045, %v1756, 0.0
      %v2062 = vsel %vm2046, %v1757, 0.0
      %v2063 = vsel %vm2047, %v1758, 0.0
      %v2064 = vsel %vm731, %v2048, 0.0
      %v2065 = vsel %vm731, %v2049, 0.0
      %v2066 = vadd.f32 %v2064, %v2065
      %v2067 = vsel %vm731, %v2050, 0.0
      %v2068 = vadd.f32 %v2066, %v2067
      %v2069 = vsel %vm731, %v2051, 0.0
      %v2070 = vadd.f32 %v2068, %v2069
      %v2071 = vsel %vm731, %v2052, 0.0
      %v2072 = vadd.f32 %v2070, %v2071
      %v2073 = vsel %vm731, %v2053, 0.0
      %v2074 = vadd.f32 %v2072, %v2073
      %v2075 = vsel %vm731, %v2054, 0.0
      %v2076 = vadd.f32 %v2074, %v2075
      %v2077 = vsel %vm731, %v2055, 0.0
      %v2078 = vadd.f32 %v2076, %v2077
      %v2079 = vsel %vm731, %v2056, 0.0
      %v2080 = vadd.f32 %v2078, %v2079
      %v2081 = vsel %vm731, %v2057, 0.0
      %v2082 = vadd.f32 %v2080, %v2081
      %v2083 = vsel %vm731, %v2058, 0.0
      %v2084 = vadd.f32 %v2082, %v2083
      %v2085 = vsel %vm731, %v2059, 0.0
      %v2086 = vadd.f32 %v2084, %v2085
      %v2087 = vsel %vm731, %v2060, 0.0
      %v2088 = vadd.f32 %v2086, %v2087
      %v2089 = vsel %vm731, %v2061, 0.0
      %v2090 = vadd.f32 %v2088, %v2089
      %v2091 = vsel %vm731, %v2062, 0.0
      %v2092 = vadd.f32 %v2090, %v2091
      %v2093 = vsel %vm731, %v2063, 0.0
      %v2094 = vadd.f32 %v2092, %v2093
      %v2095 = vrot.slane %v2094, 4
      %v2096 = vadd.f32 %v2094, %v2095
      %v2097 = vrot.slane %v2096, 2
      %v2098 = vadd.f32 %v2096, %v2097
      %v2099 = vrot.slane %v2098, 1
      %v2100 = vadd.f32 %v2098, %v2099
      %v2101 = vmul.f32 %v2048, %v2048
      %v2102 = vmul.f32 %v2049, %v2049
      %v2103 = vmul.f32 %v2050, %v2050
      %v2104 = vmul.f32 %v2051, %v2051
      %v2105 = vmul.f32 %v2052, %v2052
      %v2106 = vmul.f32 %v2053, %v2053
      %v2107 = vmul.f32 %v2054, %v2054
      %v2108 = vmul.f32 %v2055, %v2055
      %v2109 = vmul.f32 %v2056, %v2056
      %v2110 = vmul.f32 %v2057, %v2057
      %v2111 = vmul.f32 %v2058, %v2058
      %v2112 = vmul.f32 %v2059, %v2059
      %v2113 = vmul.f32 %v2060, %v2060
      %v2114 = vmul.f32 %v2061, %v2061
      %v2115 = vmul.f32 %v2062, %v2062
      %v2116 = vmul.f32 %v2063, %v2063
      %v2117 = vsel %vm731, %v2101, 0.0
      %v2118 = vsel %vm731, %v2102, 0.0
      %v2119 = vadd.f32 %v2117, %v2118
      %v2120 = vsel %vm731, %v2103, 0.0
      %v2121 = vadd.f32 %v2119, %v2120
      %v2122 = vsel %vm731, %v2104, 0.0
      %v2123 = vadd.f32 %v2121, %v2122
      %v2124 = vsel %vm731, %v2105, 0.0
      %v2125 = vadd.f32 %v2123, %v2124
      %v2126 = vsel %vm731, %v2106, 0.0
      %v2127 = vadd.f32 %v2125, %v2126
      %v2128 = vsel %vm731, %v2107, 0.0
      %v2129 = vadd.f32 %v2127, %v2128
      %v2130 = vsel %vm731, %v2108, 0.0
      %v2131 = vadd.f32 %v2129, %v2130
      %v2132 = vsel %vm731, %v2109, 0.0
      %v2133 = vadd.f32 %v2131, %v2132
      %v2134 = vsel %vm731, %v2110, 0.0
      %v2135 = vadd.f32 %v2133, %v2134
      %v2136 = vsel %vm731, %v2111, 0.0
      %v2137 = vadd.f32 %v2135, %v2136
      %v2138 = vsel %vm731, %v2112, 0.0
      %v2139 = vadd.f32 %v2137, %v2138
      %v2140 = vsel %vm731, %v2113, 0.0
      %v2141 = vadd.f32 %v2139, %v2140
      %v2142 = vsel %vm731, %v2114, 0.0
      %v2143 = vadd.f32 %v2141, %v2142
      %v2144 = vsel %vm731, %v2115, 0.0
      %v2145 = vadd.f32 %v2143, %v2144
      %v2146 = vsel %vm731, %v2116, 0.0
      %v2147 = vadd.f32 %v2145, %v2146
      %v2148 = vrot.slane %v2147, 4
      %v2149 = vadd.f32 %v2147, %v2148
      %v2150 = vrot.slane %v2149, 2
      %v2151 = vadd.f32 %v2149, %v2150
      %v2152 = vrot.slane %v2151, 1
      %v2153 = vadd.f32 %v2151, %v2152
      %vm2154 = vcmask 1040384
      %v2155 = vsel %vm2154, %v2100, %v2153
      %vm2156 = vcmask 58368
      %2157 = vst.msk [vmem:[%s268] sm:$0x3] %vm2156, %v2155
      %v2158 = vpack.c.bf16 %v1743, %v1743
      %v2159 = vpack.c.bf16 %v1744, %v1744
      %v2160 = vpack.c.bf16 %v1745, %v1745
      %v2161 = vpack.c.bf16 %v1746, %v1746
      %v2162 = vpack.c.bf16 %v1747, %v1747
      %v2163 = vpack.c.bf16 %v1748, %v1748
      %v2164 = vpack.c.bf16 %v1749, %v1749
      %v2165 = vpack.c.bf16 %v1750, %v1750
      %v2166 = vpack.c.bf16 %v1751, %v1751
      %v2167 = vpack.c.bf16 %v1752, %v1752
      %v2168 = vpack.c.bf16 %v1753, %v1753
      %v2169 = vpack.c.bf16 %v1754, %v1754
      %v2170 = vpack.c.bf16 %v1755, %v1755
      %v2171 = vpack.c.bf16 %v1756, %v1756
      %v2172 = vpack.c.bf16 %v1757, %v1757
      %v2173 = vpack.c.bf16 %v1758, %v1758
      %2174 = vst.msk [vmem:[%s260] sm:$0xf] %vm379, %v2158
      %2175 = vst.msk [vmem:[%s260 + $0x4] sm:$0xf] %vm379, %v2159
      %2176 = vst.msk [vmem:[%s260 + $0x8] sm:$0xf] %vm379, %v2160
      %2177 = vst.msk [vmem:[%s260 + $0xc] sm:$0xf] %vm379, %v2161
      %2178 = vst.msk [vmem:[%s260 + $0x10] sm:$0xf] %vm379, %v2162
      %2179 = vst.msk [vmem:[%s260 + $0x14] sm:$0xf] %vm379, %v2163
      %2180 = vst.msk [vmem:[%s260 + $0x18] sm:$0xf] %vm379, %v2164
      %2181 = vst.msk [vmem:[%s260 + $0x1c] sm:$0xf] %vm379, %v2165
      %2182 = vst.msk [vmem:[%s260 + $0x20] sm:$0xf] %vm379, %v2166
      %2183 = vst.msk [vmem:[%s260 + $0x24] sm:$0xf] %vm379, %v2167
      %2184 = vst.msk [vmem:[%s260 + $0x28] sm:$0xf] %vm379, %v2168
      %2185 = vst.msk [vmem:[%s260 + $0x2c] sm:$0xf] %vm379, %v2169
      %2186 = vst.msk [vmem:[%s260 + $0x30] sm:$0xf] %vm379, %v2170
      %2187 = vst.msk [vmem:[%s260 + $0x34] sm:$0xf] %vm379, %v2171
      %2188 = vst.msk [vmem:[%s260 + $0x38] sm:$0xf] %vm379, %v2172
      %2189 = vst.msk [vmem:[%s260 + $0x3c] sm:$0xf] %vm379, %v2173
      %s2190 = smul.u32 8, %s22
      %p2191 = scmp.lt.s32.totalorder %s21, 1
      %s2192 = scalar_select %p2191, %s21, 1
      %p2193 = scmp.lt.s32.totalorder %s2190, 7
      %s2194 = scalar_select %p2193, %s2190, 7
      %s2195 = smul.addr %s2194, 2
      %s2196 = smul.addr %s2192, 16
      %s2197 = sadd.s32 %s2195, %s2196
      %s2198 = smul.addr %s2197, 4
      %s2199 = scalar_lea.vmem %s4, %s2198
      %p2200 = scmp.lt.s32.totalorder %s21, 1
      %s2201 = scalar_select %p2200, %s21, 1
      %p2202 = scmp.lt.s32.totalorder %s22, 0
      %s2203 = scalar_select %p2202, %s22, 0
      %s2204 = sadd.s32 %s2203, %s2201
      %s2205 = smul.addr %s2204, 2
      %s2206 = scalar_lea.vmem %s5, %s2205
      // Predicated region
      $region53: #{down_forward.4} parent=35 // pred_check
        %p2207 = pneg %p138
      $region54: #{down_forward.4} parent=35 // pred_check_branch
        %2209 = sbr.rel (%p2207) target = $region56
      $region55: #{down_forward.4} parent=35 // pred_region
        %s2210 = smul.u32 8, %s22
      $region56: #{down_forward.4} parent=35 // pred_fallthru
        _
      // Predicated region
      $region57: #{down_forward.4} parent=35 // pred_check
        %p2211 = pneg %p166
      $region58: #{down_forward.4} parent=35 // pred_check_branch
        %2213 = sbr.rel (%p2211) target = $region60
      $region59: #{down_forward.4} parent=35 // pred_region
        _
      $region60: #{down_forward.4} parent=35 // pred_fallthru
        _
    $region36: #{down_forward.4} parent=5 // pred_fallthru
      _
    %p2214 = scmp.le.s32.totalorder 2, %s12
    // Predicated region
    $region61: #{down_forward.4} parent=5 // pred_check
      %p2215 = pneg %p2214
    $region62: #{down_forward.4} parent=5 // pred_check_branch
      %2217 = sbr.rel (%p2215) target = $region64
    $region63: #{down_forward.4} parent=5 // pred_region
      %s2218 = ssub.s32 %s12, 2
      // Predicated region
      $region65: #{down_forward.4} parent=63 // pred_check
        %p2219 = pneg %p144
      $region66: #{down_forward.4} parent=63 // pred_check_branch
        %2221 = sbr.rel (%p2219) target = $region68
      $region67: #{down_forward.4} parent=63 // pred_region
        %s2222 = smul.u32 8, %s24
        %p2223 = scmp.lt.s32.totalorder %s23, 1
        %s2224 = scalar_select %p2223, %s23, 1
        %p2225 = scmp.lt.s32.totalorder %s2222, 7
        %s2226 = scalar_select %p2225, %s2222, 7
        %s2227 = smul.addr %s2226, 2
        %s2228 = smul.addr %s2224, 16
        %s2229 = sadd.s32 %s2227, %s2228
        %s2230 = smul.addr %s2229, 4
        %s2231 = scalar_lea.vmem %s4, %s2230
      $region68: #{down_forward.4} parent=63 // pred_fallthru
        _
      // Predicated region
      $region69: #{down_forward.4} parent=63 // pred_check
        %p2232 = pneg %p172
      $region70: #{down_forward.4} parent=63 // pred_check_branch
        %2234 = sbr.rel (%p2232) target = $region72
      $region71: #{down_forward.4} parent=63 // pred_region
        %p2235 = scmp.lt.s32.totalorder %s23, 1
        %s2236 = scalar_select %p2235, %s23, 1
        %p2237 = scmp.lt.s32.totalorder %s24, 0
        %s2238 = scalar_select %p2237, %s24, 0
        %s2239 = sadd.s32 %s2238, %s2236
        %s2240 = smul.addr %s2239, 2
        %s2241 = scalar_lea.vmem %s5, %s2240
      $region72: #{down_forward.4} parent=63 // pred_fallthru
        _
    $region64: #{down_forward.4} parent=5 // pred_fallthru
      _
  $region6: #{down_forward.4} parent=0 // loop_footer
    %s16 = sadd.s32 1, %s12
  $region7: #{down_forward.4} parent=0 // loop_footer_branch
    %11 = sbr.rel target = $region3
  $region8: #{down_forward.4} parent=0 // loop_exit
    _

// kernel: down_forward.3
$region0: #{down_forward.3}
  #allocation0 [shape = 'u32[]', space=smem, size = 0x4, offset = 0x4, fixed_abs, tag = 'smem constant byte address 0x4 - core index']
  #allocation1 [shape = 'u32[72,128]{1,0:T(1,128)}', space=vmem, size = 0x9000, scoped, tag = 'internal scratch']
  #allocation2 [shape = 'bf16[12,16,4]{2,1,0:T(8,128)(2,1)}', space=vmem, size = 0xc000, scoped, tag = 'scratch operand']
  %s0 = inlined_call_operand.vmem [shape: bf16[2,16,8,8], index: 0, kind: input, shape index: {}]
  %s1 = inlined_call_operand.vmem [shape: bf16[3,12,8], index: 1, kind: input, shape index: {}]
  %s2 = inlined_call_operand.vmem [shape: bf16[2,8,16,8], index: 2, kind: output, shape index: {0}]
  %s3 = inlined_call_operand.vmem [shape: f32[2,1,2,8], index: 3, kind: output, shape index: {1}]
  %4 = xla_tuple %s2, %s3
  %s5 = sld [smem:[#allocation0]]
  $region65: #{down_forward.3} parent=0
    _
  %s7 = ssub.s32 1, %s5
  %s8 = scalar_select 0, %s7, %s5
  loop: start=0, step=1, limit=4
  $region2: #{down_forward.3} parent=0 // loop_pre_header
    _
  $region3: #{down_forward.3} parent=0 // loop_header
    %s10 = sphi 0, %s14
    %p11 = scmp.ge.s32.totalorder %s10, 4
    %s17 = sphi 0, %s29
    %s18 = sphi 0, %s25
    %s19 = sphi 0, %s17
    %s20 = sphi 0, %s18
    %s21 = sphi 0, %s19
    %s22 = sphi 0, %s20
    %s32 = sphi 0, %s34
    %s35 = sphi 0, %s32
    %s36 = sphi 0, %s35
    %s52 = sphi 0, %s36
    %s56 = sphi 0, %s56
    %s58 = sphi 0, %s56
    %s59 = sphi 0, %s58
    %s73 = sphi 0, %s59
    %s81 = sphi 0, %s83
    %s84 = sphi 0, %s81
    %s85 = sphi 0, %s84
    %s101 = sphi 0, %s85
    %s109 = sphi 0, %s111
    %s112 = sphi 0, %s109
    %s113 = sphi 0, %s112
    %s129 = sphi 0, %s113
  $region4: #{down_forward.3} parent=0 // loop_header_branch
    %13 = sbr.rel (%p11) target = $region8
  $region5: #{down_forward.3} parent=0 // loop_body
    %s15 = ssub.s32 %s10, 1
    %s16 = ssub.s32 %s10, 2
    %s23 = sadd.s32 1, %s18
    %p24 = scmp.ge.s32.totalorder %s23, 1
    %s25 = scalar_select %p24, 0, %s23
    %s26 = sadd.s32 1, %s17
    %s27 = scalar_select %p24, %s26, %s17
    %p28 = scmp.ge.s32.totalorder %s27, 2
    %s29 = scalar_select %p28, 0, %s27
    %s30 = ssub.s32 %s17, %s29
    %p31 = scmp.eq.s32.totalorder %s30, 0
    %s33 = sadd.s32 %s32, 1
    %s34 = scalar_select %p31, %s32, %s33
    %p37 = pneg %p31
    %p38 = scmp.eq.s32.totalorder %s10, 1
    %p39 = por %p37, %p38
    %p40 = scmp.ne.s32.totalorder %s32, %s35
    %p41 = scmp.eq.s32.totalorder %s10, 0
    %p42 = por %p40, %p41
    %p43 = scmp.ne.s32.totalorder %s32, %s35
    %p44 = scmp.eq.s32.totalorder %s15, 1
    %p45 = por %p43, %p44
    %p46 = scmp.ne.s32.totalorder %s35, %s36
    %p47 = scmp.eq.s32.totalorder %s15, 0
    %p48 = por %p46, %p47
    %p49 = scmp.ne.s32.totalorder %s35, %s36
    %p50 = scmp.eq.s32.totalorder %s16, 1
    %p51 = por %p49, %p50
    %p53 = scmp.ne.s32.totalorder %s36, %s52
    %p54 = scmp.eq.s32.totalorder %s16, 0
    %p55 = por %p53, %p54
    %s57 = sadd.s32 %s56, 1
    %p60 = scmp.eq.s32.totalorder %s10, 1
    %p61 = scmp.ne.s32.totalorder %s56, %s58
    %p62 = scmp.eq.s32.totalorder %s10, 0
    %p63 = por %p61, %p62
    %p64 = scmp.ne.s32.totalorder %s56, %s58
    %p65 = scmp.eq.s32.totalorder %s15, 1
    %p66 = por %p64, %p65
    %p67 = scmp.ne.s32.totalorder %s58, %s59
    %p68 = scmp.eq.s32.totalorder %s15, 0
    %p69 = por %p67, %p68
    %p70 = scmp.ne.s32.totalorder %s58, %s59
    %p71 = scmp.eq.s32.totalorder %s16, 1
    %p72 = por %p70, %p71
    %p74 = scmp.ne.s32.totalorder %s59, %s73
    %p75 = scmp.eq.s32.totalorder %s16, 0
    %p76 = por %p74, %p75
    %s77 = ssub.s32 %s17, %s29
    %s78 = ssub.s32 %s18, %s25
    %s79 = sor.u32 %s77, %s78
    %p80 = scmp.eq.s32.totalorder %s79, 0
    %s82 = sadd.s32 %s81, 1
    %s83 = scalar_select %p80, %s81, %s82
    %p86 = pneg %p80
    %p87 = scmp.eq.s32.totalorder %s10, 1
    %p88 = por %p86, %p87
    %p89 = scmp.ne.s32.totalorder %s81, %s84
    %p90 = scmp.eq.s32.totalorder %s10, 0
    %p91 = por %p89, %p90
    %p92 = scmp.ne.s32.totalorder %s81, %s84
    %p93 = scmp.eq.s32.totalorder %s15, 1
    %p94 = por %p92, %p93
    %p95 = scmp.ne.s32.totalorder %s84, %s85
    %p96 = scmp.eq.s32.totalorder %s15, 0
    %p97 = por %p95, %p96
    %p98 = scmp.ne.s32.totalorder %s84, %s85
    %p99 = scmp.eq.s32.totalorder %s16, 1
    %p100 = por %p98, %p99
    %p102 = scmp.ne.s32.totalorder %s85, %s101
    %p103 = scmp.eq.s32.totalorder %s16, 0
    %p104 = por %p102, %p103
    %s105 = ssub.s32 %s17, %s29
    %s106 = ssub.s32 %s18, %s25
    %s107 = sor.u32 %s105, %s106
    %p108 = scmp.eq.s32.totalorder %s107, 0
    %s110 = sadd.s32 %s109, 1
    %s111 = scalar_select %p108, %s109, %s110
    %p114 = pneg %p108
    %p115 = scmp.eq.s32.totalorder %s10, 1
    %p116 = por %p114, %p115
    %p117 = scmp.ne.s32.totalorder %s109, %s112
    %p118 = scmp.eq.s32.totalorder %s10, 0
    %p119 = por %p117, %p118
    %p120 = scmp.ne.s32.totalorder %s109, %s112
    %p121 = scmp.eq.s32.totalorder %s15, 1
    %p122 = por %p120, %p121
    %p123 = scmp.ne.s32.totalorder %s112, %s113
    %p124 = scmp.eq.s32.totalorder %s15, 0
    %p125 = por %p123, %p124
    %p126 = scmp.ne.s32.totalorder %s112, %s113
    %p127 = scmp.eq.s32.totalorder %s16, 1
    %p128 = por %p126, %p127
    %p130 = scmp.ne.s32.totalorder %s113, %s129
    %p131 = scmp.eq.s32.totalorder %s16, 0
    %p132 = por %p130, %p131
    %p133 = scmp.le.s32.totalorder 1, %s10
    %p134 = scmp.lt.s32.totalorder %s10, 3
    %p135 = pnand %p133, %p134
    %p136 = pneg %p135
    // Predicated region
    $region9: #{down_forward.3} parent=5 // pred_check
      _
    $region10: #{down_forward.3} parent=5 // pred_check_branch
      %138 = sbr.rel (%p135) target = $region12
    $region11: #{down_forward.3} parent=5 // pred_region
      %s139 = ssub.s32 %s10, 1
      // Predicated region
      $region13: #{down_forward.3} parent=11 // pred_check
        %p140 = pneg %p69
      $region14: #{down_forward.3} parent=11 // pred_check_branch
        %142 = sbr.rel (%p140) target = $region16
      $region15: #{down_forward.3} parent=11 // pred_region
        _
      $region16: #{down_forward.3} parent=11 // pred_fallthru
        _
    $region12: #{down_forward.3} parent=5 // pred_fallthru
      _
    %p143 = scmp.lt.s32.totalorder %s10, 2
    // Predicated region
    $region17: #{down_forward.3} parent=5 // pred_check
      %p144 = pneg %p143
    $region18: #{down_forward.3} parent=5 // pred_check_branch
      %146 = sbr.rel (%p144) target = $region20
    $region19: #{down_forward.3} parent=5 // pred_region
      // Predicated region
      $region21: #{down_forward.3} parent=19 // pred_check
        %p147 = pneg %p42
      $region22: #{down_forward.3} parent=19 // pred_check_branch
        %149 = sbr.rel (%p147) target = $region24
      $region23: #{down_forward.3} parent=19 // pred_region
        %p150 = scmp.lt.s32.totalorder %s17, 1
        %s151 = scalar_select %p150, %s17, 1
        %s152 = smul.addr %s151, 16
        %s153 = smul.addr %s152, 4
        %s154 = scalar_lea.vmem %s0, %s153
      $region24: #{down_forward.3} parent=19 // pred_fallthru
        _
    $region20: #{down_forward.3} parent=5 // pred_fallthru
      _
    %p155 = scmp.le.s32.totalorder 1, %s10
    %p156 = scmp.lt.s32.totalorder %s10, 3
    %p157 = pnand %p155, %p156
    %p158 = pneg %p157
    // Predicated region
    $region25: #{down_forward.3} parent=5 // pred_check
      _
    $region26: #{down_forward.3} parent=5 // pred_check_branch
      %160 = sbr.rel (%p157) target = $region28
    $region27: #{down_forward.3} parent=5 // pred_region
      %s161 = ssub.s32 %s10, 1
      %p162 = scmp.lt.s32.totalorder %s19, 1
      %s163 = scalar_select %p162, %s19, 1
      %s164 = smul.addr %s163, 16
      %s165 = smul.addr %s164, 4
      %s166 = scalar_lea.vmem %s0, %s165
      %p167 = pneg %p48
      %p168 = pneg %p45
      %p169 = pneg %p69
      %p170 = pneg %p66
      %p171 = pneg %p97
      %p172 = pneg %p94
      %s173 = smul.u32 8, %s20
      %p174 = scmp.lt.s32.totalorder %s19, 1
      %s175 = scalar_select %p174, %s19, 1
      %p176 = scmp.lt.s32.totalorder %s173, 7
      %s177 = scalar_select %p176, %s173, 7
      %s178 = smul.addr %s177, 2
      %s179 = smul.addr %s175, 16
      %s180 = sadd.s32 %s178, %s179
      %s181 = smul.addr %s180, 4
      %s182 = scalar_lea.vmem %s2, %s181
      %p183 = pneg %p125
      %p184 = pneg %p122
      %p185 = scmp.lt.s32.totalorder %s19, 1
      %s186 = scalar_select %p185, %s19, 1
      %p187 = scmp.lt.s32.totalorder %s20, 0
      %s188 = scalar_select %p187, %s20, 0
      %s189 = sadd.s32 %s188, %s186
      %s190 = smul.addr %s189, 2
      %s191 = scalar_lea.vmem %s3, %s190
      %p192 = scmp.lt.s32.totalorder %s19, 1
      %s193 = scalar_select %p192, %s19, 1
      %s194 = smul.addr %s193, 16
      %s195 = smul.addr %s194, 4
      %s196 = scalar_lea.vmem %s0, %s195
      %s197 = smul.u32 8, %s20
      %p198 = scmp.lt.s32.totalorder %s19, 1
      %s199 = scalar_select %p198, %s19, 1
      %p200 = scmp.lt.s32.totalorder %s197, 7
      %s201 = scalar_select %p200, %s197, 7
      %s202 = smul.addr %s201, 2
      %s203 = smul.addr %s199, 16
      %s204 = sadd.s32 %s202, %s203
      %s205 = smul.addr %s204, 4
      %s206 = scalar_lea.vmem %s2, %s205
      %s207 = smul.u32 8, %s20
      %p208 = scmp.lt.s32.totalorder %s19, 1
      %s209 = scalar_select %p208, %s19, 1
      %p210 = scmp.lt.s32.totalorder %s20, 0
      %s211 = scalar_select %p210, %s20, 0
      %s212 = sadd.s32 %s211, %s209
      %s213 = smul.addr %s212, 2
      %s214 = scalar_lea.vmem %s3, %s213
      %s216 = smul.u32 %s20, 16
      %s217 = smul.addr %s216, 4
      %s218 = scalar_lea.vmem %s196, %s217
      %v219 = vld [vmem:[%s218] sm:$0xf]
      %v220 = vld [vmem:[%s218 + $0x4] sm:$0xf]
      %v221 = vld [vmem:[%s218 + $0x8] sm:$0xf]
      %v222 = vld [vmem:[%s218 + $0xc] sm:$0xf]
      %v223 = vld [vmem:[%s218 + $0x10] sm:$0xf]
      %v224 = vld [vmem:[%s218 + $0x14] sm:$0xf]
      %v225 = vld [vmem:[%s218 + $0x18] sm:$0xf]
      %v226 = vld [vmem:[%s218 + $0x1c] sm:$0xf]
      %v227 = vld [vmem:[%s218 + $0x20] sm:$0xf]
      %v228 = vld [vmem:[%s218 + $0x24] sm:$0xf]
      %v229 = vld [vmem:[%s218 + $0x28] sm:$0xf]
      %v230 = vld [vmem:[%s218 + $0x2c] sm:$0xf]
      %v231 = vld [vmem:[%s218 + $0x30] sm:$0xf]
      %v232 = vld [vmem:[%s218 + $0x34] sm:$0xf]
      %v233 = vld [vmem:[%s218 + $0x38] sm:$0xf]
      %v234 = vld [vmem:[%s218 + $0x3c] sm:$0xf]
      %v235 = vunpack.c.l.bf16 %v219
      %v236 = vunpack.c.l.bf16 %v220
      %v237 = vunpack.c.l.bf16 %v221
      %v238 = vunpack.c.l.bf16 %v222
      %v239 = vunpack.c.l.bf16 %v223
      %v240 = vunpack.c.l.bf16 %v224
      %v241 = vunpack.c.l.bf16 %v225
      %v242 = vunpack.c.l.bf16 %v226
      %v243 = vunpack.c.l.bf16 %v227
      %v244 = vunpack.c.l.bf16 %v228
      %v245 = vunpack.c.l.bf16 %v229
      %v246 = vunpack.c.l.bf16 %v230
      %v247 = vunpack.c.l.bf16 %v231
      %v248 = vunpack.c.l.bf16 %v232
      %v249 = vunpack.c.l.bf16 %v233
      %v250 = vunpack.c.l.bf16 %v234
      %vm251 = vcmask 64512
      %v252 = vsel %vm251, %v235, -inf
      %v253 = vsel %vm251, %v236, -inf
      %v254 = vmax.f32 %v252, %v253
      %v255 = vsel %vm251, %v237, -inf
      %v256 = vsel %vm251, %v238, -inf
      %v257 = vmax.f32 %v255, %v256
      %v258 = vsel %vm251, %v239, -inf
      %v259 = vsel %vm251, %v240, -inf
      %v260 = vmax.f32 %v258, %v259
      %v261 = vsel %vm251, %v241, -inf
      %v262 = vsel %vm251, %v242, -inf
      %v263 = vmax.f32 %v261, %v262
      %v264 = vsel %vm251, %v243, -inf
      %v265 = vsel %vm251, %v244, -inf
      %v266 = vmax.f32 %v264, %v265
      %v267 = vsel %vm251, %v245, -inf
      %v268 = vsel %vm251, %v246, -inf
      %v269 = vmax.f32 %v267, %v268
      %v270 = vsel %vm251, %v247, -inf
      %v271 = vsel %vm251, %v248, -inf
      %v272 = vmax.f32 %v270, %v271
      %v273 = vsel %vm251, %v249, -inf
      %v274 = vsel %vm251, %v250, -inf
      %v275 = vmax.f32 %v273, %v274
      %v276 = vpack.c.bf16 %v254, %v254
      %v277 = vpack.c.bf16 %v257, %v257
      %v278 = vpack.c.bf16 %v260, %v260
      %v279 = vpack.c.bf16 %v263, %v263
      %v280 = vpack.c.bf16 %v266, %v266
      %v281 = vpack.c.bf16 %v269, %v269
      %v282 = vpack.c.bf16 %v272, %v272
      %v283 = vpack.c.bf16 %v275, %v275
      %v284 = vunpack.c.l.bf16 %v276
      %v285 = vunpack.c.l.bf16 %v277
      %v286 = vunpack.c.l.bf16 %v278
      %v287 = vunpack.c.l.bf16 %v279
      %v288 = vunpack.c.l.bf16 %v280
      %v289 = vunpack.c.l.bf16 %v281
      %v290 = vunpack.c.l.bf16 %v282
      %v291 = vunpack.c.l.bf16 %v283
      %300 = vrot.lane.b32.xlu0 %v284, 124
      %v301 = vpop.permute.xlu0 %300
      %302 = vrot.lane.b32.xlu0 %v285, 124
      %v303 = vpop.permute.xlu0 %302
      %304 = vrot.lane.b32.xlu0 %v286, 124
      %v305 = vpop.permute.xlu0 %304
      %306 = vrot.lane.b32.xlu0 %v287, 124
      %v307 = vpop.permute.xlu0 %306
      %308 = vrot.lane.b32.xlu0 %v288, 124
      %v309 = vpop.permute.xlu0 %308
      %310 = vrot.lane.b32.xlu0 %v289, 124
      %v311 = vpop.permute.xlu0 %310
      %312 = vrot.lane.b32.xlu0 %v290, 124
      %v313 = vpop.permute.xlu0 %312
      %314 = vrot.lane.b32.xlu0 %v291, 124
      %v315 = vpop.permute.xlu0 %314
      %v324 = vmax.f32 %v284, %v301
      %v325 = vmax.f32 %v285, %v303
      %v326 = vmax.f32 %v286, %v305
      %v327 = vmax.f32 %v287, %v307
      %v328 = vmax.f32 %v288, %v309
      %v329 = vmax.f32 %v289, %v311
      %v330 = vmax.f32 %v290, %v313
      %v331 = vmax.f32 %v291, %v315
      %v332 = vpack.c.bf16 %v324, %v324
      %v333 = vpack.c.bf16 %v325, %v325
      %v334 = vpack.c.bf16 %v326, %v326
      %v335 = vpack.c.bf16 %v327, %v327
      %v336 = vpack.c.bf16 %v328, %v328
      %v337 = vpack.c.bf16 %v329, %v329
      %v338 = vpack.c.bf16 %v330, %v330
      %v339 = vpack.c.bf16 %v331, %v331
      %v341 = vshrl.u32 %v332, 16
      %v343 = vrot.slane %v341, 7
      %v344 = vshll.u32 %v332, 16
      %v346 = vor.u32 %v343, %v344
      %v347 = vrot.slane %v343, 4
      %v349 = vshrl.u32 %v333, 16
      %v351 = vrot.slane %v349, 7
      %v352 = vshll.u32 %v333, 16
      %v354 = vor.u32 %v351, %v352
      %v355 = vrot.slane %v351, 4
      %v357 = vshrl.u32 %v334, 16
      %v359 = vrot.slane %v357, 7
      %v360 = vshll.u32 %v334, 16
      %v362 = vor.u32 %v359, %v360
      %v363 = vrot.slane %v359, 4
      %v365 = vshrl.u32 %v335, 16
      %v367 = vrot.slane %v365, 7
      %v368 = vshll.u32 %v335, 16
      %v370 = vor.u32 %v367, %v368
      %v371 = vrot.slane %v367, 4
      %v373 = vshrl.u32 %v336, 16
      %v375 = vrot.slane %v373, 7
      %v376 = vshll.u32 %v336, 16
      %v378 = vor.u32 %v375, %v376
      %v379 = vrot.slane %v375, 4
      %v381 = vshrl.u32 %v337, 16
      %v383 = vrot.slane %v381, 7
      %v384 = vshll.u32 %v337, 16
      %v386 = vor.u32 %v383, %v384
      %v387 = vrot.slane %v383, 4
      %v389 = vshrl.u32 %v338, 16
      %v391 = vrot.slane %v389, 7
      %v392 = vshll.u32 %v338, 16
      %v394 = vor.u32 %v391, %v392
      %v395 = vrot.slane %v391, 4
      %v397 = vshrl.u32 %v339, 16
      %v399 = vrot.slane %v397, 7
      %v400 = vshll.u32 %v339, 16
      %v402 = vor.u32 %v399, %v400
      %v403 = vrot.slane %v399, 4
      %s420 = scalar_lea.vmem [#allocation2], 16
      %vm421 = vcmask 27648
      %vm422 = vsmask.f32 7938
      %vm423 = vmand %vm421, %vm422
      %v424 = vld [vmem:[%s420] sm:$0xf]
      %v425 = vsel %vm423, %v346, %v424
      %426 = vst [vmem:[%s420] sm:$0xf] %v425
      %vm427 = vcmask 24576
      %vm428 = vsmask.f32 256
      %vm429 = vmand %vm427, %vm428
      %v430 = vld [vmem:[%s420 + $0x4] sm:$0x1]
      %v431 = vsel %vm429, %v347, %v430
      %432 = vst [vmem:[%s420 + $0x4] sm:$0x1] %v431
      %v433 = vld [vmem:[%s420 + $0x8] sm:$0xf]
      %v434 = vsel %vm423, %v354, %v433
      %435 = vst [vmem:[%s420 + $0x8] sm:$0xf] %v434
      %v436 = vld [vmem:[%s420 + $0xc] sm:$0x1]
      %v437 = vsel %vm429, %v355, %v436
      %438 = vst [vmem:[%s420 + $0xc] sm:$0x1] %v437
      %v439 = vld [vmem:[%s420 + $0x10] sm:$0xf]
      %v440 = vsel %vm423, %v362, %v439
      %441 = vst [vmem:[%s420 + $0x10] sm:$0xf] %v440
      %v442 = vld [vmem:[%s420 + $0x14] sm:$0x1]
      %v443 = vsel %vm429, %v363, %v442
      %444 = vst [vmem:[%s420 + $0x14] sm:$0x1] %v443
      %v445 = vld [vmem:[%s420 + $0x18] sm:$0xf]
      %v446 = vsel %vm423, %v370, %v445
      %447 = vst [vmem:[%s420 + $0x18] sm:$0xf] %v446
      %v448 = vld [vmem:[%s420 + $0x1c] sm:$0x1]
      %v449 = vsel %vm429, %v371, %v448
      %450 = vst [vmem:[%s420 + $0x1c] sm:$0x1] %v449
      %v451 = vld [vmem:[%s420 + $0x20] sm:$0xf]
      %v452 = vsel %vm423, %v378, %v451
      %453 = vst [vmem:[%s420 + $0x20] sm:$0xf] %v452
      %v454 = vld [vmem:[%s420 + $0x24] sm:$0x1]
      %v455 = vsel %vm429, %v379, %v454
      %456 = vst [vmem:[%s420 + $0x24] sm:$0x1] %v455
      %v457 = vld [vmem:[%s420 + $0x28] sm:$0xf]
      %v458 = vsel %vm423, %v386, %v457
      %459 = vst [vmem:[%s420 + $0x28] sm:$0xf] %v458
      %v460 = vld [vmem:[%s420 + $0x2c] sm:$0x1]
      %v461 = vsel %vm429, %v387, %v460
      %462 = vst [vmem:[%s420 + $0x2c] sm:$0x1] %v461
      %v463 = vld [vmem:[%s420 + $0x30] sm:$0xf]
      %v464 = vsel %vm423, %v394, %v463
      %465 = vst [vmem:[%s420 + $0x30] sm:$0xf] %v464
      %v466 = vld [vmem:[%s420 + $0x34] sm:$0x1]
      %v467 = vsel %vm429, %v395, %v466
      %468 = vst [vmem:[%s420 + $0x34] sm:$0x1] %v467
      %v469 = vld [vmem:[%s420 + $0x38] sm:$0xf]
      %v470 = vsel %vm423, %v402, %v469
      %471 = vst [vmem:[%s420 + $0x38] sm:$0xf] %v470
      %v472 = vld [vmem:[%s420 + $0x3c] sm:$0x1]
      %v473 = vsel %vm429, %v403, %v472
      %474 = vst [vmem:[%s420 + $0x3c] sm:$0x1] %v473
      %p475 = scmp.eq.s32.totalorder %s20, 0
      // Predicated region
      $region29: #{down_forward.3} parent=27 // pred_check
        %p476 = pneg %p475
      $region30: #{down_forward.3} parent=27 // pred_check_branch
        %478 = sbr.rel (%p476) target = $region32
      $region31: #{down_forward.3} parent=27 // pred_region
        %s479 = scalar_lea.vmem [#allocation2], 8
        %v480 = vld [vmem:[%s479] sm:$0xf]
        %v481 = vsel %vm423, 0, %v480
        %482 = vst [vmem:[%s479] sm:$0xf] %v481
        %v483 = vld [vmem:[%s479 + $0x4] sm:$0x1]
        %v484 = vsel %vm429, 0, %v483
        %485 = vst [vmem:[%s479 + $0x4] sm:$0x1] %v484
      $region32: #{down_forward.3} parent=27 // pred_fallthru
        _
      %p486 = scmp.gt.s32.totalorder %s20, 0
      // Predicated region
      $region33: #{down_forward.3} parent=27 // pred_check
        %p487 = pneg %p486
      $region34: #{down_forward.3} parent=27 // pred_check_branch
        %489 = sbr.rel (%p487) target = $region36
      $region35: #{down_forward.3} parent=27 // pred_region
        %s490 = ssub.s32 %s216, 2
        %s491 = smul.addr %s490, 4
        %s492 = scalar_lea.vmem %s196, %s491
        %v493 = vld [vmem:[%s492] sm:$0xf]
        %v494 = vld [vmem:[%s492 + $0x4] sm:$0xf]
        %v495 = vunpack.c.l.bf16 %v493
        %v496 = vunpack.c.l.bf16 %v494
        %v497 = vsel %vm251, %v495, -inf
        %v498 = vsel %vm251, %v496, -inf
        %v499 = vmax.f32 %v497, %v498
        %v500 = vpack.c.bf16 %v499, %v499
        %v501 = vunpack.c.l.bf16 %v500
        %503 = vrot.lane.b32.xlu0 %v501, 124
        %v504 = vpop.permute.xlu0 %503
        %v506 = vmax.f32 %v501, %v504
        %v507 = vpack.c.bf16 %v506, %v506
        %v509 = vshrl.u32 %v507, 16
        %v511 = vrot.slane %v509, 7
        %v512 = vshll.u32 %v507, 16
        %v514 = vor.u32 %v511, %v512
        %v515 = vrot.slane %v511, 4
        %s518 = scalar_lea.vmem [#allocation2], 8
        %v519 = vld [vmem:[%s518] sm:$0xf]
        %v520 = vsel %vm423, %v514, %v519
        %521 = vst [vmem:[%s518] sm:$0xf] %v520
        %v522 = vld [vmem:[%s518 + $0x4] sm:$0x1]
        %v523 = vsel %vm429, %v515, %v522
        %524 = vst [vmem:[%s518 + $0x4] sm:$0x1] %v523
      $region36: #{down_forward.3} parent=27 // pred_fallthru
        _
      // Predicated region
      $region37: #{down_forward.3} parent=27 // pred_check
        %p525 = pneg %p475
      $region38: #{down_forward.3} parent=27 // pred_check_branch
        %527 = sbr.rel (%p525) target = $region40
      $region39: #{down_forward.3} parent=27 // pred_region
        %s528 = scalar_lea.vmem [#allocation2], 80
        %v529 = vld [vmem:[%s528] sm:$0xf]
        %v530 = vsel %vm423, 0, %v529
        %531 = vst [vmem:[%s528] sm:$0xf] %v530
        %v532 = vld [vmem:[%s528 + $0x4] sm:$0x1]
        %v533 = vsel %vm429, 0, %v532
        %534 = vst [vmem:[%s528 + $0x4] sm:$0x1] %v533
      $region40: #{down_forward.3} parent=27 // pred_fallthru
        _
      %p535 = scmp.lt.s32.totalorder %s20, 0
      // Predicated region
      $region41: #{down_forward.3} parent=27 // pred_check
        %p536 = pneg %p535
      $region42: #{down_forward.3} parent=27 // pred_check_branch
        %538 = sbr.rel (%p536) target = $region44
      $region43: #{down_forward.3} parent=27 // pred_region
        %s539 = sadd.s32 %s216, 16
        %s540 = smul.addr %s539, 4
        %s541 = scalar_lea.vmem %s196, %s540
        %v542 = vld [vmem:[%s541] sm:$0xf]
        %v543 = vld [vmem:[%s541 + $0x4] sm:$0xf]
        %v544 = vunpack.c.l.bf16 %v542
        %v545 = vunpack.c.l.bf16 %v543
        %v546 = vsel %vm251, %v544, -inf
        %v547 = vsel %vm251, %v545, -inf
        %v548 = vmax.f32 %v546, %v547
        %v549 = vpack.c.bf16 %v548, %v548
        %v550 = vunpack.c.l.bf16 %v549
        %552 = vrot.lane.b32.xlu0 %v550, 124
        %v553 = vpop.permute.xlu0 %552
        %v555 = vmax.f32 %v550, %v553
        %v556 = vpack.c.bf16 %v555, %v555
        %v558 = vshrl.u32 %v556, 16
        %v560 = vrot.slane %v558, 7
        %v561 = vshll.u32 %v556, 16
        %v563 = vor.u32 %v560, %v561
        %v564 = vrot.slane %v560, 4
        %s567 = scalar_lea.vmem [#allocation2], 80
        %v568 = vld [vmem:[%s567] sm:$0xf]
        %v569 = vsel %vm423, %v563, %v568
        %570 = vst [vmem:[%s567] sm:$0xf] %v569
        %v571 = vld [vmem:[%s567 + $0x4] sm:$0x1]
        %v572 = vsel %vm429, %v564, %v571
        %573 = vst [vmem:[%s567 + $0x4] sm:$0x1] %v572
      $region44: #{down_forward.3} parent=27 // pred_fallthru
        _
      %v574 = vld [vmem:[#allocation2] sm:$0x1]
      %v575 = vsel %vm429, 0, %v574
      %576 = vst [vmem:[#allocation2] sm:$0x1] %v575
      %v577 = vld [vmem:[#allocation2 + $0x8] sm:$0x1]
      %v578 = vsel %vm429, 0, %v577
      %579 = vst [vmem:[#allocation2 + $0x8] sm:$0x1] %v578
      %v580 = vld [vmem:[#allocation2 + $0x10] sm:$0x1]
      %v581 = vsel %vm429, 0, %v580
      %582 = vst [vmem:[#allocation2 + $0x10] sm:$0x1] %v581
      %v583 = vld [vmem:[#allocation2 + $0x18] sm:$0x1]
      %v584 = vsel %vm429, 0, %v583
      %585 = vst [vmem:[#allocation2 + $0x18] sm:$0x1] %v584
      %v586 = vld [vmem:[#allocation2 + $0x20] sm:$0x1]
      %v587 = vsel %vm429, 0, %v586
      %588 = vst [vmem:[#allocation2 + $0x20] sm:$0x1] %v587
      %v589 = vld [vmem:[#allocation2 + $0x28] sm:$0x1]
      %v590 = vsel %vm429, 0, %v589
      %591 = vst [vmem:[#allocation2 + $0x28] sm:$0x1] %v590
      %v592 = vld [vmem:[#allocation2 + $0x30] sm:$0x1]
      %v593 = vsel %vm429, 0, %v592
      %594 = vst [vmem:[#allocation2 + $0x30] sm:$0x1] %v593
      %v595 = vld [vmem:[#allocation2 + $0x38] sm:$0x1]
      %v596 = vsel %vm429, 0, %v595
      %597 = vst [vmem:[#allocation2 + $0x38] sm:$0x1] %v596
      %v598 = vld [vmem:[#allocation2 + $0x40] sm:$0x1]
      %v599 = vsel %vm429, 0, %v598
      %600 = vst [vmem:[#allocation2 + $0x40] sm:$0x1] %v599
      %v601 = vld [vmem:[#allocation2 + $0x48] sm:$0x1]
      %v602 = vsel %vm429, 0, %v601
      %603 = vst [vmem:[#allocation2 + $0x48] sm:$0x1] %v602
      %v604 = vld [vmem:[#allocation2 + $0x50] sm:$0x1]
      %v605 = vsel %vm429, 0, %v604
      %606 = vst [vmem:[#allocation2 + $0x50] sm:$0x1] %v605
      %v607 = vld [vmem:[#allocation2 + $0x58] sm:$0x1]
      %v608 = vsel %vm429, 0, %v607
      %609 = vst [vmem:[#allocation2 + $0x58] sm:$0x1] %v608
      %v610 = vld [vmem:[#allocation2 + $0x4] sm:$0xf]
      %v611 = vsel %vm423, 0, %v610
      %612 = vst [vmem:[#allocation2 + $0x4] sm:$0xf] %v611
      %v613 = vld [vmem:[#allocation2 + $0xc] sm:$0xf]
      %v614 = vsel %vm423, 0, %v613
      %615 = vst [vmem:[#allocation2 + $0xc] sm:$0xf] %v614
      %v616 = vld [vmem:[#allocation2 + $0x14] sm:$0xf]
      %v617 = vsel %vm423, 0, %v616
      %618 = vst [vmem:[#allocation2 + $0x14] sm:$0xf] %v617
      %v619 = vld [vmem:[#allocation2 + $0x1c] sm:$0xf]
      %v620 = vsel %vm423, 0, %v619
      %621 = vst [vmem:[#allocation2 + $0x1c] sm:$0xf] %v620
      %v622 = vld [vmem:[#allocation2 + $0x24] sm:$0xf]
      %v623 = vsel %vm423, 0, %v622
      %624 = vst [vmem:[#allocation2 + $0x24] sm:$0xf] %v623
      %v625 = vld [vmem:[#allocation2 + $0x2c] sm:$0xf]
      %v626 = vsel %vm423, 0, %v625
      %627 = vst [vmem:[#allocation2 + $0x2c] sm:$0xf] %v626
      %v628 = vld [vmem:[#allocation2 + $0x34] sm:$0xf]
      %v629 = vsel %vm423, 0, %v628
      %630 = vst [vmem:[#allocation2 + $0x34] sm:$0xf] %v629
      %v631 = vld [vmem:[#allocation2 + $0x3c] sm:$0xf]
      %v632 = vsel %vm423, 0, %v631
      %633 = vst [vmem:[#allocation2 + $0x3c] sm:$0xf] %v632
      %v634 = vld [vmem:[#allocation2 + $0x44] sm:$0xf]
      %v635 = vsel %vm423, 0, %v634
      %636 = vst [vmem:[#allocation2 + $0x44] sm:$0xf] %v635
      %v637 = vld [vmem:[#allocation2 + $0x4c] sm:$0xf]
      %v638 = vsel %vm423, 0, %v637
      %639 = vst [vmem:[#allocation2 + $0x4c] sm:$0xf] %v638
      %v640 = vld [vmem:[#allocation2 + $0x54] sm:$0xf]
      %v641 = vsel %vm423, 0, %v640
      %642 = vst [vmem:[#allocation2 + $0x54] sm:$0xf] %v641
      %v643 = vld [vmem:[#allocation2 + $0x5c] sm:$0xf]
      %v644 = vsel %vm423, 0, %v643
      %645 = vst [vmem:[#allocation2 + $0x5c] sm:$0xf] %v644
      %v646 = vld [vmem:[#allocation2 + $0x4] sm:$0xf]
      %v647 = vld [vmem:[#allocation2 + $0x8] sm:$0xf]
      %v648 = vld [vmem:[#allocation2 + $0xc] sm:$0xf]
      %v649 = vld [vmem:[#allocation2 + $0x10] sm:$0xf]
      %v650 = vld [vmem:[#allocation2 + $0x14] sm:$0xf]
      %v651 = vld [vmem:[#allocation2 + $0x18] sm:$0xf]
      %v652 = vld [vmem:[#allocation2 + $0x1c] sm:$0xf]
      %v653 = vld [vmem:[#allocation2 + $0x20] sm:$0xf]
      %v654 = vld [vmem:[#allocation2 + $0x24] sm:$0xf]
      %v655 = vld [vmem:[#allocation2 + $0x28] sm:$0xf]
      %v656 = vld [vmem:[#allocation2 + $0x2c] sm:$0xf]
      %v657 = vld [vmem:[#allocation2 + $0x30] sm:$0xf]
      %v658 = vld [vmem:[#allocation2 + $0x34] sm:$0xf]
      %v659 = vld [vmem:[#allocation2 + $0x38] sm:$0xf]
      %v660 = vld [vmem:[#allocation2 + $0x3c] sm:$0xf]
      %v661 = vld [vmem:[#allocation2 + $0x40] sm:$0xf]
      %v662 = vld [vmem:[#allocation2 + $0x44] sm:$0xf]
      %v663 = vld [vmem:[#allocation2 + $0x48] sm:$0xf]
      %v681 = vunpack.c.l.b16 %v646
      %v682 = vunpack.c.l.b16 %v647
      %v683 = vunpack.c.l.b16 %v648
      %v684 = vunpack.c.l.b16 %v649
      %v685 = vunpack.c.l.b16 %v650
      %v686 = vunpack.c.l.b16 %v651
      %v687 = vunpack.c.l.b16 %v652
      %v688 = vunpack.c.l.b16 %v653
      %v689 = vunpack.c.l.b16 %v654
      %v690 = vunpack.c.l.b16 %v655
      %v691 = vunpack.c.l.b16 %v656
      %v692 = vunpack.c.l.b16 %v657
      %v693 = vunpack.c.l.b16 %v658
      %v694 = vunpack.c.l.b16 %v659
      %v695 = vunpack.c.l.b16 %v660
      %v696 = vunpack.c.l.b16 %v661
      %v697 = vunpack.c.l.b16 %v662
      %v698 = vpack.c.b16 %v682, %v681
      %v699 = vpack.c.b16 %v684, %v683
      %v700 = vpack.c.b16 %v686, %v685
      %v701 = vpack.c.b16 %v688, %v687
      %v702 = vpack.c.b16 %v690, %v689
      %v703 = vpack.c.b16 %v692, %v691
      %v704 = vpack.c.b16 %v694, %v693
      %v705 = vpack.c.b16 %v696, %v695
      %v706 = vpack.c.b16 %v697, %v697
      %v707 = vpack.c.b16 %v683, %v682
      %v708 = vpack.c.b16 %v685, %v684
      %v709 = vpack.c.b16 %v687, %v686
      %v710 = vpack.c.b16 %v689, %v688
      %v711 = vpack.c.b16 %v691, %v690
      %v712 = vpack.c.b16 %v693, %v692
      %v713 = vpack.c.b16 %v695, %v694
      %v714 = vpack.c.b16 %v697, %v696
      %vm715 = vsmask.f32 3328
      %v717 = vshrl.u32 %v707, 16
      %v719 = vrot.slane %v717, 4
      %v720 = vshll.u32 %v707, 16
      %v722 = vrot.slane %v720, 5
      %v723 = vor.u32 %v719, %v722
      %v725 = vshrl.u32 %v708, 16
      %v727 = vrot.slane %v725, 4
      %v728 = vshll.u32 %v708, 16
      %v730 = vrot.slane %v728, 5
      %v731 = vor.u32 %v727, %v730
      %v732 = vsel %vm715, %v723, %v731
      %v734 = vshrl.u32 %v709, 16
      %v736 = vrot.slane %v734, 4
      %v737 = vshll.u32 %v709, 16
      %v739 = vrot.slane %v737, 5
      %v740 = vor.u32 %v736, %v739
      %v741 = vsel %vm715, %v731, %v740
      %v743 = vshrl.u32 %v710, 16
      %v745 = vrot.slane %v743, 4
      %v746 = vshll.u32 %v710, 16
      %v748 = vrot.slane %v746, 5
      %v749 = vor.u32 %v745, %v748
      %v750 = vsel %vm715, %v740, %v749
      %v752 = vshrl.u32 %v711, 16
      %v754 = vrot.slane %v752, 4
      %v755 = vshll.u32 %v711, 16
      %v757 = vrot.slane %v755, 5
      %v758 = vor.u32 %v754, %v757
      %v759 = vsel %vm715, %v749, %v758
      %v761 = vshrl.u32 %v712, 16
      %v763 = vrot.slane %v761, 4
      %v764 = vshll.u32 %v712, 16
      %v766 = vrot.slane %v764, 5
      %v767 = vor.u32 %v763, %v766
      %v768 = vsel %vm715, %v758, %v767
      %v770 = vshrl.u32 %v713, 16
      %v772 = vrot.slane %v770, 4
      %v773 = vshll.u32 %v713, 16
      %v775 = vrot.slane %v773, 5
      %v776 = vor.u32 %v772, %v775
      %v777 = vsel %vm715, %v767, %v776
      %v779 = vshrl.u32 %v714, 16
      %v781 = vrot.slane %v779, 4
      %v782 = vshll.u32 %v714, 16
      %v784 = vrot.slane %v782, 5
      %v785 = vor.u32 %v781, %v784
      %v786 = vsel %vm715, %v776, %v785
      %787 = vrot.lane.b32.xlu0 %v723, 4
      %v788 = vpop.permute.xlu0 %787
      %789 = vrot.lane.b32.xlu0 %v732, 4
      %v790 = vpop.permute.xlu0 %789
      %791 = vrot.lane.b32.xlu0 %v741, 4
      %v792 = vpop.permute.xlu0 %791
      %793 = vrot.lane.b32.xlu0 %v750, 4
      %v794 = vpop.permute.xlu0 %793
      %795 = vrot.lane.b32.xlu0 %v759, 4
      %v796 = vpop.permute.xlu0 %795
      %797 = vrot.lane.b32.xlu0 %v768, 4
      %v798 = vpop.permute.xlu0 %797
      %799 = vrot.lane.b32.xlu0 %v777, 4
      %v800 = vpop.permute.xlu0 %799
      %801 = vrot.lane.b32.xlu0 %v786, 4
      %v802 = vpop.permute.xlu0 %801
      %803 = vrot.lane.b32.xlu0 %v785, 4
      %v804 = vpop.permute.xlu0 %803
      %v806 = vunpack.c.l.b16 %v663
      %v807 = vpack.c.b16 %v806, %v806
      %vm808 = vcmask 1042432
      %v809 = vrot.slane %v707, 5
      %v810 = vrot.slane %v708, 5
      %v811 = vsel %vm808, %v809, %v810
      %v812 = vrot.slane %v709, 5
      %v813 = vsel %vm808, %v810, %v812
      %v814 = vrot.slane %v710, 5
      %v815 = vsel %vm808, %v812, %v814
      %v816 = vrot.slane %v711, 5
      %v817 = vsel %vm808, %v814, %v816
      %v818 = vrot.slane %v712, 5
      %v819 = vsel %vm808, %v816, %v818
      %v820 = vrot.slane %v713, 5
      %v821 = vsel %vm808, %v818, %v820
      %v822 = vrot.slane %v714, 5
      %v823 = vsel %vm808, %v820, %v822
      %v824 = vrot.slane %v807, 5
      %v825 = vsel %vm808, %v822, %v824
      %826 = vrot.lane.b32.xlu0 %v809, 8
      %v827 = vpop.permute.xlu0 %826
      %828 = vrot.lane.b32.xlu0 %v811, 8
      %v829 = vpop.permute.xlu0 %828
      %830 = vrot.lane.b32.xlu0 %v813, 8
      %v831 = vpop.permute.xlu0 %830
      %832 = vrot.lane.b32.xlu0 %v815, 8
      %v833 = vpop.permute.xlu0 %832
      %834 = vrot.lane.b32.xlu0 %v817, 8
      %v835 = vpop.permute.xlu0 %834
      %836 = vrot.lane.b32.xlu0 %v819, 8
      %v837 = vpop.permute.xlu0 %836
      %838 = vrot.lane.b32.xlu0 %v821, 8
      %v839 = vpop.permute.xlu0 %838
      %840 = vrot.lane.b32.xlu0 %v823, 8
      %v841 = vpop.permute.xlu0 %840
      %842 = vrot.lane.b32.xlu0 %v825, 8
      %v843 = vpop.permute.xlu0 %842
      %vm844 = vcmask 31744
      %v847 = vsel %vm844, %v698, %v788
      %v850 = vsel %vm844, %v699, %v790
      %v853 = vsel %vm844, %v700, %v792
      %v856 = vsel %vm844, %v701, %v794
      %v859 = vsel %vm844, %v702, %v796
      %v862 = vsel %vm844, %v703, %v798
      %v865 = vsel %vm844, %v704, %v800
      %v868 = vsel %vm844, %v705, %v802
      %v871 = vsel %vm844, %v706, %v804
      %v873 = vsel %vm251, %v847, %v827
      %v875 = vsel %vm251, %v850, %v829
      %v877 = vsel %vm251, %v853, %v831
      %v879 = vsel %vm251, %v856, %v833
      %v881 = vsel %vm251, %v859, %v835
      %v883 = vsel %vm251, %v862, %v837
      %v885 = vsel %vm251, %v865, %v839
      %v887 = vsel %vm251, %v868, %v841
      %v889 = vsel %vm251, %v871, %v843
      %v890 = vld [vmem:[%s1] sm:$0xf]
      %v891 = vld [vmem:[%s1 + $0x4] sm:$0x3]
      %s892 = scalar_lea.vmem [#allocation2], 8
      %v893 = vld [vmem:[%s892 + $0x4] sm:$0xf]
      %v894 = vld [vmem:[%s892 + $0x8] sm:$0xf]
      %v895 = vld [vmem:[%s892 + $0xc] sm:$0xf]
      %v896 = vld [vmem:[%s892 + $0x10] sm:$0xf]
      %v897 = vld [vmem:[%s892 + $0x14] sm:$0xf]
      %v898 = vld [vmem:[%s892 + $0x18] sm:$0xf]
      %v899 = vld [vmem:[%s892 + $0x1c] sm:$0xf]
      %v900 = vld [vmem:[%s892 + $0x20] sm:$0xf]
      %v901 = vld [vmem:[%s892 + $0x24] sm:$0xf]
      %v902 = vld [vmem:[%s892 + $0x28] sm:$0xf]
      %v903 = vld [vmem:[%s892 + $0x2c] sm:$0xf]
      %v904 = vld [vmem:[%s892 + $0x30] sm:$0xf]
      %v905 = vld [vmem:[%s892 + $0x34] sm:$0xf]
      %v906 = vld [vmem:[%s892 + $0x38] sm:$0xf]
      %v907 = vld [vmem:[%s892 + $0x3c] sm:$0xf]
      %v908 = vld [vmem:[%s892 + $0x40] sm:$0xf]
      %v909 = vld [vmem:[%s892 + $0x44] sm:$0xf]
      %v910 = vld [vmem:[%s892 + $0x48] sm:$0xf]
      %v928 = vunpack.c.l.b16 %v893
      %v929 = vunpack.c.l.b16 %v894
      %v930 = vunpack.c.l.b16 %v895
      %v931 = vunpack.c.l.b16 %v896
      %v932 = vunpack.c.l.b16 %v897
      %v933 = vunpack.c.l.b16 %v898
      %v934 = vunpack.c.l.b16 %v899
      %v935 = vunpack.c.l.b16 %v900
      %v936 = vunpack.c.l.b16 %v901
      %v937 = vunpack.c.l.b16 %v902
      %v938 = vunpack.c.l.b16 %v903
      %v939 = vunpack.c.l.b16 %v904
      %v940 = vunpack.c.l.b16 %v905
      %v941 = vunpack.c.l.b16 %v906
      %v942 = vunpack.c.l.b16 %v907
      %v943 = vunpack.c.l.b16 %v908
      %v944 = vunpack.c.l.b16 %v909
      %v945 = vpack.c.b16 %v929, %v928
      %v946 = vpack.c.b16 %v931, %v930
      %v947 = vpack.c.b16 %v933, %v932
      %v948 = vpack.c.b16 %v935, %v934
      %v949 = vpack.c.b16 %v937, %v936
      %v950 = vpack.c.b16 %v939, %v938
      %v951 = vpack.c.b16 %v941, %v940
      %v952 = vpack.c.b16 %v943, %v942
      %v953 = vpack.c.b16 %v944, %v944
      %v954 = vpack.c.b16 %v930, %v929
      %v955 = vpack.c.b16 %v932, %v931
      %v956 = vpack.c.b16 %v934, %v933
      %v957 = vpack.c.b16 %v936, %v935
      %v958 = vpack.c.b16 %v938, %v937
      %v959 = vpack.c.b16 %v940, %v939
      %v960 = vpack.c.b16 %v942, %v941
      %v961 = vpack.c.b16 %v944, %v943
      %v963 = vshrl.u32 %v954, 16
      %v965 = vrot.slane %v963, 4
      %v966 = vshll.u32 %v954, 16
      %v968 = vrot.slane %v966, 5
      %v969 = vor.u32 %v965, %v968
      %v971 = vshrl.u32 %v955, 16
      %v973 = vrot.slane %v971, 4
      %v974 = vshll.u32 %v955, 16
      %v976 = vrot.slane %v974, 5
      %v977 = vor.u32 %v973, %v976
      %v978 = vsel %vm715, %v969, %v977
      %v980 = vshrl.u32 %v956, 16
      %v982 = vrot.slane %v980, 4
      %v983 = vshll.u32 %v956, 16
      %v985 = vrot.slane %v983, 5
      %v986 = vor.u32 %v982, %v985
      %v987 = vsel %vm715, %v977, %v986
      %v989 = vshrl.u32 %v957, 16
      %v991 = vrot.slane %v989, 4
      %v992 = vshll.u32 %v957, 16
      %v994 = vrot.slane %v992, 5
      %v995 = vor.u32 %v991, %v994
      %v996 = vsel %vm715, %v986, %v995
      %v998 = vshrl.u32 %v958, 16
      %v1000 = vrot.slane %v998, 4
      %v1001 = vshll.u32 %v958, 16
      %v1003 = vrot.slane %v1001, 5
      %v1004 = vor.u32 %v1000, %v1003
      %v1005 = vsel %vm715, %v995, %v1004
      %v1007 = vshrl.u32 %v959, 16
      %v1009 = vrot.slane %v1007, 4
      %v1010 = vshll.u32 %v959, 16
      %v1012 = vrot.slane %v1010, 5
      %v1013 = vor.u32 %v1009, %v1012
      %v1014 = vsel %vm715, %v1004, %v1013
      %v1016 = vshrl.u32 %v960, 16
      %v1018 = vrot.slane %v1016, 4
      %v1019 = vshll.u32 %v960, 16
      %v1021 = vrot.slane %v1019, 5
      %v1022 = vor.u32 %v1018, %v1021
      %v1023 = vsel %vm715, %v1013, %v1022
      %v1025 = vshrl.u32 %v961, 16
      %v1027 = vrot.slane %v1025, 4
      %v1028 = vshll.u32 %v961, 16
      %v1030 = vrot.slane %v1028, 5
      %v1031 = vor.u32 %v1027, %v1030
      %v1032 = vsel %vm715, %v1022, %v1031
      %1033 = vrot.lane.b32.xlu0 %v969, 4
      %v1034 = vpop.permute.xlu0 %1033
      %1035 = vrot.lane.b32.xlu0 %v978, 4
      %v1036 = vpop.permute.xlu0 %1035
      %1037 = vrot.lane.b32.xlu0 %v987, 4
      %v1038 = vpop.permute.xlu0 %1037
      %1039 = vrot.lane.b32.xlu0 %v996, 4
      %v1040 = vpop.permute.xlu0 %1039
      %1041 = vrot.lane.b32.xlu0 %v1005, 4
      %v1042 = vpop.permute.xlu0 %1041
      %1043 = vrot.lane.b32.xlu0 %v1014, 4
      %v1044 = vpop.permute.xlu0 %1043
      %1045 = vrot.lane.b32.xlu0 %v1023, 4
      %v1046 = vpop.permute.xlu0 %1045
      %1047 = vrot.lane.b32.xlu0 %v1032, 4
      %v1048 = vpop.permute.xlu0 %1047
      %1049 = vrot.lane.b32.xlu0 %v1031, 4
      %v1050 = vpop.permute.xlu0 %1049
      %v1052 = vunpack.c.l.b16 %v910
      %v1053 = vpack.c.b16 %v1052, %v1052
      %v1054 = vrot.slane %v954, 5
      %v1055 = vrot.slane %v955, 5
      %v1056 = vsel %vm808, %v1054, %v1055
      %v1057 = vrot.slane %v956, 5
      %v1058 = vsel %vm808, %v1055, %v1057
      %v1059 = vrot.slane %v957, 5
      %v1060 = vsel %vm808, %v1057, %v1059
      %v1061 = vrot.slane %v958, 5
      %v1062 = vsel %vm808, %v1059, %v1061
      %v1063 = vrot.slane %v959, 5
      %v1064 = vsel %vm808, %v1061, %v1063
      %v1065 = vrot.slane %v960, 5
      %v1066 = vsel %vm808, %v1063, %v1065
      %v1067 = vrot.slane %v961, 5
      %v1068 = vsel %vm808, %v1065, %v1067
      %v1069 = vrot.slane %v1053, 5
      %v1070 = vsel %vm808, %v1067, %v1069
      %1071 = vrot.lane.b32.xlu0 %v1054, 8
      %v1072 = vpop.permute.xlu0 %1071
      %1073 = vrot.lane.b32.xlu0 %v1056, 8
      %v1074 = vpop.permute.xlu0 %1073
      %1075 = vrot.lane.b32.xlu0 %v1058, 8
      %v1076 = vpop.permute.xlu0 %1075
      %1077 = vrot.lane.b32.xlu0 %v1060, 8
      %v1078 = vpop.permute.xlu0 %1077
      %1079 = vrot.lane.b32.xlu0 %v1062, 8
      %v1080 = vpop.permute.xlu0 %1079
      %1081 = vrot.lane.b32.xlu0 %v1064, 8
      %v1082 = vpop.permute.xlu0 %1081
      %1083 = vrot.lane.b32.xlu0 %v1066, 8
      %v1084 = vpop.permute.xlu0 %1083
      %1085 = vrot.lane.b32.xlu0 %v1068, 8
      %v1086 = vpop.permute.xlu0 %1085
      %1087 = vrot.lane.b32.xlu0 %v1070, 8
      %v1088 = vpop.permute.xlu0 %1087
      %v1091 = vsel %vm844, %v945, %v1034
      %v1094 = vsel %vm844, %v946, %v1036
      %v1097 = vsel %vm844, %v947, %v1038
      %v1100 = vsel %vm844, %v948, %v1040
      %v1103 = vsel %vm844, %v949, %v1042
      %v1106 = vsel %vm844, %v950, %v1044
      %v1109 = vsel %vm844, %v951, %v1046
      %v1112 = vsel %vm844, %v952, %v1048
      %v1115 = vsel %vm844, %v953, %v1050
      %v1117 = vsel %vm251, %v1091, %v1072
      %v1119 = vsel %vm251, %v1094, %v1074
      %v1121 = vsel %vm251, %v1097, %v1076
      %v1123 = vsel %vm251, %v1100, %v1078
      %v1125 = vsel %vm251, %v1103, %v1080
      %v1127 = vsel %vm251, %v1106, %v1082
      %v1129 = vsel %vm251, %v1109, %v1084
      %v1131 = vsel %vm251, %v1112, %v1086
      %v1133 = vsel %vm251, %v1115, %v1088
      %s1134 = scalar_lea.vmem %s1, 8
      %v1135 = vld [vmem:[%s1134] sm:$0xf]
      %v1136 = vld [vmem:[%s1134 + $0x4] sm:$0x3]
      %vm1137 = vsmask.f32 4352
      %v1138 = vshrl.u32 %v1117, 16
      %v1140 = vrot.slane %v1138, 3
      %v1141 = vshll.u32 %v1117, 16
      %v1143 = vrot.slane %v1141, 4
      %v1144 = vor.u32 %v1140, %v1143
      %v1145 = vshrl.u32 %v1119, 16
      %v1147 = vrot.slane %v1145, 3
      %v1148 = vshll.u32 %v1119, 16
      %v1150 = vrot.slane %v1148, 4
      %v1151 = vor.u32 %v1147, %v1150
      %v1152 = vsel %vm1137, %v1144, %v1151
      %v1153 = vshrl.u32 %v1121, 16
      %v1155 = vrot.slane %v1153, 3
      %v1156 = vshll.u32 %v1121, 16
      %v1158 = vrot.slane %v1156, 4
      %v1159 = vor.u32 %v1155, %v1158
      %v1160 = vsel %vm1137, %v1151, %v1159
      %v1161 = vshrl.u32 %v1123, 16
      %v1163 = vrot.slane %v1161, 3
      %v1164 = vshll.u32 %v1123, 16
      %v1166 = vrot.slane %v1164, 4
      %v1167 = vor.u32 %v1163, %v1166
      %v1168 = vsel %vm1137, %v1159, %v1167
      %v1169 = vshrl.u32 %v1125, 16
      %v1171 = vrot.slane %v1169, 3
      %v1172 = vshll.u32 %v1125, 16
      %v1174 = vrot.slane %v1172, 4
      %v1175 = vor.u32 %v1171, %v1174
      %v1176 = vsel %vm1137, %v1167, %v1175
      %v1177 = vshrl.u32 %v1127, 16
      %v1179 = vrot.slane %v1177, 3
      %v1180 = vshll.u32 %v1127, 16
      %v1182 = vrot.slane %v1180, 4
      %v1183 = vor.u32 %v1179, %v1182
      %v1184 = vsel %vm1137, %v1175, %v1183
      %v1185 = vshrl.u32 %v1129, 16
      %v1187 = vrot.slane %v1185, 3
      %v1188 = vshll.u32 %v1129, 16
      %v1190 = vrot.slane %v1188, 4
      %v1191 = vor.u32 %v1187, %v1190
      %v1192 = vsel %vm1137, %v1183, %v1191
      %v1193 = vshrl.u32 %v1131, 16
      %v1195 = vrot.slane %v1193, 3
      %v1196 = vshll.u32 %v1131, 16
      %v1198 = vrot.slane %v1196, 4
      %v1199 = vor.u32 %v1195, %v1198
      %v1200 = vsel %vm1137, %v1191, %v1199
      %v1201 = vshrl.u32 %v1133, 16
      %v1203 = vrot.slane %v1201, 3
      %v1204 = vshll.u32 %v1133, 16
      %v1206 = vrot.slane %v1204, 4
      %v1207 = vor.u32 %v1203, %v1206
      %v1208 = vsel %vm1137, %v1199, %v1207
      %v1211 = vunpack.c.l.b16 %v1135
      %v1212 = vunpack.c.l.b16 %v1136
      %v1213 = vpack.c.b16 %v1212, %v1211
      %vm1214 = vcmask 97280
      %v1216 = vsel %vm1214, %v1152, 0
      %v1219 = vsel %vm1214, %v1160, 0
      %v1222 = vsel %vm1214, %v1168, 0
      %v1225 = vsel %vm1214, %v1176, 0
      %v1228 = vsel %vm1214, %v1184, 0
      %v1231 = vsel %vm1214, %v1192, 0
      %v1234 = vsel %vm1214, %v1200, 0
      %v1237 = vsel %vm1214, %v1208, 0
      %vm1239 = vcmask 1045504
      %v1241 = vsel %vm1239, %v1213, 0
      %1243 = vmatpush.bf16.msra.mxu0 0
      %1244 = vmatpush.bf16.msra.mxu0 0
      %1245 = vmatpush.bf16.msra.mxu0 0
      %1246 = vmatpush.bf16.msra.mxu0 0
      %1247 = vmatpush.bf16.msra.mxu0 0
      %1248 = vmatpush.bf16.msra.mxu0 0
      %1249 = vmatpush.bf16.msra.mxu0 0
      %1250 = vmatpush.bf16.msra.mxu0 %v1241
      %1251 = vmatmul.bf16.gmra.mxu0 %v1216
      %v1252 = vpop.f32.mrf.mxu0
      %v1253 = vadd.f32 0.0, %v1252
      %v1254 = vpop.f32.mrf.mxu0
      %v1255 = vadd.f32 0.0, %v1254
      %1256 = vmatmul.bf16.gmra.mxu0 %v1219
      %v1257 = vpop.f32.mrf.mxu0
      %v1258 = vadd.f32 0.0, %v1257
      %v1259 = vpop.f32.mrf.mxu0
      %v1260 = vadd.f32 0.0, %v1259
      %1261 = vmatmul.bf16.gmra.mxu0 %v1222
      %v1262 = vpop.f32.mrf.mxu0
      %v1263 = vadd.f32 0.0, %v1262
      %v1264 = vpop.f32.mrf.mxu0
      %v1265 = vadd.f32 0.0, %v1264
      %1266 = vmatmul.bf16.gmra.mxu0 %v1225
      %v1267 = vpop.f32.mrf.mxu0
      %v1268 = vadd.f32 0.0, %v1267
      %v1269 = vpop.f32.mrf.mxu0
      %v1270 = vadd.f32 0.0, %v1269
      %1271 = vmatmul.bf16.gmra.mxu0 %v1228
      %v1272 = vpop.f32.mrf.mxu0
      %v1273 = vadd.f32 0.0, %v1272
      %v1274 = vpop.f32.mrf.mxu0
      %v1275 = vadd.f32 0.0, %v1274
      %1276 = vmatmul.bf16.gmra.mxu0 %v1231
      %v1277 = vpop.f32.mrf.mxu0
      %v1278 = vadd.f32 0.0, %v1277
      %v1279 = vpop.f32.mrf.mxu0
      %v1280 = vadd.f32 0.0, %v1279
      %1281 = vmatmul.bf16.gmra.mxu0 %v1234
      %v1282 = vpop.f32.mrf.mxu0
      %v1283 = vadd.f32 0.0, %v1282
      %v1284 = vpop.f32.mrf.mxu0
      %v1285 = vadd.f32 0.0, %v1284
      %1286 = vmatmul.bf16.gmra.mxu0 %v1237
      %v1287 = vpop.f32.mrf.mxu0
      %v1288 = vadd.f32 0.0, %v1287
      %v1289 = vpop.f32.mrf.mxu0
      %v1290 = vadd.f32 0.0, %v1289
      %1291 = vdwg.mxu0
      %v1292 = vshrl.u32 %v873, 16
      %v1294 = vrot.slane %v1292, 3
      %v1295 = vshll.u32 %v873, 16
      %v1297 = vrot.slane %v1295, 4
      %v1298 = vor.u32 %v1294, %v1297
      %v1299 = vshrl.u32 %v875, 16
      %v1301 = vrot.slane %v1299, 3
      %v1302 = vshll.u32 %v875, 16
      %v1304 = vrot.slane %v1302, 4
      %v1305 = vor.u32 %v1301, %v1304
      %v1306 = vsel %vm1137, %v1298, %v1305
      %v1307 = vshrl.u32 %v877, 16
      %v1309 = vrot.slane %v1307, 3
      %v1310 = vshll.u32 %v877, 16
      %v1312 = vrot.slane %v1310, 4
      %v1313 = vor.u32 %v1309, %v1312
      %v1314 = vsel %vm1137, %v1305, %v1313
      %v1315 = vshrl.u32 %v879, 16
      %v1317 = vrot.slane %v1315, 3
      %v1318 = vshll.u32 %v879, 16
      %v1320 = vrot.slane %v1318, 4
      %v1321 = vor.u32 %v1317, %v1320
      %v1322 = vsel %vm1137, %v1313, %v1321
      %v1323 = vshrl.u32 %v881, 16
      %v1325 = vrot.slane %v1323, 3
      %v1326 = vshll.u32 %v881, 16
      %v1328 = vrot.slane %v1326, 4
      %v1329 = vor.u32 %v1325, %v1328
      %v1330 = vsel %vm1137, %v1321, %v1329
      %v1331 = vshrl.u32 %v883, 16
      %v1333 = vrot.slane %v1331, 3
      %v1334 = vshll.u32 %v883, 16
      %v1336 = vrot.slane %v1334, 4
      %v1337 = vor.u32 %v1333, %v1336
      %v1338 = vsel %vm1137, %v1329, %v1337
      %v1339 = vshrl.u32 %v885, 16
      %v1341 = vrot.slane %v1339, 3
      %v1342 = vshll.u32 %v885, 16
      %v1344 = vrot.slane %v1342, 4
      %v1345 = vor.u32 %v1341, %v1344
      %v1346 = vsel %vm1137, %v1337, %v1345
      %v1347 = vshrl.u32 %v887, 16
      %v1349 = vrot.slane %v1347, 3
      %v1350 = vshll.u32 %v887, 16
      %v1352 = vrot.slane %v1350, 4
      %v1353 = vor.u32 %v1349, %v1352
      %v1354 = vsel %vm1137, %v1345, %v1353
      %v1355 = vshrl.u32 %v889, 16
      %v1357 = vrot.slane %v1355, 3
      %v1358 = vshll.u32 %v889, 16
      %v1360 = vrot.slane %v1358, 4
      %v1361 = vor.u32 %v1357, %v1360
      %v1362 = vsel %vm1137, %v1353, %v1361
      %v1365 = vunpack.c.l.b16 %v890
      %v1366 = vunpack.c.l.b16 %v891
      %v1367 = vpack.c.b16 %v1366, %v1365
      %v1369 = vsel %vm1214, %v1306, 0
      %v1372 = vsel %vm1214, %v1314, 0
      %v1375 = vsel %vm1214, %v1322, 0
      %v1378 = vsel %vm1214, %v1330, 0
      %v1381 = vsel %vm1214, %v1338, 0
      %v1384 = vsel %vm1214, %v1346, 0
      %v1387 = vsel %vm1214, %v1354, 0
      %v1390 = vsel %vm1214, %v1362, 0
      %v1393 = vsel %vm1239, %v1367, 0
      %1395 = vmatpush.bf16.msra.mxu0 0
      %1396 = vmatpush.bf16.msra.mxu0 0
      %1397 = vmatpush.bf16.msra.mxu0 0
      %1398 = vmatpush.bf16.msra.mxu0 0
      %1399 = vmatpush.bf16.msra.mxu0 0
      %1400 = vmatpush.bf16.msra.mxu0 0
      %1401 = vmatpush.bf16.msra.mxu0 0
      %1402 = vmatpush.bf16.msra.mxu0 %v1393
      %1403 = vmatmul.bf16.gmra.mxu0 %v1369
      %v1404 = vpop.f32.mrf.mxu0
      %v1405 = vadd.f32 %v1253, %v1404
      %v1406 = vpop.f32.mrf.mxu0
      %v1407 = vadd.f32 %v1255, %v1406
      %1408 = vmatmul.bf16.gmra.mxu0 %v1372
      %v1409 = vpop.f32.mrf.mxu0
      %v1410 = vadd.f32 %v1258, %v1409
      %v1411 = vpop.f32.mrf.mxu0
      %v1412 = vadd.f32 %v1260, %v1411
      %1413 = vmatmul.bf16.gmra.mxu0 %v1375
      %v1414 = vpop.f32.mrf.mxu0
      %v1415 = vadd.f32 %v1263, %v1414
      %v1416 = vpop.f32.mrf.mxu0
      %v1417 = vadd.f32 %v1265, %v1416
      %1418 = vmatmul.bf16.gmra.mxu0 %v1378
      %v1419 = vpop.f32.mrf.mxu0
      %v1420 = vadd.f32 %v1268, %v1419
      %v1421 = vpop.f32.mrf.mxu0
      %v1422 = vadd.f32 %v1270, %v1421
      %1423 = vmatmul.bf16.gmra.mxu0 %v1381
      %v1424 = vpop.f32.mrf.mxu0
      %v1425 = vadd.f32 %v1273, %v1424
      %v1426 = vpop.f32.mrf.mxu0
      %v1427 = vadd.f32 %v1275, %v1426
      %1428 = vmatmul.bf16.gmra.mxu0 %v1384
      %v1429 = vpop.f32.mrf.mxu0
      %v1430 = vadd.f32 %v1278, %v1429
      %v1431 = vpop.f32.mrf.mxu0
      %v1432 = vadd.f32 %v1280, %v1431
      %1433 = vmatmul.bf16.gmra.mxu0 %v1387
      %v1434 = vpop.f32.mrf.mxu0
      %v1435 = vadd.f32 %v1283, %v1434
      %v1436 = vpop.f32.mrf.mxu0
      %v1437 = vadd.f32 %v1285, %v1436
      %1438 = vmatmul.bf16.gmra.mxu0 %v1390
      %v1439 = vpop.f32.mrf.mxu0
      %v1440 = vadd.f32 %v1288, %v1439
      %v1441 = vpop.f32.mrf.mxu0
      %v1442 = vadd.f32 %v1290, %v1441
      %1443 = vdwg.mxu0
      %v1444 = vld [vmem:[%s420 + $0x4] sm:$0xf]
      %v1445 = vld [vmem:[%s420 + $0x8] sm:$0xf]
      %v1446 = vld [vmem:[%s420 + $0xc] sm:$0xf]
      %v1447 = vld [vmem:[%s420 + $0x10] sm:$0xf]
      %v1448 = vld [vmem:[%s420 + $0x14] sm:$0xf]
      %v1449 = vld [vmem:[%s420 + $0x18] sm:$0xf]
      %v1450 = vld [vmem:[%s420 + $0x1c] sm:$0xf]
      %v1451 = vld [vmem:[%s420 + $0x20] sm:$0xf]
      %v1452 = vld [vmem:[%s420 + $0x24] sm:$0xf]
      %v1453 = vld [vmem:[%s420 + $0x28] sm:$0xf]
      %v1454 = vld [vmem:[%s420 + $0x2c] sm:$0xf]
      %v1455 = vld [vmem:[%s420 + $0x30] sm:$0xf]
      %v1456 = vld [vmem:[%s420 + $0x34] sm:$0xf]
      %v1457 = vld [vmem:[%s420 + $0x38] sm:$0xf]
      %v1458 = vld [vmem:[%s420 + $0x3c] sm:$0xf]
      %v1459 = vld [vmem:[%s420 + $0x40] sm:$0xf]
      %v1460 = vld [vmem:[%s420 + $0x44] sm:$0xf]
      %v1461 = vld [vmem:[%s420 + $0x48] sm:$0xf]
      %v1479 = vunpack.c.l.b16 %v1444
      %v1480 = vunpack.c.l.b16 %v1445
      %v1481 = vunpack.c.l.b16 %v1446
      %v1482 = vunpack.c.l.b16 %v1447
      %v1483 = vunpack.c.l.b16 %v1448
      %v1484 = vunpack.c.l.b16 %v1449
      %v1485 = vunpack.c.l.b16 %v1450
      %v1486 = vunpack.c.l.b16 %v1451
      %v1487 = vunpack.c.l.b16 %v1452
      %v1488 = vunpack.c.l.b16 %v1453
      %v1489 = vunpack.c.l.b16 %v1454
      %v1490 = vunpack.c.l.b16 %v1455
      %v1491 = vunpack.c.l.b16 %v1456
      %v1492 = vunpack.c.l.b16 %v1457
      %v1493 = vunpack.c.l.b16 %v1458
      %v1494 = vunpack.c.l.b16 %v1459
      %v1495 = vunpack.c.l.b16 %v1460
      %v1496 = vpack.c.b16 %v1480, %v1479
      %v1497 = vpack.c.b16 %v1482, %v1481
      %v1498 = vpack.c.b16 %v1484, %v1483
      %v1499 = vpack.c.b16 %v1486, %v1485
      %v1500 = vpack.c.b16 %v1488, %v1487
      %v1501 = vpack.c.b16 %v1490, %v1489
      %v1502 = vpack.c.b16 %v1492, %v1491
      %v1503 = vpack.c.b16 %v1494, %v1493
      %v1504 = vpack.c.b16 %v1495, %v1495
      %v1505 = vpack.c.b16 %v1481, %v1480
      %v1506 = vpack.c.b16 %v1483, %v1482
      %v1507 = vpack.c.b16 %v1485, %v1484
      %v1508 = vpack.c.b16 %v1487, %v1486
      %v1509 = vpack.c.b16 %v1489, %v1488
      %v1510 = vpack.c.b16 %v1491, %v1490
      %v1511 = vpack.c.b16 %v1493, %v1492
      %v1512 = vpack.c.b16 %v1495, %v1494
      %v1514 = vshrl.u32 %v1505, 16
      %v1516 = vrot.slane %v1514, 4
      %v1517 = vshll.u32 %v1505, 16
      %v1519 = vrot.slane %v1517, 5
      %v1520 = vor.u32 %v1516, %v1519
      %v1522 = vshrl.u32 %v1506, 16
      %v1524 = vrot.slane %v1522, 4
      %v1525 = vshll.u32 %v1506, 16
      %v1527 = vrot.slane %v1525, 5
      %v1528 = vor.u32 %v1524, %v1527
      %v1529 = vsel %vm715, %v1520, %v1528
      %v1531 = vshrl.u32 %v1507, 16
      %v1533 = vrot.slane %v1531, 4
      %v1534 = vshll.u32 %v1507, 16
      %v1536 = vrot.slane %v1534, 5
      %v1537 = vor.u32 %v1533, %v1536
      %v1538 = vsel %vm715, %v1528, %v1537
      %v1540 = vshrl.u32 %v1508, 16
      %v1542 = vrot.slane %v1540, 4
      %v1543 = vshll.u32 %v1508, 16
      %v1545 = vrot.slane %v1543, 5
      %v1546 = vor.u32 %v1542, %v1545
      %v1547 = vsel %vm715, %v1537, %v1546
      %v1549 = vshrl.u32 %v1509, 16
      %v1551 = vrot.slane %v1549, 4
      %v1552 = vshll.u32 %v1509, 16
      %v1554 = vrot.slane %v1552, 5
      %v1555 = vor.u32 %v1551, %v1554
      %v1556 = vsel %vm715, %v1546, %v1555
      %v1558 = vshrl.u32 %v1510, 16
      %v1560 = vrot.slane %v1558, 4
      %v1561 = vshll.u32 %v1510, 16
      %v1563 = vrot.slane %v1561, 5
      %v1564 = vor.u32 %v1560, %v1563
      %v1565 = vsel %vm715, %v1555, %v1564
      %v1567 = vshrl.u32 %v1511, 16
      %v1569 = vrot.slane %v1567, 4
      %v1570 = vshll.u32 %v1511, 16
      %v1572 = vrot.slane %v1570, 5
      %v1573 = vor.u32 %v1569, %v1572
      %v1574 = vsel %vm715, %v1564, %v1573
      %v1576 = vshrl.u32 %v1512, 16
      %v1578 = vrot.slane %v1576, 4
      %v1579 = vshll.u32 %v1512, 16
      %v1581 = vrot.slane %v1579, 5
      %v1582 = vor.u32 %v1578, %v1581
      %v1583 = vsel %vm715, %v1573, %v1582
      %1584 = vrot.lane.b32.xlu0 %v1520, 4
      %v1585 = vpop.permute.xlu0 %1584
      %1586 = vrot.lane.b32.xlu0 %v1529, 4
      %v1587 = vpop.permute.xlu0 %1586
      %1588 = vrot.lane.b32.xlu0 %v1538, 4
      %v1589 = vpop.permute.xlu0 %1588
      %1590 = vrot.lane.b32.xlu0 %v1547, 4
      %v1591 = vpop.permute.xlu0 %1590
      %1592 = vrot.lane.b32.xlu0 %v1556, 4
      %v1593 = vpop.permute.xlu0 %1592
      %1594 = vrot.lane.b32.xlu0 %v1565, 4
      %v1595 = vpop.permute.xlu0 %1594
      %1596 = vrot.lane.b32.xlu0 %v1574, 4
      %v1597 = vpop.permute.xlu0 %1596
      %1598 = vrot.lane.b32.xlu0 %v1583, 4
      %v1599 = vpop.permute.xlu0 %1598
      %1600 = vrot.lane.b32.xlu0 %v1582, 4
      %v1601 = vpop.permute.xlu0 %1600
      %v1603 = vunpack.c.l.b16 %v1461
      %v1604 = vpack.c.b16 %v1603, %v1603
      %v1605 = vrot.slane %v1505, 5
      %v1606 = vrot.slane %v1506, 5
      %v1607 = vsel %vm808, %v1605, %v1606
      %v1608 = vrot.slane %v1507, 5
      %v1609 = vsel %vm808, %v1606, %v1608
      %v1610 = vrot.slane %v1508, 5
      %v1611 = vsel %vm808, %v1608, %v1610
      %v1612 = vrot.slane %v1509, 5
      %v1613 = vsel %vm808, %v1610, %v1612
      %v1614 = vrot.slane %v1510, 5
      %v1615 = vsel %vm808, %v1612, %v1614
      %v1616 = vrot.slane %v1511, 5
      %v1617 = vsel %vm808, %v1614, %v1616
      %v1618 = vrot.slane %v1512, 5
      %v1619 = vsel %vm808, %v1616, %v1618
      %v1620 = vrot.slane %v1604, 5
      %v1621 = vsel %vm808, %v1618, %v1620
      %1622 = vrot.lane.b32.xlu0 %v1605, 8
      %v1623 = vpop.permute.xlu0 %1622
      %1624 = vrot.lane.b32.xlu0 %v1607, 8
      %v1625 = vpop.permute.xlu0 %1624
      %1626 = vrot.lane.b32.xlu0 %v1609, 8
      %v1627 = vpop.permute.xlu0 %1626
      %1628 = vrot.lane.b32.xlu0 %v1611, 8
      %v1629 = vpop.permute.xlu0 %1628
      %1630 = vrot.lane.b32.xlu0 %v1613, 8
      %v1631 = vpop.permute.xlu0 %1630
      %1632 = vrot.lane.b32.xlu0 %v1615, 8
      %v1633 = vpop.permute.xlu0 %1632
      %1634 = vrot.lane.b32.xlu0 %v1617, 8
      %v1635 = vpop.permute.xlu0 %1634
      %1636 = vrot.lane.b32.xlu0 %v1619, 8
      %v1637 = vpop.permute.xlu0 %1636
      %1638 = vrot.lane.b32.xlu0 %v1621, 8
      %v1639 = vpop.permute.xlu0 %1638
      %v1642 = vsel %vm844, %v1496, %v1585
      %v1645 = vsel %vm844, %v1497, %v1587
      %v1648 = vsel %vm844, %v1498, %v1589
      %v1651 = vsel %vm844, %v1499, %v1591
      %v1654 = vsel %vm844, %v1500, %v1593
      %v1657 = vsel %vm844, %v1501, %v1595
      %v1660 = vsel %vm844, %v1502, %v1597
      %v1663 = vsel %vm844, %v1503, %v1599
      %v1666 = vsel %vm844, %v1504, %v1601
      %v1668 = vsel %vm251, %v1642, %v1623
      %v1670 = vsel %vm251, %v1645, %v1625
      %v1672 = vsel %vm251, %v1648, %v1627
      %v1674 = vsel %vm251, %v1651, %v1629
      %v1676 = vsel %vm251, %v1654, %v1631
      %v1678 = vsel %vm251, %v1657, %v1633
      %v1680 = vsel %vm251, %v1660, %v1635
      %v1682 = vsel %vm251, %v1663, %v1637
      %v1684 = vsel %vm251, %v1666, %v1639
      %s1685 = scalar_lea.vmem %s1, 16
      %v1686 = vld [vmem:[%s1685] sm:$0xf]
      %v1687 = vld [vmem:[%s1685 + $0x4] sm:$0x3]
      %v1688 = vshrl.u32 %v1668, 16
      %v1690 = vrot.slane %v1688, 3
      %v1691 = vshll.u32 %v1668, 16
      %v1693 = vrot.slane %v1691, 4
      %v1694 = vor.u32 %v1690, %v1693
      %v1695 = vshrl.u32 %v1670, 16
      %v1697 = vrot.slane %v1695, 3
      %v1698 = vshll.u32 %v1670, 16
      %v1700 = vrot.slane %v1698, 4
      %v1701 = vor.u32 %v1697, %v1700
      %v1702 = vsel %vm1137, %v1694, %v1701
      %v1703 = vshrl.u32 %v1672, 16
      %v1705 = vrot.slane %v1703, 3
      %v1706 = vshll.u32 %v1672, 16
      %v1708 = vrot.slane %v1706, 4
      %v1709 = vor.u32 %v1705, %v1708
      %v1710 = vsel %vm1137, %v1701, %v1709
      %v1711 = vshrl.u32 %v1674, 16
      %v1713 = vrot.slane %v1711, 3
      %v1714 = vshll.u32 %v1674, 16
      %v1716 = vrot.slane %v1714, 4
      %v1717 = vor.u32 %v1713, %v1716
      %v1718 = vsel %vm1137, %v1709, %v1717
      %v1719 = vshrl.u32 %v1676, 16
      %v1721 = vrot.slane %v1719, 3
      %v1722 = vshll.u32 %v1676, 16
      %v1724 = vrot.slane %v1722, 4
      %v1725 = vor.u32 %v1721, %v1724
      %v1726 = vsel %vm1137, %v1717, %v1725
      %v1727 = vshrl.u32 %v1678, 16
      %v1729 = vrot.slane %v1727, 3
      %v1730 = vshll.u32 %v1678, 16
      %v1732 = vrot.slane %v1730, 4
      %v1733 = vor.u32 %v1729, %v1732
      %v1734 = vsel %vm1137, %v1725, %v1733
      %v1735 = vshrl.u32 %v1680, 16
      %v1737 = vrot.slane %v1735, 3
      %v1738 = vshll.u32 %v1680, 16
      %v1740 = vrot.slane %v1738, 4
      %v1741 = vor.u32 %v1737, %v1740
      %v1742 = vsel %vm1137, %v1733, %v1741
      %v1743 = vshrl.u32 %v1682, 16
      %v1745 = vrot.slane %v1743, 3
      %v1746 = vshll.u32 %v1682, 16
      %v1748 = vrot.slane %v1746, 4
      %v1749 = vor.u32 %v1745, %v1748
      %v1750 = vsel %vm1137, %v1741, %v1749
      %v1751 = vshrl.u32 %v1684, 16
      %v1753 = vrot.slane %v1751, 3
      %v1754 = vshll.u32 %v1684, 16
      %v1756 = vrot.slane %v1754, 4
      %v1757 = vor.u32 %v1753, %v1756
      %v1758 = vsel %vm1137, %v1749, %v1757
      %v1761 = vunpack.c.l.b16 %v1686
      %v1762 = vunpack.c.l.b16 %v1687
      %v1763 = vpack.c.b16 %v1762, %v1761
      %v1765 = vsel %vm1214, %v1702, 0
      %v1768 = vsel %vm1214, %v1710, 0
      %v1771 = vsel %vm1214, %v1718, 0
      %v1774 = vsel %vm1214, %v1726, 0
      %v1777 = vsel %vm1214, %v1734, 0
      %v1780 = vsel %vm1214, %v1742, 0
      %v1783 = vsel %vm1214, %v1750, 0
      %v1786 = vsel %vm1214, %v1758, 0
      %v1789 = vsel %vm1239, %v1763, 0
      %1791 = vmatpush.bf16.msra.mxu0 0
      %1792 = vmatpush.bf16.msra.mxu0 0
      %1793 = vmatpush.bf16.msra.mxu0 0
      %1794 = vmatpush.bf16.msra.mxu0 0
      %1795 = vmatpush.bf16.msra.mxu0 0
      %1796 = vmatpush.bf16.msra.mxu0 0
      %1797 = vmatpush.bf16.msra.mxu0 0
      %1798 = vmatpush.bf16.msra.mxu0 %v1789
      %1799 = vmatmul.bf16.gmra.mxu0 %v1765
      %v1800 = vpop.f32.mrf.mxu0
      %v1801 = vadd.f32 0.0, %v1800
      %v1802 = vpop.f32.mrf.mxu0
      %v1803 = vadd.f32 0.0, %v1802
      %1804 = vmatmul.bf16.gmra.mxu0 %v1768
      %v1805 = vpop.f32.mrf.mxu0
      %v1806 = vadd.f32 0.0, %v1805
      %v1807 = vpop.f32.mrf.mxu0
      %v1808 = vadd.f32 0.0, %v1807
      %1809 = vmatmul.bf16.gmra.mxu0 %v1771
      %v1810 = vpop.f32.mrf.mxu0
      %v1811 = vadd.f32 0.0, %v1810
      %v1812 = vpop.f32.mrf.mxu0
      %v1813 = vadd.f32 0.0, %v1812
      %1814 = vmatmul.bf16.gmra.mxu0 %v1774
      %v1815 = vpop.f32.mrf.mxu0
      %v1816 = vadd.f32 0.0, %v1815
      %v1817 = vpop.f32.mrf.mxu0
      %v1818 = vadd.f32 0.0, %v1817
      %1819 = vmatmul.bf16.gmra.mxu0 %v1777
      %v1820 = vpop.f32.mrf.mxu0
      %v1821 = vadd.f32 0.0, %v1820
      %v1822 = vpop.f32.mrf.mxu0
      %v1823 = vadd.f32 0.0, %v1822
      %1824 = vmatmul.bf16.gmra.mxu0 %v1780
      %v1825 = vpop.f32.mrf.mxu0
      %v1826 = vadd.f32 0.0, %v1825
      %v1827 = vpop.f32.mrf.mxu0
      %v1828 = vadd.f32 0.0, %v1827
      %1829 = vmatmul.bf16.gmra.mxu0 %v1783
      %v1830 = vpop.f32.mrf.mxu0
      %v1831 = vadd.f32 0.0, %v1830
      %v1832 = vpop.f32.mrf.mxu0
      %v1833 = vadd.f32 0.0, %v1832
      %1834 = vmatmul.bf16.gmra.mxu0 %v1786
      %v1835 = vpop.f32.mrf.mxu0
      %v1836 = vadd.f32 0.0, %v1835
      %v1837 = vpop.f32.mrf.mxu0
      %v1838 = vadd.f32 0.0, %v1837
      %1839 = vdwg.mxu0
      %v1840 = vadd.f32 %v1405, %v1801
      %v1841 = vadd.f32 %v1407, %v1803
      %v1842 = vadd.f32 %v1410, %v1806
      %v1843 = vadd.f32 %v1412, %v1808
      %v1844 = vadd.f32 %v1415, %v1811
      %v1845 = vadd.f32 %v1417, %v1813
      %v1846 = vadd.f32 %v1420, %v1816
      %v1847 = vadd.f32 %v1422, %v1818
      %v1848 = vadd.f32 %v1425, %v1821
      %v1849 = vadd.f32 %v1427, %v1823
      %v1850 = vadd.f32 %v1430, %v1826
      %v1851 = vadd.f32 %v1432, %v1828
      %v1852 = vadd.f32 %v1435, %v1831
      %v1853 = vadd.f32 %v1437, %v1833
      %v1854 = vadd.f32 %v1440, %v1836
      %v1855 = vadd.f32 %v1442, %v1838
      %v1856 = vlaneseq
      %v1857 = vshrl.u32 %v1856, 7
      %v1858 = vadd.s32 %v1857, 8
      %v1859 = vadd.s32 %v1857, 16
      %v1860 = vadd.s32 %v1857, 24
      %v1861 = vadd.s32 %v1857, 32
      %v1862 = vadd.s32 %v1857, 40
      %v1863 = vadd.s32 %v1857, 48
      %v1864 = vadd.s32 %v1857, 56
      %v1865 = vadd.s32 %v1857, 64
      %v1866 = vadd.s32 %v1857, 72
      %v1867 = vadd.s32 %v1857, 80
      %v1868 = vadd.s32 %v1857, 88
      %v1869 = vadd.s32 %v1857, 96
      %v1870 = vadd.s32 %v1857, 104
      %v1871 = vadd.s32 %v1857, 112
      %v1872 = vadd.s32 %v1857, 120
      %vm1873 = vcmp.lt.s32.totalorder %v1857, 0
      %v1874 = vsub.s32 0, %v1857
      %v1875 = vsel %vm1873, %v1874, %v1857
      %v1876 = vshrl.u32 %v1875, 4
      %v1877 = vand.u32 %v1875, 15
      %v1878 = vsub.s32 0, %v1877
      %v1879 = vsel %vm1873, %v1878, %v1877
      %vm1880 = vcmp.lt.s32.totalorder %v1858, 0
      %v1881 = vsub.s32 0, %v1858
      %v1882 = vsel %vm1880, %v1881, %v1858
      %v1883 = vshrl.u32 %v1882, 4
      %v1884 = vand.u32 %v1882, 15
      %v1885 = vsub.s32 0, %v1884
      %v1886 = vsel %vm1880, %v1885, %v1884
      %vm1887 = vcmp.lt.s32.totalorder %v1859, 0
      %v1888 = vsub.s32 0, %v1859
      %v1889 = vsel %vm1887, %v1888, %v1859
      %v1890 = vshrl.u32 %v1889, 4
      %v1891 = vand.u32 %v1889, 15
      %v1892 = vsub.s32 0, %v1891
      %v1893 = vsel %vm1887, %v1892, %v1891
      %vm1894 = vcmp.lt.s32.totalorder %v1860, 0
      %v1895 = vsub.s32 0, %v1860
      %v1896 = vsel %vm1894, %v1895, %v1860
      %v1897 = vshrl.u32 %v1896, 4
      %v1898 = vand.u32 %v1896, 15
      %v1899 = vsub.s32 0, %v1898
      %v1900 = vsel %vm1894, %v1899, %v1898
      %vm1901 = vcmp.lt.s32.totalorder %v1861, 0
      %v1902 = vsub.s32 0, %v1861
      %v1903 = vsel %vm1901, %v1902, %v1861
      %v1904 = vshrl.u32 %v1903, 4
      %v1905 = vand.u32 %v1903, 15
      %v1906 = vsub.s32 0, %v1905
      %v1907 = vsel %vm1901, %v1906, %v1905
      %vm1908 = vcmp.lt.s32.totalorder %v1862, 0
      %v1909 = vsub.s32 0, %v1862
      %v1910 = vsel %vm1908, %v1909, %v1862
      %v1911 = vshrl.u32 %v1910, 4
      %v1912 = vand.u32 %v1910, 15
      %v1913 = vsub.s32 0, %v1912
      %v1914 = vsel %vm1908, %v1913, %v1912
      %vm1915 = vcmp.lt.s32.totalorder %v1863, 0
      %v1916 = vsub.s32 0, %v1863
      %v1917 = vsel %vm1915, %v1916, %v1863
      %v1918 = vshrl.u32 %v1917, 4
      %v1919 = vand.u32 %v1917, 15
      %v1920 = vsub.s32 0, %v1919
      %v1921 = vsel %vm1915, %v1920, %v1919
      %vm1922 = vcmp.lt.s32.totalorder %v1864, 0
      %v1923 = vsub.s32 0, %v1864
      %v1924 = vsel %vm1922, %v1923, %v1864
      %v1925 = vshrl.u32 %v1924, 4
      %v1926 = vand.u32 %v1924, 15
      %v1927 = vsub.s32 0, %v1926
      %v1928 = vsel %vm1922, %v1927, %v1926
      %vm1929 = vcmp.lt.s32.totalorder %v1865, 0
      %v1930 = vsub.s32 0, %v1865
      %v1931 = vsel %vm1929, %v1930, %v1865
      %v1932 = vshrl.u32 %v1931, 4
      %v1933 = vand.u32 %v1931, 15
      %v1934 = vsub.s32 0, %v1933
      %v1935 = vsel %vm1929, %v1934, %v1933
      %vm1936 = vcmp.lt.s32.totalorder %v1866, 0
      %v1937 = vsub.s32 0, %v1866
      %v1938 = vsel %vm1936, %v1937, %v1866
      %v1939 = vshrl.u32 %v1938, 4
      %v1940 = vand.u32 %v1938, 15
      %v1941 = vsub.s32 0, %v1940
      %v1942 = vsel %vm1936, %v1941, %v1940
      %vm1943 = vcmp.lt.s32.totalorder %v1867, 0
      %v1944 = vsub.s32 0, %v1867
      %v1945 = vsel %vm1943, %v1944, %v1867
      %v1946 = vshrl.u32 %v1945, 4
      %v1947 = vand.u32 %v1945, 15
      %v1948 = vsub.s32 0, %v1947
      %v1949 = vsel %vm1943, %v1948, %v1947
      %vm1950 = vcmp.lt.s32.totalorder %v1868, 0
      %v1951 = vsub.s32 0, %v1868
      %v1952 = vsel %vm1950, %v1951, %v1868
      %v1953 = vshrl.u32 %v1952, 4
      %v1954 = vand.u32 %v1952, 15
      %v1955 = vsub.s32 0, %v1954
      %v1956 = vsel %vm1950, %v1955, %v1954
      %vm1957 = vcmp.lt.s32.totalorder %v1869, 0
      %v1958 = vsub.s32 0, %v1869
      %v1959 = vsel %vm1957, %v1958, %v1869
      %v1960 = vshrl.u32 %v1959, 4
      %v1961 = vand.u32 %v1959, 15
      %v1962 = vsub.s32 0, %v1961
      %v1963 = vsel %vm1957, %v1962, %v1961
      %vm1964 = vcmp.lt.s32.totalorder %v1870, 0
      %v1965 = vsub.s32 0, %v1870
      %v1966 = vsel %vm1964, %v1965, %v1870
      %v1967 = vshrl.u32 %v1966, 4
      %v1968 = vand.u32 %v1966, 15
      %v1969 = vsub.s32 0, %v1968
      %v1970 = vsel %vm1964, %v1969, %v1968
      %vm1971 = vcmp.lt.s32.totalorder %v1871, 0
      %v1972 = vsub.s32 0, %v1871
      %v1973 = vsel %vm1971, %v1972, %v1871
      %v1974 = vshrl.u32 %v1973, 4
      %v1975 = vand.u32 %v1973, 15
      %v1976 = vsub.s32 0, %v1975
      %v1977 = vsel %vm1971, %v1976, %v1975
      %vm1978 = vcmp.lt.s32.totalorder %v1872, 0
      %v1979 = vsub.s32 0, %v1872
      %v1980 = vsel %vm1978, %v1979, %v1872
      %v1981 = vshrl.u32 %v1980, 4
      %v1982 = vand.u32 %v1980, 15
      %v1983 = vsub.s32 0, %v1982
      %v1984 = vsel %vm1978, %v1983, %v1982
      %vm1985 = vcmp.ne.s32.totalorder %v1879, 0
      %vm1986 = vcmp.ne.s32.totalorder %v1886, 0
      %vm1987 = vcmp.ne.s32.totalorder %v1893, 0
      %vm1988 = vcmp.ne.s32.totalorder %v1900, 0
      %vm1989 = vcmp.ne.s32.totalorder %v1907, 0
      %vm1990 = vcmp.ne.s32.totalorder %v1914, 0
      %vm1991 = vcmp.ne.s32.totalorder %v1921, 0
      %vm1992 = vcmp.ne.s32.totalorder %v1928, 0
      %vm1993 = vcmp.ne.s32.totalorder %v1935, 0
      %vm1994 = vcmp.ne.s32.totalorder %v1942, 0
      %vm1995 = vcmp.ne.s32.totalorder %v1949, 0
      %vm1996 = vcmp.ne.s32.totalorder %v1956, 0
      %vm1997 = vcmp.ne.s32.totalorder %v1963, 0
      %vm1998 = vcmp.ne.s32.totalorder %v1970, 0
      %vm1999 = vcmp.ne.s32.totalorder %v1977, 0
      %vm2000 = vcmp.ne.s32.totalorder %v1984, 0
      %vm2001 = vcmp.lt.s32.totalorder %v1879, 0
      %vm2002 = vcmp.lt.s32.totalorder %v1886, 0
      %vm2003 = vcmp.lt.s32.totalorder %v1893, 0
      %vm2004 = vcmp.lt.s32.totalorder %v1900, 0
      %vm2005 = vcmp.lt.s32.totalorder %v1907, 0
      %vm2006 = vcmp.lt.s32.totalorder %v1914, 0
      %vm2007 = vcmp.lt.s32.totalorder %v1921, 0
      %vm2008 = vcmp.lt.s32.totalorder %v1928, 0
      %vm2009 = vcmp.lt.s32.totalorder %v1935, 0
      %vm2010 = vcmp.lt.s32.totalorder %v1942, 0
      %vm2011 = vcmp.lt.s32.totalorder %v1949, 0
      %vm2012 = vcmp.lt.s32.totalorder %v1956, 0
      %vm2013 = vcmp.lt.s32.totalorder %v1963, 0
      %vm2014 = vcmp.lt.s32.totalorder %v1970, 0
      %vm2015 = vcmp.lt.s32.totalorder %v1977, 0
      %vm2016 = vcmp.lt.s32.totalorder %v1984, 0
      %vm2017 = vmand %vm2001, %vm1985
      %vm2018 = vmand %vm2002, %vm1986
      %vm2019 = vmand %vm2003, %vm1987
      %vm2020 = vmand %vm2004, %vm1988
      %vm2021 = vmand %vm2005, %vm1989
      %vm2022 = vmand %vm2006, %vm1990
      %vm2023 = vmand %vm2007, %vm1991
      %vm2024 = vmand %vm2008, %vm1992
      %vm2025 = vmand %vm2009, %vm1993
      %vm2026 = vmand %vm2010, %vm1994
      %vm2027 = vmand %vm2011, %vm1995
      %vm2028 = vmand %vm2012, %vm1996
      %vm2029 = vmand %vm2013, %vm1997
      %vm2030 = vmand %vm2014, %vm1998
      %vm2031 = vmand %vm2015, %vm1999
      %vm2032 = vmand %vm2016, %vm2000
      %v2033 = vadd.s32 %v1879, 16
      %v2034 = vadd.s32 %v1886, 16
      %v2035 = vadd.s32 %v1893, 16
      %v2036 = vadd.s32 %v1900, 16
      %v2037 = vadd.s32 %v1907, 16
      %v2038 = vadd.s32 %v1914, 16
      %v2039 = vadd.s32 %v1921, 16
      %v2040 = vadd.s32 %v1928, 16
      %v2041 = vadd.s32 %v1935, 16
      %v2042 = vadd.s32 %v1942, 16
      %v2043 = vadd.s32 %v1949, 16
      %v2044 = vadd.s32 %v1956, 16
      %v2045 = vadd.s32 %v1963, 16
      %v2046 = vadd.s32 %v1970, 16
      %v2047 = vadd.s32 %v1977, 16
      %v2048 = vadd.s32 %v1984, 16
      %v2049 = vsel %vm2017, %v2033, %v1879
      %v2050 = vsel %vm2018, %v2034, %v1886
      %v2051 = vsel %vm2019, %v2035, %v1893
      %v2052 = vsel %vm2020, %v2036, %v1900
      %v2053 = vsel %vm2021, %v2037, %v1907
      %v2054 = vsel %vm2022, %v2038, %v1914
      %v2055 = vsel %vm2023, %v2039, %v1921
      %v2056 = vsel %vm2024, %v2040, %v1928
      %v2057 = vsel %vm2025, %v2041, %v1935
      %v2058 = vsel %vm2026, %v2042, %v1942
      %v2059 = vsel %vm2027, %v2043, %v1949
      %v2060 = vsel %vm2028, %v2044, %v1956
      %v2061 = vsel %vm2029, %v2045, %v1963
      %v2062 = vsel %vm2030, %v2046, %v1970
      %v2063 = vsel %vm2031, %v2047, %v1977
      %v2064 = vsel %vm2032, %v2048, %v1984
      %vm2065 = vcmp.ge.s32.totalorder %v2049, 1
      %vm2066 = vcmp.ge.s32.totalorder %v2050, 1
      %vm2067 = vcmp.ge.s32.totalorder %v2051, 1
      %vm2068 = vcmp.ge.s32.totalorder %v2052, 1
      %vm2069 = vcmp.ge.s32.totalorder %v2053, 1
      %vm2070 = vcmp.ge.s32.totalorder %v2054, 1
      %vm2071 = vcmp.ge.s32.totalorder %v2055, 1
      %vm2072 = vcmp.ge.s32.totalorder %v2056, 1
      %vm2073 = vcmp.ge.s32.totalorder %v2057, 1
      %vm2074 = vcmp.ge.s32.totalorder %v2058, 1
      %vm2075 = vcmp.ge.s32.totalorder %v2059, 1
      %vm2076 = vcmp.ge.s32.totalorder %v2060, 1
      %vm2077 = vcmp.ge.s32.totalorder %v2061, 1
      %vm2078 = vcmp.ge.s32.totalorder %v2062, 1
      %vm2079 = vcmp.ge.s32.totalorder %v2063, 1
      %vm2080 = vcmp.ge.s32.totalorder %v2064, 1
      %vm2081 = vcmp.le.s32.totalorder %v2049, 8
      %vm2082 = vcmp.le.s32.totalorder %v2050, 8
      %vm2083 = vcmp.le.s32.totalorder %v2051, 8
      %vm2084 = vcmp.le.s32.totalorder %v2052, 8
      %vm2085 = vcmp.le.s32.totalorder %v2053, 8
      %vm2086 = vcmp.le.s32.totalorder %v2054, 8
      %vm2087 = vcmp.le.s32.totalorder %v2055, 8
      %vm2088 = vcmp.le.s32.totalorder %v2056, 8
      %vm2089 = vcmp.le.s32.totalorder %v2057, 8
      %vm2090 = vcmp.le.s32.totalorder %v2058, 8
      %vm2091 = vcmp.le.s32.totalorder %v2059, 8
      %vm2092 = vcmp.le.s32.totalorder %v2060, 8
      %vm2093 = vcmp.le.s32.totalorder %v2061, 8
      %vm2094 = vcmp.le.s32.totalorder %v2062, 8
      %vm2095 = vcmp.le.s32.totalorder %v2063, 8
      %vm2096 = vcmp.le.s32.totalorder %v2064, 8
      %vm2097 = vmand %vm2065, %vm2081
      %vm2098 = vmand %vm2066, %vm2082
      %vm2099 = vmand %vm2067, %vm2083
      %vm2100 = vmand %vm2068, %vm2084
      %vm2101 = vmand %vm2069, %vm2085
      %vm2102 = vmand %vm2070, %vm2086
      %vm2103 = vmand %vm2071, %vm2087
      %vm2104 = vmand %vm2072, %vm2088
      %vm2105 = vmand %vm2073, %vm2089
      %vm2106 = vmand %vm2074, %vm2090
      %vm2107 = vmand %vm2075, %vm2091
      %vm2108 = vmand %vm2076, %vm2092
      %vm2109 = vmand %vm2077, %vm2093
      %vm2110 = vmand %vm2078, %vm2094
      %vm2111 = vmand %vm2079, %vm2095
      %vm2112 = vmand %vm2080, %vm2096
      %v2113 = vsel %vm2097, 1, 0
      %v2114 = vsel %vm2098, 1, 0
      %v2115 = vsel %vm2099, 1, 0
      %v2116 = vsel %vm2100, 1, 0
      %v2117 = vsel %vm2101, 1, 0
      %v2118 = vsel %vm2102, 1, 0
      %v2119 = vsel %vm2103, 1, 0
      %v2120 = vsel %vm2104, 1, 0
      %v2121 = vsel %vm2105, 1, 0
      %v2122 = vsel %vm2106, 1, 0
      %v2123 = vsel %vm2107, 1, 0
      %v2124 = vsel %vm2108, 1, 0
      %v2125 = vsel %vm2109, 1, 0
      %v2126 = vsel %vm2110, 1, 0
      %v2127 = vsel %vm2111, 1, 0
      %v2128 = vsel %vm2112, 1, 0
      %vm2129 = vcmp.eq.s32.totalorder %v2113, 1
      %vm2130 = vcmp.eq.s32.totalorder %v2114, 1
      %vm2131 = vcmp.eq.s32.totalorder %v2115, 1
      %vm2132 = vcmp.eq.s32.totalorder %v2116, 1
      %vm2133 = vcmp.eq.s32.totalorder %v2117, 1
      %vm2134 = vcmp.eq.s32.totalorder %v2118, 1
      %vm2135 = vcmp.eq.s32.totalorder %v2119, 1
      %vm2136 = vcmp.eq.s32.totalorder %v2120, 1
      %vm2137 = vcmp.eq.s32.totalorder %v2121, 1
      %vm2138 = vcmp.eq.s32.totalorder %v2122, 1
      %vm2139 = vcmp.eq.s32.totalorder %v2123, 1
      %vm2140 = vcmp.eq.s32.totalorder %v2124, 1
      %vm2141 = vcmp.eq.s32.totalorder %v2125, 1
      %vm2142 = vcmp.eq.s32.totalorder %v2126, 1
      %vm2143 = vcmp.eq.s32.totalorder %v2127, 1
      %vm2144 = vcmp.eq.s32.totalorder %v2128, 1
      %v2145 = vsel %vm2129, %v1840, 0.0
      %v2146 = vsel %vm2130, %v1841, 0.0
      %v2147 = vsel %vm2131, %v1842, 0.0
      %v2148 = vsel %vm2132, %v1843, 0.0
      %v2149 = vsel %vm2133, %v1844, 0.0
      %v2150 = vsel %vm2134, %v1845, 0.0
      %v2151 = vsel %vm2135, %v1846, 0.0
      %v2152 = vsel %vm2136, %v1847, 0.0
      %v2153 = vsel %vm2137, %v1848, 0.0
      %v2154 = vsel %vm2138, %v1849, 0.0
      %v2155 = vsel %vm2139, %v1850, 0.0
      %v2156 = vsel %vm2140, %v1851, 0.0
      %v2157 = vsel %vm2141, %v1852, 0.0
      %v2158 = vsel %vm2142, %v1853, 0.0
      %v2159 = vsel %vm2143, %v1854, 0.0
      %v2160 = vsel %vm2144, %v1855, 0.0
      %v2161 = vsel %vm251, %v2145, 0.0
      %v2162 = vsel %vm251, %v2146, 0.0
      %v2163 = vadd.f32 %v2161, %v2162
      %v2164 = vsel %vm251, %v2147, 0.0
      %v2165 = vadd.f32 %v2163, %v2164
      %v2166 = vsel %vm251, %v2148, 0.0
      %v2167 = vadd.f32 %v2165, %v2166
      %v2168 = vsel %vm251, %v2149, 0.0
      %v2169 = vadd.f32 %v2167, %v2168
      %v2170 = vsel %vm251, %v2150, 0.0
      %v2171 = vadd.f32 %v2169, %v2170
      %v2172 = vsel %vm251, %v2151, 0.0
      %v2173 = vadd.f32 %v2171, %v2172
      %v2174 = vsel %vm251, %v2152, 0.0
      %v2175 = vadd.f32 %v2173, %v2174
      %v2176 = vsel %vm251, %v2153, 0.0
      %v2177 = vadd.f32 %v2175, %v2176
      %v2178 = vsel %vm251, %v2154, 0.0
      %v2179 = vadd.f32 %v2177, %v2178
      %v2180 = vsel %vm251, %v2155, 0.0
      %v2181 = vadd.f32 %v2179, %v2180
      %v2182 = vsel %vm251, %v2156, 0.0
      %v2183 = vadd.f32 %v2181, %v2182
      %v2184 = vsel %vm251, %v2157, 0.0
      %v2185 = vadd.f32 %v2183, %v2184
      %v2186 = vsel %vm251, %v2158, 0.0
      %v2187 = vadd.f32 %v2185, %v2186
      %v2188 = vsel %vm251, %v2159, 0.0
      %v2189 = vadd.f32 %v2187, %v2188
      %v2190 = vsel %vm251, %v2160, 0.0
      %v2191 = vadd.f32 %v2189, %v2190
      %v2192 = vrot.slane %v2191, 4
      %v2193 = vadd.f32 %v2191, %v2192
      %v2194 = vrot.slane %v2193, 2
      %v2195 = vadd.f32 %v2193, %v2194
      %v2196 = vrot.slane %v2195, 1
      %v2197 = vadd.f32 %v2195, %v2196
      %v2198 = vmul.f32 %v2145, %v2145
      %v2199 = vmul.f32 %v2146, %v2146
      %v2200 = vmul.f32 %v2147, %v2147
      %v2201 = vmul.f32 %v2148, %v2148
      %v2202 = vmul.f32 %v2149, %v2149
      %v2203 = vmul.f32 %v2150, %v2150
      %v2204 = vmul.f32 %v2151, %v2151
      %v2205 = vmul.f32 %v2152, %v2152
      %v2206 = vmul.f32 %v2153, %v2153
      %v2207 = vmul.f32 %v2154, %v2154
      %v2208 = vmul.f32 %v2155, %v2155
      %v2209 = vmul.f32 %v2156, %v2156
      %v2210 = vmul.f32 %v2157, %v2157
      %v2211 = vmul.f32 %v2158, %v2158
      %v2212 = vmul.f32 %v2159, %v2159
      %v2213 = vmul.f32 %v2160, %v2160
      %v2214 = vsel %vm251, %v2198, 0.0
      %v2215 = vsel %vm251, %v2199, 0.0
      %v2216 = vadd.f32 %v2214, %v2215
      %v2217 = vsel %vm251, %v2200, 0.0
      %v2218 = vadd.f32 %v2216, %v2217
      %v2219 = vsel %vm251, %v2201, 0.0
      %v2220 = vadd.f32 %v2218, %v2219
      %v2221 = vsel %vm251, %v2202, 0.0
      %v2222 = vadd.f32 %v2220, %v2221
      %v2223 = vsel %vm251, %v2203, 0.0
      %v2224 = vadd.f32 %v2222, %v2223
      %v2225 = vsel %vm251, %v2204, 0.0
      %v2226 = vadd.f32 %v2224, %v2225
      %v2227 = vsel %vm251, %v2205, 0.0
      %v2228 = vadd.f32 %v2226, %v2227
      %v2229 = vsel %vm251, %v2206, 0.0
      %v2230 = vadd.f32 %v2228, %v2229
      %v2231 = vsel %vm251, %v2207, 0.0
      %v2232 = vadd.f32 %v2230, %v2231
      %v2233 = vsel %vm251, %v2208, 0.0
      %v2234 = vadd.f32 %v2232, %v2233
      %v2235 = vsel %vm251, %v2209, 0.0
      %v2236 = vadd.f32 %v2234, %v2235
      %v2237 = vsel %vm251, %v2210, 0.0
      %v2238 = vadd.f32 %v2236, %v2237
      %v2239 = vsel %vm251, %v2211, 0.0
      %v2240 = vadd.f32 %v2238, %v2239
      %v2241 = vsel %vm251, %v2212, 0.0
      %v2242 = vadd.f32 %v2240, %v2241
      %v2243 = vsel %vm251, %v2213, 0.0
      %v2244 = vadd.f32 %v2242, %v2243
      %v2245 = vrot.slane %v2244, 4
      %v2246 = vadd.f32 %v2244, %v2245
      %v2247 = vrot.slane %v2246, 2
      %v2248 = vadd.f32 %v2246, %v2247
      %v2249 = vrot.slane %v2248, 1
      %v2250 = vadd.f32 %v2248, %v2249
      %vm2251 = vcmask 1040384
      %v2252 = vsel %vm2251, %v2197, %v2250
      %vm2253 = vcmask 58368
      %2254 = vst.msk [vmem:[%s214] sm:$0x3] %vm2253, %v2252
      %v2255 = vpack.c.bf16 %v1840, %v1840
      %v2256 = vpack.c.bf16 %v1841, %v1841
      %v2257 = vpack.c.bf16 %v1842, %v1842
      %v2258 = vpack.c.bf16 %v1843, %v1843
      %v2259 = vpack.c.bf16 %v1844, %v1844
      %v2260 = vpack.c.bf16 %v1845, %v1845
      %v2261 = vpack.c.bf16 %v1846, %v1846
      %v2262 = vpack.c.bf16 %v1847, %v1847
      %v2263 = vpack.c.bf16 %v1848, %v1848
      %v2264 = vpack.c.bf16 %v1849, %v1849
      %v2265 = vpack.c.bf16 %v1850, %v1850
      %v2266 = vpack.c.bf16 %v1851, %v1851
      %v2267 = vpack.c.bf16 %v1852, %v1852
      %v2268 = vpack.c.bf16 %v1853, %v1853
      %v2269 = vpack.c.bf16 %v1854, %v1854
      %v2270 = vpack.c.bf16 %v1855, %v1855
      %vm2271 = vcmask 60416
      %2272 = vst.msk [vmem:[%s206] sm:$0xf] %vm2271, %v2255
      %2273 = vst.msk [vmem:[%s206 + $0x4] sm:$0xf] %vm2271, %v2256
      %2274 = vst.msk [vmem:[%s206 + $0x8] sm:$0xf] %vm2271, %v2257
      %2275 = vst.msk [vmem:[%s206 + $0xc] sm:$0xf] %vm2271, %v2258
      %2276 = vst.msk [vmem:[%s206 + $0x10] sm:$0xf] %vm2271, %v2259
      %2277 = vst.msk [vmem:[%s206 + $0x14] sm:$0xf] %vm2271, %v2260
      %2278 = vst.msk [vmem:[%s206 + $0x18] sm:$0xf] %vm2271, %v2261
      %2279 = vst.msk [vmem:[%s206 + $0x1c] sm:$0xf] %vm2271, %v2262
      %2280 = vst.msk [vmem:[%s206 + $0x20] sm:$0xf] %vm2271, %v2263
      %2281 = vst.msk [vmem:[%s206 + $0x24] sm:$0xf] %vm2271, %v2264
      %2282 = vst.msk [vmem:[%s206 + $0x28] sm:$0xf] %vm2271, %v2265
      %2283 = vst.msk [vmem:[%s206 + $0x2c] sm:$0xf] %vm2271, %v2266
      %2284 = vst.msk [vmem:[%s206 + $0x30] sm:$0xf] %vm2271, %v2267
      %2285 = vst.msk [vmem:[%s206 + $0x34] sm:$0xf] %vm2271, %v2268
      %2286 = vst.msk [vmem:[%s206 + $0x38] sm:$0xf] %vm2271, %v2269
      %2287 = vst.msk [vmem:[%s206 + $0x3c] sm:$0xf] %vm2271, %v2270
      %s2288 = smul.u32 8, %s20
      %p2289 = scmp.lt.s32.totalorder %s19, 1
      %s2290 = scalar_select %p2289, %s19, 1
      %p2291 = scmp.lt.s32.totalorder %s2288, 7
      %s2292 = scalar_select %p2291, %s2288, 7
      %s2293 = smul.addr %s2292, 2
      %s2294 = smul.addr %s2290, 16
      %s2295 = sadd.s32 %s2293, %s2294
      %s2296 = smul.addr %s2295, 4
      %s2297 = scalar_lea.vmem %s2, %s2296
      %p2298 = scmp.lt.s32.totalorder %s19, 1
      %s2299 = scalar_select %p2298, %s19, 1
      %p2300 = scmp.lt.s32.totalorder %s20, 0
      %s2301 = scalar_select %p2300, %s20, 0
      %s2302 = sadd.s32 %s2301, %s2299
      %s2303 = smul.addr %s2302, 2
      %s2304 = scalar_lea.vmem %s3, %s2303
      // Predicated region
      $region45: #{down_forward.3} parent=27 // pred_check
        %p2305 = pneg %p94
      $region46: #{down_forward.3} parent=27 // pred_check_branch
        %2307 = sbr.rel (%p2305) target = $region48
      $region47: #{down_forward.3} parent=27 // pred_region
        %s2308 = smul.u32 8, %s20
      $region48: #{down_forward.3} parent=27 // pred_fallthru
        _
      // Predicated region
      $region49: #{down_forward.3} parent=27 // pred_check
        %p2309 = pneg %p122
      $region50: #{down_forward.3} parent=27 // pred_check_branch
        %2311 = sbr.rel (%p2309) target = $region52
      $region51: #{down_forward.3} parent=27 // pred_region
        _
      $region52: #{down_forward.3} parent=27 // pred_fallthru
        _
    $region28: #{down_forward.3} parent=5 // pred_fallthru
      _
    %p2312 = scmp.le.s32.totalorder 2, %s10
    // Predicated region
    $region53: #{down_forward.3} parent=5 // pred_check
      %p2313 = pneg %p2312
    $region54: #{down_forward.3} parent=5 // pred_check_branch
      %2315 = sbr.rel (%p2313) target = $region56
    $region55: #{down_forward.3} parent=5 // pred_region
      %s2316 = ssub.s32 %s10, 2
      // Predicated region
      $region57: #{down_forward.3} parent=55 // pred_check
        %p2317 = pneg %p100
      $region58: #{down_forward.3} parent=55 // pred_check_branch
        %2319 = sbr.rel (%p2317) target = $region60
      $region59: #{down_forward.3} parent=55 // pred_region
        %s2320 = smul.u32 8, %s22
        %p2321 = scmp.lt.s32.totalorder %s21, 1
        %s2322 = scalar_select %p2321, %s21, 1
        %p2323 = scmp.lt.s32.totalorder %s2320, 7
        %s2324 = scalar_select %p2323, %s2320, 7
        %s2325 = smul.addr %s2324, 2
        %s2326 = smul.addr %s2322, 16
        %s2327 = sadd.s32 %s2325, %s2326
        %s2328 = smul.addr %s2327, 4
        %s2329 = scalar_lea.vmem %s2, %s2328
      $region60: #{down_forward.3} parent=55 // pred_fallthru
        _
      // Predicated region
      $region61: #{down_forward.3} parent=55 // pred_check
        %p2330 = pneg %p128
      $region62: #{down_forward.3} parent=55 // pred_check_branch
        %2332 = sbr.rel (%p2330) target = $region64
      $region63: #{down_forward.3} parent=55 // pred_region
        %p2333 = scmp.lt.s32.totalorder %s21, 1
        %s2334 = scalar_select %p2333, %s21, 1
        %p2335 = scmp.lt.s32.totalorder %s22, 0
        %s2336 = scalar_select %p2335, %s22, 0
        %s2337 = sadd.s32 %s2336, %s2334
        %s2338 = smul.addr %s2337, 2
        %s2339 = scalar_lea.vmem %s3, %s2338
      $region64: #{down_forward.3} parent=55 // pred_fallthru
        _
    $region56: #{down_forward.3} parent=5 // pred_fallthru
      _
  $region6: #{down_forward.3} parent=0 // loop_footer
    %s14 = sadd.s32 1, %s10
  $region7: #{down_forward.3} parent=0 // loop_footer_branch
    %9 = sbr.rel target = $region3
  $region8: #{down_forward.3} parent=0 // loop_exit
    _

</llo_original>
